<compile_context>
chip_gen: v7x
topology: tpu7x:2x2x1
jax: 0.10.0
libtpu: 0.0.40
codegen_flags: <defaults>
</compile_context>

<pallas_src>
import functools

import jax
import jax.numpy as jnp
from jax.experimental import pallas as pl
from jax.experimental.pallas import tpu as pltpu

NEG_INF = -9e15          # pyGAT masking constant
ALPHA_DEFAULT = 0.2      # LeakyReLU negative slope


def _leaky_relu(x, slope):
    return jnp.where(x > 0, x, slope * x)


def _elu(x):
    return jnp.where(x > 0, x, jnp.exp(jnp.minimum(x, 0.0)) - 1.0)


def _attention_head(xb_full, xb_tile, adj_mask, w, a_src, a_dst, alpha):
    """One dense GAT head for a row tile of query nodes.

    xb_full : (N, F_in)  bf16  features of every node (keys / values)
    xb_tile : (TM, F_in) bf16  features of this grid step's query rows
    adj_mask: (TM, N)    bool  neighbourhood mask for the query rows
    w       : (F_in, F_out) bf16
    a_src / a_dst : (1, F_out) f32 halves of the attention vector `a`
    returns h' (TM, F_out) f32.
    """
    wh_all = jnp.dot(xb_full, w, preferred_element_type=jnp.float32)    # (N, F_out)
    wh_tile = jnp.dot(xb_tile, w, preferred_element_type=jnp.float32)   # (TM, F_out)

    # Width-1 projections: query side on the VPU/XLU (lane reduce), key side as
    # a 1xN "NT" dot -> keys land on lanes, no transpose, no narrow MXU output.
    f_src = jnp.sum(wh_tile * a_src, axis=-1, keepdims=True)            # (TM, 1)
    f_dst = jnp.einsum('of,nf->on', a_dst, wh_all,
                       preferred_element_type=jnp.float32)              # (1, N)

    e = _leaky_relu(f_src + f_dst, alpha)                               # (TM, N)
    e = jnp.where(adj_mask, e, NEG_INF)

    m = jnp.max(e, axis=-1, keepdims=True)
    p = jnp.exp(e - m)
    denom = jnp.sum(p, axis=-1, keepdims=True)
    att = p * pl.reciprocal(denom, approx=True)      # EUP reciprocal (free slot)

    return jnp.dot(att.astype(jnp.bfloat16), wh_all.astype(jnp.bfloat16),
                   preferred_element_type=jnp.float32)                  # (TM, F_out)


def _multihead_layer_kernel(x_full_ref, x_tile_ref, adj_ref,
                            w_ref, asrc_ref, adst_ref, out_ref,
                            *, nheads, alpha):
    xb_full = x_full_ref[...].astype(jnp.bfloat16)     # hoisted out of head loop
    xb_tile = x_tile_ref[...].astype(jnp.bfloat16)
    adj_mask = adj_ref[...] > 0.0
    heads = []
    for h in range(nheads):                            # static unroll (few heads)
        heads.append(_attention_head(xb_full, xb_tile, adj_mask,
                                     w_ref[h], asrc_ref[h], adst_ref[h], alpha))
    # ELU (concat=True heads) on the concatenated block; one lane-dense store.
    out_ref[...] = _elu(jnp.concatenate(heads, axis=-1)).astype(out_ref.dtype)


def _out_layer_kernel(x_full_ref, x_tile_ref, adj_ref,
                      w_ref, asrc_ref, adst_ref, out_ref, *, alpha):
    xb_full = x_full_ref[...].astype(jnp.bfloat16)
    xb_tile = x_tile_ref[...].astype(jnp.bfloat16)
    adj_mask = adj_ref[...] > 0.0
    hp = _attention_head(xb_full, xb_tile, adj_mask,
                         w_ref[0], asrc_ref[0], adst_ref[0], alpha)   # (TM, nclass)
    z = _elu(hp)                                    # model-level ELU (concat=False head)
    m = jnp.max(z, axis=-1, keepdims=True)          # log_softmax over classes
    lse = m + jnp.log(jnp.sum(jnp.exp(z - m), axis=-1, keepdims=True))
    out_ref[...] = (z - lse).astype(out_ref.dtype)


def _pick_tm(n, max_tm):
    for t in (256, 128, 64, 32, 16, 8):
        if t <= max_tm and n % t == 0:
            return t
    return n   # fallback: single row block (block == full dim is always legal)


def _cost_estimate(n, tm, nheads, fin, fout):
    steps = n // tm
    flops = steps * nheads * (2 * n * fin * fout        # Wh of all nodes (per tile)
                              + 2 * tm * fin * fout     # Wh of the query rows
                              + 2 * n * fout            # key-side scores
                              + 2 * tm * n * fout       # attention aggregation
                              + 8 * tm * n)             # scores / softmax elementwise
    transcendentals = steps * nheads * tm * n           # softmax exp
    bytes_accessed = (n * n * 2 + steps * tm * fin * 4 + n * fin * 4
                      + n * nheads * fout * 4 + nheads * fin * fout * 2)
    return pl.CostEstimate(flops=int(flops), transcendentals=int(transcendentals),
                           bytes_accessed=int(bytes_accessed))


def _gat_layer(x, adj_b, w, a_src, a_dst, *, alpha, max_tm, out_layer=False):
    n, fin = x.shape
    nheads, _, fout = w.shape
    tm = _pick_tm(n, max_tm)
    grid = (n // tm,)
    if out_layer:
        kernel = functools.partial(_out_layer_kernel, alpha=alpha)
        fout_total = fout
    else:
        kernel = functools.partial(_multihead_layer_kernel, nheads=nheads, alpha=alpha)
        fout_total = nheads * fout
    return pl.pallas_call(
        kernel,
        out_shape=jax.ShapeDtypeStruct((n, fout_total), jnp.float32),
        grid=grid,
        in_specs=[
            pl.BlockSpec((n, fin), lambda i: (0, 0)),      # x: all nodes (keys/values), VMEM resident
            pl.BlockSpec((tm, fin), lambda i: (i, 0)),     # x: query row tile
            pl.BlockSpec((tm, n), lambda i: (i, 0)),       # adj: streamed bf16 row slab
            pl.BlockSpec(w.shape, lambda i: (0, 0, 0)),    # stacked per-head weights (bf16)
            pl.BlockSpec(a_src.shape, lambda i: (0, 0, 0)),
            pl.BlockSpec(a_dst.shape, lambda i: (0, 0, 0)),
        ],
        out_specs=pl.BlockSpec((tm, fout_total), lambda i: (i, 0)),
        compiler_params=pltpu.CompilerParams(
            dimension_semantics=("parallel",)),            # row tiles are independent
        cost_estimate=_cost_estimate(n, tm, nheads, fin, fout),
    )(x, x, adj_b, w, a_src, a_dst)


def gat_ordered_deep_forward(x, adj, params, *, alpha=ALPHA_DEFAULT, max_tm=256):
    """x: (N, nfeat) f32, adj: (N, N) dense 0/1 adjacency (self loops allowed)."""
    adj_b = adj.astype(jnp.bfloat16)                       # 0/1 exact, halves adj traffic
    h = x.astype(jnp.float32)
    h = _gat_layer(h, adj_b, params["w1"].astype(jnp.bfloat16),
                   params["a1_src"], params["a1_dst"], alpha=alpha, max_tm=max_tm)
    h = _gat_layer(h, adj_b, params["w2"].astype(jnp.bfloat16),
                   params["a2_src"], params["a2_dst"], alpha=alpha, max_tm=max_tm)
    return _gat_layer(h, adj_b, params["w_out"].astype(jnp.bfloat16),
                      params["aout_src"], params["aout_dst"],
                      alpha=alpha, max_tm=max_tm, out_layer=True)


def init_params(key, nfeat, nclass, final_outd, nheads, nheads_2):
    ks = iter(jax.random.split(key, 12))

    def xavier(k, shape, gain=1.414):
        fan_in, fan_out = shape[-2], shape[-1]
        lim = gain * (6.0 / (fan_in + fan_out)) ** 0.5
        return jax.random.uniform(k, shape, jnp.float32, minval=-lim, maxval=lim)

    f2_in = final_outd * nheads
    fo_in = final_outd * nheads_2
    return {
        "w1":       xavier(next(ks), (nheads, nfeat, final_outd)),
        "a1_src":   xavier(next(ks), (nheads, 1, final_outd)),
        "a1_dst":   xavier(next(ks), (nheads, 1, final_outd)),
        "w2":       xavier(next(ks), (nheads_2, f2_in, final_outd)),
        "a2_src":   xavier(next(ks), (nheads_2, 1, final_outd)),
        "a2_dst":   xavier(next(ks), (nheads_2, 1, final_outd)),
        "w_out":    xavier(next(ks), (1, fo_in, nclass)),
        "aout_src": xavier(next(ks), (1, 1, nclass)),
        "aout_dst": xavier(next(ks), (1, 1, nclass)),
    }


if __name__ == "__main__":
    # Small deterministic example consistent with the module:
    N = 64
    nfeat, nhid, nclass = 32, 64, 7          # nhid unused (see TODO above)
    final_outd, nheads, nheads_2 = 32, 4, 4  # layer widths 128 / 128 / 7
    alpha, dropout = 0.2, 0.6                # dropout is identity at inference

    key = jax.random.PRNGKey(0)
    k_x, k_adj, k_par = jax.random.split(key, 3)

    x = jax.random.normal(k_x, (N, nfeat), jnp.float32)

    # random symmetric binary adjacency with self loops
    raw = (jax.random.uniform(k_adj, (N, N)) < 0.2).astype(jnp.float32)
    adj = jnp.maximum(jnp.maximum(raw, raw.T), jnp.eye(N, dtype=jnp.float32))

    params = init_params(k_par, nfeat, nclass, final_outd, nheads, nheads_2)

    fwd = jax.jit(functools.partial(gat_ordered_deep_forward,
                                    alpha=alpha, max_tm=32))   # grid = (2,)
    y = fwd(x, adj, params)
    y = jax.block_until_ready(y)

    assert y.shape == (N, nclass) and y.dtype == jnp.float32
    assert bool(jnp.all(jnp.isfinite(y)))
    # rows of log_softmax output must normalise to 1 in probability space
    assert bool(jnp.allclose(jnp.exp(y).sum(axis=-1), 1.0, atol=1e-3))
    print("KERNEL_OK")
</pallas_src>

<mosaic_0001>
module attributes {stable_mosaic.version = 11 : i64} {
  func.func @_multihead_layer_kernel(%arg0: i32, %arg1: memref<64x32xf32, #tpu.memory_space<vmem>>, %arg2: memref<32x32xf32, #tpu.memory_space<vmem>>, %arg3: memref<32x64xbf16, #tpu.memory_space<vmem>>, %arg4: memref<4x32x32xbf16, #tpu.memory_space<vmem>>, %arg5: memref<4x1x32xf32, #tpu.memory_space<vmem>>, %arg6: memref<4x1x32xf32, #tpu.memory_space<vmem>>, %arg7: memref<32x128xf32, #tpu.memory_space<vmem>>) attributes {dimension_semantics = [#tpu.dimension_semantics<parallel>], iteration_bounds = array<i64: 2>, scalar_prefetch = 0 : i64, scratch_operands = 0 : i64, tpu.core_type = #tpu.core_type<tc>, window_params = [{pipeline_mode = #tpu.pipeline_mode<synchronous>, transform_indices = @transform_0, window_bounds = array<i64: 64, 32>}, {transform_indices = @transform_1, window_bounds = array<i64: 32, 32>}, {transform_indices = @transform_2, window_bounds = array<i64: 32, 64>}, {pipeline_mode = #tpu.pipeline_mode<synchronous>, transform_indices = @transform_3, window_bounds = array<i64: 4, 32, 32>}, {pipeline_mode = #tpu.pipeline_mode<synchronous>, transform_indices = @transform_4, window_bounds = array<i64: 4, 1, 32>}, {pipeline_mode = #tpu.pipeline_mode<synchronous>, transform_indices = @transform_5, window_bounds = array<i64: 4, 1, 32>}, {transform_indices = @transform_6, window_bounds = array<i64: 32, 128>}]} {
    %c0 = arith.constant 0 : index
    %c0_0 = arith.constant 0 : index
    %0 = vector.load %arg1[%c0, %c0_0] : memref<64x32xf32, #tpu.memory_space<vmem>>, vector<64x32xf32>
    %1 = arith.truncf %0 : vector<64x32xf32> to vector<64x32xbf16>
    %c0_1 = arith.constant 0 : index
    %c0_2 = arith.constant 0 : index
    %2 = vector.load %arg2[%c0_1, %c0_2] : memref<32x32xf32, #tpu.memory_space<vmem>>, vector<32x32xf32>
    %3 = arith.truncf %2 : vector<32x32xf32> to vector<32x32xbf16>
    %c0_3 = arith.constant 0 : index
    %c0_4 = arith.constant 0 : index
    %4 = vector.load %arg3[%c0_3, %c0_4] : memref<32x64xbf16, #tpu.memory_space<vmem>>, vector<32x64xbf16>
    %cst = arith.constant 0.000000e+00 : bf16
    %5 = vector.broadcast %cst : bf16 to vector<32x64xbf16>
    %6 = arith.cmpf ogt, %4, %5 : vector<32x64xbf16>
    %c0_5 = arith.constant 0 : index
    %c0_6 = arith.constant 0 : index
    %c0_7 = arith.constant 0 : index
    %7 = vector.load %arg4[%c0_5, %c0_6, %c0_7] : memref<4x32x32xbf16, #tpu.memory_space<vmem>>, vector<1x32x32xbf16>
    %8 = vector.shape_cast %7 : vector<1x32x32xbf16> to vector<32x32xbf16>
    %c0_8 = arith.constant 0 : index
    %c0_9 = arith.constant 0 : index
    %c0_10 = arith.constant 0 : index
    %9 = vector.load %arg5[%c0_8, %c0_9, %c0_10] : memref<4x1x32xf32, #tpu.memory_space<vmem>>, vector<1x1x32xf32>
    %10 = vector.shape_cast %9 : vector<1x1x32xf32> to vector<1x32xf32>
    %c0_11 = arith.constant 0 : index
    %c0_12 = arith.constant 0 : index
    %c0_13 = arith.constant 0 : index
    %11 = vector.load %arg6[%c0_11, %c0_12, %c0_13] : memref<4x1x32xf32, #tpu.memory_space<vmem>>, vector<1x1x32xf32>
    %12 = vector.shape_cast %11 : vector<1x1x32xf32> to vector<1x32xf32>
    %cst_14 = arith.constant dense<0.000000e+00> : vector<64x32xf32>
    %13 = tpu.matmul %1, %8, %cst_14 {dimension_numbers = #tpu.dot_dimension_numbers<[1], [0], [0], [1], [0, 0, 1, 1], [], []>} : vector<64x32xbf16>, vector<32x32xbf16>, vector<64x32xf32> -> vector<64x32xf32>
    %cst_15 = arith.constant dense<0.000000e+00> : vector<32x32xf32>
    %14 = tpu.matmul %3, %8, %cst_15 {dimension_numbers = #tpu.dot_dimension_numbers<[1], [0], [0], [1], [0, 0, 1, 1], [], []>} : vector<32x32xbf16>, vector<32x32xbf16>, vector<32x32xf32> -> vector<32x32xf32>
    %15 = vector.broadcast %10 : vector<1x32xf32> to vector<32x32xf32>
    %16 = arith.mulf %14, %15 : vector<32x32xf32>
    %cst_16 = arith.constant dense<0.000000e+00> : vector<32xf32>
    %17 = vector.multi_reduction <add>, %16, %cst_16 [1] : vector<32x32xf32> to vector<32xf32>
    %18 = vector.shape_cast %17 : vector<32xf32> to vector<32x1xf32>
    "tpu.trace_start"() <{level = 10 : i32, message = "of,nf->on"}> : () -> ()
    %cst_17 = arith.constant dense<0.000000e+00> : vector<1x64xf32>
    %19 = tpu.matmul %12, %13, %cst_17 {dimension_numbers = #tpu.dot_dimension_numbers<[1], [1], [0], [0], [0, 0, 1, 0], [], []>} : vector<1x32xf32>, vector<64x32xf32>, vector<1x64xf32> -> vector<1x64xf32>
    "tpu.trace_stop"() : () -> ()
    %20 = vector.broadcast %18 : vector<32x1xf32> to vector<32x64xf32>
    %21 = vector.broadcast %19 : vector<1x64xf32> to vector<32x64xf32>
    %22 = arith.addf %20, %21 : vector<32x64xf32>
    %cst_18 = arith.constant 0.000000e+00 : f32
    %23 = vector.broadcast %cst_18 : f32 to vector<32x64xf32>
    %24 = arith.cmpf ogt, %22, %23 : vector<32x64xf32>
    %cst_19 = arith.constant 2.000000e-01 : f32
    %25 = vector.broadcast %cst_19 : f32 to vector<32x64xf32>
    %26 = arith.mulf %25, %22 : vector<32x64xf32>
    %27 = arith.select %24, %22, %26 : vector<32x64xi1>, vector<32x64xf32>
    %cst_20 = arith.constant -9.000000e+15 : f32
    %28 = vector.broadcast %cst_20 : f32 to vector<32x64xf32>
    %29 = arith.select %6, %27, %28 : vector<32x64xi1>, vector<32x64xf32>
    %cst_21 = arith.constant dense<0xFF800000> : vector<32xf32>
    %30 = vector.multi_reduction <maximumf>, %29, %cst_21 [1] : vector<32x64xf32> to vector<32xf32>
    %31 = vector.shape_cast %30 : vector<32xf32> to vector<32x1xf32>
    %32 = vector.broadcast %31 : vector<32x1xf32> to vector<32x64xf32>
    %33 = arith.subf %29, %32 : vector<32x64xf32>
    %34 = math.exp %33 : vector<32x64xf32>
    %cst_22 = arith.constant dense<0.000000e+00> : vector<32xf32>
    %35 = vector.multi_reduction <add>, %34, %cst_22 [1] : vector<32x64xf32> to vector<32xf32>
    %36 = vector.shape_cast %35 : vector<32xf32> to vector<32x1xf32>
    %37 = tpu.reciprocal %36 {approx = true} : vector<32x1xf32> -> vector<32x1xf32>
    %38 = vector.broadcast %37 : vector<32x1xf32> to vector<32x64xf32>
    %39 = arith.mulf %34, %38 : vector<32x64xf32>
    %40 = arith.truncf %39 : vector<32x64xf32> to vector<32x64xbf16>
    %41 = arith.truncf %13 : vector<64x32xf32> to vector<64x32xbf16>
    %cst_23 = arith.constant dense<0.000000e+00> : vector<32x32xf32>
    %42 = tpu.matmul %40, %41, %cst_23 {dimension_numbers = #tpu.dot_dimension_numbers<[1], [0], [0], [1], [0, 0, 1, 1], [], []>} : vector<32x64xbf16>, vector<64x32xbf16>, vector<32x32xf32> -> vector<32x32xf32>
    %c1 = arith.constant 1 : index
    %c0_24 = arith.constant 0 : index
    %c0_25 = arith.constant 0 : index
    %43 = vector.load %arg4[%c1, %c0_24, %c0_25] : memref<4x32x32xbf16, #tpu.memory_space<vmem>>, vector<1x32x32xbf16>
    %44 = vector.shape_cast %43 : vector<1x32x32xbf16> to vector<32x32xbf16>
    %c1_26 = arith.constant 1 : index
    %c0_27 = arith.constant 0 : index
    %c0_28 = arith.constant 0 : index
    %45 = vector.load %arg5[%c1_26, %c0_27, %c0_28] : memref<4x1x32xf32, #tpu.memory_space<vmem>>, vector<1x1x32xf32>
    %46 = vector.shape_cast %45 : vector<1x1x32xf32> to vector<1x32xf32>
    %c1_29 = arith.constant 1 : index
    %c0_30 = arith.constant 0 : index
    %c0_31 = arith.constant 0 : index
    %47 = vector.load %arg6[%c1_29, %c0_30, %c0_31] : memref<4x1x32xf32, #tpu.memory_space<vmem>>, vector<1x1x32xf32>
    %48 = vector.shape_cast %47 : vector<1x1x32xf32> to vector<1x32xf32>
    %cst_32 = arith.constant dense<0.000000e+00> : vector<64x32xf32>
    %49 = tpu.matmul %1, %44, %cst_32 {dimension_numbers = #tpu.dot_dimension_numbers<[1], [0], [0], [1], [0, 0, 1, 1], [], []>} : vector<64x32xbf16>, vector<32x32xbf16>, vector<64x32xf32> -> vector<64x32xf32>
    %cst_33 = arith.constant dense<0.000000e+00> : vector<32x32xf32>
    %50 = tpu.matmul %3, %44, %cst_33 {dimension_numbers = #tpu.dot_dimension_numbers<[1], [0], [0], [1], [0, 0, 1, 1], [], []>} : vector<32x32xbf16>, vector<32x32xbf16>, vector<32x32xf32> -> vector<32x32xf32>
    %51 = vector.broadcast %46 : vector<1x32xf32> to vector<32x32xf32>
    %52 = arith.mulf %50, %51 : vector<32x32xf32>
    %cst_34 = arith.constant dense<0.000000e+00> : vector<32xf32>
    %53 = vector.multi_reduction <add>, %52, %cst_34 [1] : vector<32x32xf32> to vector<32xf32>
    %54 = vector.shape_cast %53 : vector<32xf32> to vector<32x1xf32>
    "tpu.trace_start"() <{level = 10 : i32, message = "of,nf->on"}> : () -> ()
    %cst_35 = arith.constant dense<0.000000e+00> : vector<1x64xf32>
    %55 = tpu.matmul %48, %49, %cst_35 {dimension_numbers = #tpu.dot_dimension_numbers<[1], [1], [0], [0], [0, 0, 1, 0], [], []>} : vector<1x32xf32>, vector<64x32xf32>, vector<1x64xf32> -> vector<1x64xf32>
    "tpu.trace_stop"() : () -> ()
    %56 = vector.broadcast %54 : vector<32x1xf32> to vector<32x64xf32>
    %57 = vector.broadcast %55 : vector<1x64xf32> to vector<32x64xf32>
    %58 = arith.addf %56, %57 : vector<32x64xf32>
    %cst_36 = arith.constant 0.000000e+00 : f32
    %59 = vector.broadcast %cst_36 : f32 to vector<32x64xf32>
    %60 = arith.cmpf ogt, %58, %59 : vector<32x64xf32>
    %cst_37 = arith.constant 2.000000e-01 : f32
    %61 = vector.broadcast %cst_37 : f32 to vector<32x64xf32>
    %62 = arith.mulf %61, %58 : vector<32x64xf32>
    %63 = arith.select %60, %58, %62 : vector<32x64xi1>, vector<32x64xf32>
    %cst_38 = arith.constant -9.000000e+15 : f32
    %64 = vector.broadcast %cst_38 : f32 to vector<32x64xf32>
    %65 = arith.select %6, %63, %64 : vector<32x64xi1>, vector<32x64xf32>
    %cst_39 = arith.constant dense<0xFF800000> : vector<32xf32>
    %66 = vector.multi_reduction <maximumf>, %65, %cst_39 [1] : vector<32x64xf32> to vector<32xf32>
    %67 = vector.shape_cast %66 : vector<32xf32> to vector<32x1xf32>
    %68 = vector.broadcast %67 : vector<32x1xf32> to vector<32x64xf32>
    %69 = arith.subf %65, %68 : vector<32x64xf32>
    %70 = math.exp %69 : vector<32x64xf32>
    %cst_40 = arith.constant dense<0.000000e+00> : vector<32xf32>
    %71 = vector.multi_reduction <add>, %70, %cst_40 [1] : vector<32x64xf32> to vector<32xf32>
    %72 = vector.shape_cast %71 : vector<32xf32> to vector<32x1xf32>
    %73 = tpu.reciprocal %72 {approx = true} : vector<32x1xf32> -> vector<32x1xf32>
    %74 = vector.broadcast %73 : vector<32x1xf32> to vector<32x64xf32>
    %75 = arith.mulf %70, %74 : vector<32x64xf32>
    %76 = arith.truncf %75 : vector<32x64xf32> to vector<32x64xbf16>
    %77 = arith.truncf %49 : vector<64x32xf32> to vector<64x32xbf16>
    %cst_41 = arith.constant dense<0.000000e+00> : vector<32x32xf32>
    %78 = tpu.matmul %76, %77, %cst_41 {dimension_numbers = #tpu.dot_dimension_numbers<[1], [0], [0], [1], [0, 0, 1, 1], [], []>} : vector<32x64xbf16>, vector<64x32xbf16>, vector<32x32xf32> -> vector<32x32xf32>
    %c2 = arith.constant 2 : index
    %c0_42 = arith.constant 0 : index
    %c0_43 = arith.constant 0 : index
    %79 = vector.load %arg4[%c2, %c0_42, %c0_43] : memref<4x32x32xbf16, #tpu.memory_space<vmem>>, vector<1x32x32xbf16>
    %80 = vector.shape_cast %79 : vector<1x32x32xbf16> to vector<32x32xbf16>
    %c2_44 = arith.constant 2 : index
    %c0_45 = arith.constant 0 : index
    %c0_46 = arith.constant 0 : index
    %81 = vector.load %arg5[%c2_44, %c0_45, %c0_46] : memref<4x1x32xf32, #tpu.memory_space<vmem>>, vector<1x1x32xf32>
    %82 = vector.shape_cast %81 : vector<1x1x32xf32> to vector<1x32xf32>
    %c2_47 = arith.constant 2 : index
    %c0_48 = arith.constant 0 : index
    %c0_49 = arith.constant 0 : index
    %83 = vector.load %arg6[%c2_47, %c0_48, %c0_49] : memref<4x1x32xf32, #tpu.memory_space<vmem>>, vector<1x1x32xf32>
    %84 = vector.shape_cast %83 : vector<1x1x32xf32> to vector<1x32xf32>
    %cst_50 = arith.constant dense<0.000000e+00> : vector<64x32xf32>
    %85 = tpu.matmul %1, %80, %cst_50 {dimension_numbers = #tpu.dot_dimension_numbers<[1], [0], [0], [1], [0, 0, 1, 1], [], []>} : vector<64x32xbf16>, vector<32x32xbf16>, vector<64x32xf32> -> vector<64x32xf32>
    %cst_51 = arith.constant dense<0.000000e+00> : vector<32x32xf32>
    %86 = tpu.matmul %3, %80, %cst_51 {dimension_numbers = #tpu.dot_dimension_numbers<[1], [0], [0], [1], [0, 0, 1, 1], [], []>} : vector<32x32xbf16>, vector<32x32xbf16>, vector<32x32xf32> -> vector<32x32xf32>
    %87 = vector.broadcast %82 : vector<1x32xf32> to vector<32x32xf32>
    %88 = arith.mulf %86, %87 : vector<32x32xf32>
    %cst_52 = arith.constant dense<0.000000e+00> : vector<32xf32>
    %89 = vector.multi_reduction <add>, %88, %cst_52 [1] : vector<32x32xf32> to vector<32xf32>
    %90 = vector.shape_cast %89 : vector<32xf32> to vector<32x1xf32>
    "tpu.trace_start"() <{level = 10 : i32, message = "of,nf->on"}> : () -> ()
    %cst_53 = arith.constant dense<0.000000e+00> : vector<1x64xf32>
    %91 = tpu.matmul %84, %85, %cst_53 {dimension_numbers = #tpu.dot_dimension_numbers<[1], [1], [0], [0], [0, 0, 1, 0], [], []>} : vector<1x32xf32>, vector<64x32xf32>, vector<1x64xf32> -> vector<1x64xf32>
    "tpu.trace_stop"() : () -> ()
    %92 = vector.broadcast %90 : vector<32x1xf32> to vector<32x64xf32>
    %93 = vector.broadcast %91 : vector<1x64xf32> to vector<32x64xf32>
    %94 = arith.addf %92, %93 : vector<32x64xf32>
    %cst_54 = arith.constant 0.000000e+00 : f32
    %95 = vector.broadcast %cst_54 : f32 to vector<32x64xf32>
    %96 = arith.cmpf ogt, %94, %95 : vector<32x64xf32>
    %cst_55 = arith.constant 2.000000e-01 : f32
    %97 = vector.broadcast %cst_55 : f32 to vector<32x64xf32>
    %98 = arith.mulf %97, %94 : vector<32x64xf32>
    %99 = arith.select %96, %94, %98 : vector<32x64xi1>, vector<32x64xf32>
    %cst_56 = arith.constant -9.000000e+15 : f32
    %100 = vector.broadcast %cst_56 : f32 to vector<32x64xf32>
    %101 = arith.select %6, %99, %100 : vector<32x64xi1>, vector<32x64xf32>
    %cst_57 = arith.constant dense<0xFF800000> : vector<32xf32>
    %102 = vector.multi_reduction <maximumf>, %101, %cst_57 [1] : vector<32x64xf32> to vector<32xf32>
    %103 = vector.shape_cast %102 : vector<32xf32> to vector<32x1xf32>
    %104 = vector.broadcast %103 : vector<32x1xf32> to vector<32x64xf32>
    %105 = arith.subf %101, %104 : vector<32x64xf32>
    %106 = math.exp %105 : vector<32x64xf32>
    %cst_58 = arith.constant dense<0.000000e+00> : vector<32xf32>
    %107 = vector.multi_reduction <add>, %106, %cst_58 [1] : vector<32x64xf32> to vector<32xf32>
    %108 = vector.shape_cast %107 : vector<32xf32> to vector<32x1xf32>
    %109 = tpu.reciprocal %108 {approx = true} : vector<32x1xf32> -> vector<32x1xf32>
    %110 = vector.broadcast %109 : vector<32x1xf32> to vector<32x64xf32>
    %111 = arith.mulf %106, %110 : vector<32x64xf32>
    %112 = arith.truncf %111 : vector<32x64xf32> to vector<32x64xbf16>
    %113 = arith.truncf %85 : vector<64x32xf32> to vector<64x32xbf16>
    %cst_59 = arith.constant dense<0.000000e+00> : vector<32x32xf32>
    %114 = tpu.matmul %112, %113, %cst_59 {dimension_numbers = #tpu.dot_dimension_numbers<[1], [0], [0], [1], [0, 0, 1, 1], [], []>} : vector<32x64xbf16>, vector<64x32xbf16>, vector<32x32xf32> -> vector<32x32xf32>
    %c3 = arith.constant 3 : index
    %c0_60 = arith.constant 0 : index
    %c0_61 = arith.constant 0 : index
    %115 = vector.load %arg4[%c3, %c0_60, %c0_61] : memref<4x32x32xbf16, #tpu.memory_space<vmem>>, vector<1x32x32xbf16>
    %116 = vector.shape_cast %115 : vector<1x32x32xbf16> to vector<32x32xbf16>
    %c3_62 = arith.constant 3 : index
    %c0_63 = arith.constant 0 : index
    %c0_64 = arith.constant 0 : index
    %117 = vector.load %arg5[%c3_62, %c0_63, %c0_64] : memref<4x1x32xf32, #tpu.memory_space<vmem>>, vector<1x1x32xf32>
    %118 = vector.shape_cast %117 : vector<1x1x32xf32> to vector<1x32xf32>
    %c3_65 = arith.constant 3 : index
    %c0_66 = arith.constant 0 : index
    %c0_67 = arith.constant 0 : index
    %119 = vector.load %arg6[%c3_65, %c0_66, %c0_67] : memref<4x1x32xf32, #tpu.memory_space<vmem>>, vector<1x1x32xf32>
    %120 = vector.shape_cast %119 : vector<1x1x32xf32> to vector<1x32xf32>
    %cst_68 = arith.constant dense<0.000000e+00> : vector<64x32xf32>
    %121 = tpu.matmul %1, %116, %cst_68 {dimension_numbers = #tpu.dot_dimension_numbers<[1], [0], [0], [1], [0, 0, 1, 1], [], []>} : vector<64x32xbf16>, vector<32x32xbf16>, vector<64x32xf32> -> vector<64x32xf32>
    %cst_69 = arith.constant dense<0.000000e+00> : vector<32x32xf32>
    %122 = tpu.matmul %3, %116, %cst_69 {dimension_numbers = #tpu.dot_dimension_numbers<[1], [0], [0], [1], [0, 0, 1, 1], [], []>} : vector<32x32xbf16>, vector<32x32xbf16>, vector<32x32xf32> -> vector<32x32xf32>
    %123 = vector.broadcast %118 : vector<1x32xf32> to vector<32x32xf32>
    %124 = arith.mulf %122, %123 : vector<32x32xf32>
    %cst_70 = arith.constant dense<0.000000e+00> : vector<32xf32>
    %125 = vector.multi_reduction <add>, %124, %cst_70 [1] : vector<32x32xf32> to vector<32xf32>
    %126 = vector.shape_cast %125 : vector<32xf32> to vector<32x1xf32>
    "tpu.trace_start"() <{level = 10 : i32, message = "of,nf->on"}> : () -> ()
    %cst_71 = arith.constant dense<0.000000e+00> : vector<1x64xf32>
    %127 = tpu.matmul %120, %121, %cst_71 {dimension_numbers = #tpu.dot_dimension_numbers<[1], [1], [0], [0], [0, 0, 1, 0], [], []>} : vector<1x32xf32>, vector<64x32xf32>, vector<1x64xf32> -> vector<1x64xf32>
    "tpu.trace_stop"() : () -> ()
    %128 = vector.broadcast %126 : vector<32x1xf32> to vector<32x64xf32>
    %129 = vector.broadcast %127 : vector<1x64xf32> to vector<32x64xf32>
    %130 = arith.addf %128, %129 : vector<32x64xf32>
    %cst_72 = arith.constant 0.000000e+00 : f32
    %131 = vector.broadcast %cst_72 : f32 to vector<32x64xf32>
    %132 = arith.cmpf ogt, %130, %131 : vector<32x64xf32>
    %cst_73 = arith.constant 2.000000e-01 : f32
    %133 = vector.broadcast %cst_73 : f32 to vector<32x64xf32>
    %134 = arith.mulf %133, %130 : vector<32x64xf32>
    %135 = arith.select %132, %130, %134 : vector<32x64xi1>, vector<32x64xf32>
    %cst_74 = arith.constant -9.000000e+15 : f32
    %136 = vector.broadcast %cst_74 : f32 to vector<32x64xf32>
    %137 = arith.select %6, %135, %136 : vector<32x64xi1>, vector<32x64xf32>
    %cst_75 = arith.constant dense<0xFF800000> : vector<32xf32>
    %138 = vector.multi_reduction <maximumf>, %137, %cst_75 [1] : vector<32x64xf32> to vector<32xf32>
    %139 = vector.shape_cast %138 : vector<32xf32> to vector<32x1xf32>
    %140 = vector.broadcast %139 : vector<32x1xf32> to vector<32x64xf32>
    %141 = arith.subf %137, %140 : vector<32x64xf32>
    %142 = math.exp %141 : vector<32x64xf32>
    %cst_76 = arith.constant dense<0.000000e+00> : vector<32xf32>
    %143 = vector.multi_reduction <add>, %142, %cst_76 [1] : vector<32x64xf32> to vector<32xf32>
    %144 = vector.shape_cast %143 : vector<32xf32> to vector<32x1xf32>
    %145 = tpu.reciprocal %144 {approx = true} : vector<32x1xf32> -> vector<32x1xf32>
    %146 = vector.broadcast %145 : vector<32x1xf32> to vector<32x64xf32>
    %147 = arith.mulf %142, %146 : vector<32x64xf32>
    %148 = arith.truncf %147 : vector<32x64xf32> to vector<32x64xbf16>
    %149 = arith.truncf %121 : vector<64x32xf32> to vector<64x32xbf16>
    %cst_77 = arith.constant dense<0.000000e+00> : vector<32x32xf32>
    %150 = tpu.matmul %148, %149, %cst_77 {dimension_numbers = #tpu.dot_dimension_numbers<[1], [0], [0], [1], [0, 0, 1, 1], [], []>} : vector<32x64xbf16>, vector<64x32xbf16>, vector<32x32xf32> -> vector<32x32xf32>
    %151 = tpu.concatenate %42, %78, %114, %150 in 1 : vector<32x32xf32>, vector<32x32xf32>, vector<32x32xf32>, vector<32x32xf32> -> vector<32x128xf32>
    %cst_78 = arith.constant 0.000000e+00 : f32
    %152 = vector.broadcast %cst_78 : f32 to vector<32x128xf32>
    %153 = arith.cmpf ogt, %151, %152 : vector<32x128xf32>
    %cst_79 = arith.constant 0.000000e+00 : f32
    %154 = vector.broadcast %cst_79 : f32 to vector<32x128xf32>
    %155 = arith.minimumf %151, %154 : vector<32x128xf32>
    %156 = math.exp %155 : vector<32x128xf32>
    %cst_80 = arith.constant 1.000000e+00 : f32
    %157 = vector.broadcast %cst_80 : f32 to vector<32x128xf32>
    %158 = arith.subf %156, %157 : vector<32x128xf32>
    %159 = arith.select %153, %151, %158 : vector<32x128xi1>, vector<32x128xf32>
    %c0_81 = arith.constant 0 : index
    %c0_82 = arith.constant 0 : index
    %160 = vector.load %arg7[%c0_81, %c0_82] : memref<32x128xf32, #tpu.memory_space<vmem>>, vector<32x128xf32>
    tpu.vector_store %arg7[%c0_81, %c0_82], %159 {strides = array<i32>} : memref<32x128xf32, #tpu.memory_space<vmem>>, vector<32x128xf32>,
    return
  }
  func.func @transform_0(%arg0: i32) -> (i32, i32) {
    %c0_i32 = arith.constant 0 : i32
    %c0_i32_0 = arith.constant 0 : i32
    %c0_i32_1 = arith.constant 0 : i32
    return %c0_i32, %c0_i32_0 : i32, i32
  }
  func.func @transform_1(%arg0: i32) -> (i32, i32) {
    %c0_i32 = arith.constant 0 : i32
    %c0_i32_0 = arith.constant 0 : i32
    return %arg0, %c0_i32 : i32, i32
  }
  func.func @transform_2(%arg0: i32) -> (i32, i32) {
    %c0_i32 = arith.constant 0 : i32
    %c0_i32_0 = arith.constant 0 : i32
    return %arg0, %c0_i32 : i32, i32
  }
  func.func @transform_3(%arg0: i32) -> (i32, i32, i32) {
    %c0_i32 = arith.constant 0 : i32
    %c0_i32_0 = arith.constant 0 : i32
    %c0_i32_1 = arith.constant 0 : i32
    %c0_i32_2 = arith.constant 0 : i32
    return %c0_i32, %c0_i32_0, %c0_i32_1 : i32, i32, i32
  }
  func.func @transform_4(%arg0: i32) -> (i32, i32, i32) {
    %c0_i32 = arith.constant 0 : i32
    %c0_i32_0 = arith.constant 0 : i32
    %c0_i32_1 = arith.constant 0 : i32
    %c0_i32_2 = arith.constant 0 : i32
    return %c0_i32, %c0_i32_0, %c0_i32_1 : i32, i32, i32
  }
  func.func @transform_5(%arg0: i32) -> (i32, i32, i32) {
    %c0_i32 = arith.constant 0 : i32
    %c0_i32_0 = arith.constant 0 : i32
    %c0_i32_1 = arith.constant 0 : i32
    %c0_i32_2 = arith.constant 0 : i32
    return %c0_i32, %c0_i32_0, %c0_i32_1 : i32, i32, i32
  }
  func.func @transform_6(%arg0: i32) -> (i32, i32) {
    %c0_i32 = arith.constant 0 : i32
    %c0_i32_0 = arith.constant 0 : i32
    return %arg0, %c0_i32 : i32, i32
  }
}

module attributes {stable_mosaic.version = 11 : i64} {
  func.func @_multihead_layer_kernel(%arg0: i32, %arg1: memref<64x128xf32, #tpu.memory_space<vmem>>, %arg2: memref<32x128xf32, #tpu.memory_space<vmem>>, %arg3: memref<32x64xbf16, #tpu.memory_space<vmem>>, %arg4: memref<4x128x32xbf16, #tpu.memory_space<vmem>>, %arg5: memref<4x1x32xf32, #tpu.memory_space<vmem>>, %arg6: memref<4x1x32xf32, #tpu.memory_space<vmem>>, %arg7: memref<32x128xf32, #tpu.memory_space<vmem>>) attributes {dimension_semantics = [#tpu.dimension_semantics<parallel>], iteration_bounds = array<i64: 2>, scalar_prefetch = 0 : i64, scratch_operands = 0 : i64, tpu.core_type = #tpu.core_type<tc>, window_params = [{pipeline_mode = #tpu.pipeline_mode<synchronous>, transform_indices = @transform_0, window_bounds = array<i64: 64, 128>}, {transform_indices = @transform_1, window_bounds = array<i64: 32, 128>}, {transform_indices = @transform_2, window_bounds = array<i64: 32, 64>}, {pipeline_mode = #tpu.pipeline_mode<synchronous>, transform_indices = @transform_3, window_bounds = array<i64: 4, 128, 32>}, {pipeline_mode = #tpu.pipeline_mode<synchronous>, transform_indices = @transform_4, window_bounds = array<i64: 4, 1, 32>}, {pipeline_mode = #tpu.pipeline_mode<synchronous>, transform_indices = @transform_5, window_bounds = array<i64: 4, 1, 32>}, {transform_indices = @transform_6, window_bounds = array<i64: 32, 128>}]} {
    %c0 = arith.constant 0 : index
    %c0_0 = arith.constant 0 : index
    %0 = vector.load %arg1[%c0, %c0_0] : memref<64x128xf32, #tpu.memory_space<vmem>>, vector<64x128xf32>
    %1 = arith.truncf %0 : vector<64x128xf32> to vector<64x128xbf16>
    %c0_1 = arith.constant 0 : index
    %c0_2 = arith.constant 0 : index
    %2 = vector.load %arg2[%c0_1, %c0_2] : memref<32x128xf32, #tpu.memory_space<vmem>>, vector<32x128xf32>
    %3 = arith.truncf %2 : vector<32x128xf32> to vector<32x128xbf16>
    %c0_3 = arith.constant 0 : index
    %c0_4 = arith.constant 0 : index
    %4 = vector.load %arg3[%c0_3, %c0_4] : memref<32x64xbf16, #tpu.memory_space<vmem>>, vector<32x64xbf16>
    %cst = arith.constant 0.000000e+00 : bf16
    %5 = vector.broadcast %cst : bf16 to vector<32x64xbf16>
    %6 = arith.cmpf ogt, %4, %5 : vector<32x64xbf16>
    %c0_5 = arith.constant 0 : index
    %c0_6 = arith.constant 0 : index
    %c0_7 = arith.constant 0 : index
    %7 = vector.load %arg4[%c0_5, %c0_6, %c0_7] : memref<4x128x32xbf16, #tpu.memory_space<vmem>>, vector<1x128x32xbf16>
    %8 = vector.shape_cast %7 : vector<1x128x32xbf16> to vector<128x32xbf16>
    %c0_8 = arith.constant 0 : index
    %c0_9 = arith.constant 0 : index
    %c0_10 = arith.constant 0 : index
    %9 = vector.load %arg5[%c0_8, %c0_9, %c0_10] : memref<4x1x32xf32, #tpu.memory_space<vmem>>, vector<1x1x32xf32>
    %10 = vector.shape_cast %9 : vector<1x1x32xf32> to vector<1x32xf32>
    %c0_11 = arith.constant 0 : index
    %c0_12 = arith.constant 0 : index
    %c0_13 = arith.constant 0 : index
    %11 = vector.load %arg6[%c0_11, %c0_12, %c0_13] : memref<4x1x32xf32, #tpu.memory_space<vmem>>, vector<1x1x32xf32>
    %12 = vector.shape_cast %11 : vector<1x1x32xf32> to vector<1x32xf32>
    %cst_14 = arith.constant dense<0.000000e+00> : vector<64x32xf32>
    %13 = tpu.matmul %1, %8, %cst_14 {dimension_numbers = #tpu.dot_dimension_numbers<[1], [0], [0], [1], [0, 0, 1, 1], [], []>} : vector<64x128xbf16>, vector<128x32xbf16>, vector<64x32xf32> -> vector<64x32xf32>
    %cst_15 = arith.constant dense<0.000000e+00> : vector<32x32xf32>
    %14 = tpu.matmul %3, %8, %cst_15 {dimension_numbers = #tpu.dot_dimension_numbers<[1], [0], [0], [1], [0, 0, 1, 1], [], []>} : vector<32x128xbf16>, vector<128x32xbf16>, vector<32x32xf32> -> vector<32x32xf32>
    %15 = vector.broadcast %10 : vector<1x32xf32> to vector<32x32xf32>
    %16 = arith.mulf %14, %15 : vector<32x32xf32>
    %cst_16 = arith.constant dense<0.000000e+00> : vector<32xf32>
    %17 = vector.multi_reduction <add>, %16, %cst_16 [1] : vector<32x32xf32> to vector<32xf32>
    %18 = vector.shape_cast %17 : vector<32xf32> to vector<32x1xf32>
    "tpu.trace_start"() <{level = 10 : i32, message = "of,nf->on"}> : () -> ()
    %cst_17 = arith.constant dense<0.000000e+00> : vector<1x64xf32>
    %19 = tpu.matmul %12, %13, %cst_17 {dimension_numbers = #tpu.dot_dimension_numbers<[1], [1], [0], [0], [0, 0, 1, 0], [], []>} : vector<1x32xf32>, vector<64x32xf32>, vector<1x64xf32> -> vector<1x64xf32>
    "tpu.trace_stop"() : () -> ()
    %20 = vector.broadcast %18 : vector<32x1xf32> to vector<32x64xf32>
    %21 = vector.broadcast %19 : vector<1x64xf32> to vector<32x64xf32>
    %22 = arith.addf %20, %21 : vector<32x64xf32>
    %cst_18 = arith.constant 0.000000e+00 : f32
    %23 = vector.broadcast %cst_18 : f32 to vector<32x64xf32>
    %24 = arith.cmpf ogt, %22, %23 : vector<32x64xf32>
    %cst_19 = arith.constant 2.000000e-01 : f32
    %25 = vector.broadcast %cst_19 : f32 to vector<32x64xf32>
    %26 = arith.mulf %25, %22 : vector<32x64xf32>
    %27 = arith.select %24, %22, %26 : vector<32x64xi1>, vector<32x64xf32>
    %cst_20 = arith.constant -9.000000e+15 : f32
    %28 = vector.broadcast %cst_20 : f32 to vector<32x64xf32>
    %29 = arith.select %6, %27, %28 : vector<32x64xi1>, vector<32x64xf32>
    %cst_21 = arith.constant dense<0xFF800000> : vector<32xf32>
    %30 = vector.multi_reduction <maximumf>, %29, %cst_21 [1] : vector<32x64xf32> to vector<32xf32>
    %31 = vector.shape_cast %30 : vector<32xf32> to vector<32x1xf32>
    %32 = vector.broadcast %31 : vector<32x1xf32> to vector<32x64xf32>
    %33 = arith.subf %29, %32 : vector<32x64xf32>
    %34 = math.exp %33 : vector<32x64xf32>
    %cst_22 = arith.constant dense<0.000000e+00> : vector<32xf32>
    %35 = vector.multi_reduction <add>, %34, %cst_22 [1] : vector<32x64xf32> to vector<32xf32>
    %36 = vector.shape_cast %35 : vector<32xf32> to vector<32x1xf32>
    %37 = tpu.reciprocal %36 {approx = true} : vector<32x1xf32> -> vector<32x1xf32>
    %38 = vector.broadcast %37 : vector<32x1xf32> to vector<32x64xf32>
    %39 = arith.mulf %34, %38 : vector<32x64xf32>
    %40 = arith.truncf %39 : vector<32x64xf32> to vector<32x64xbf16>
    %41 = arith.truncf %13 : vector<64x32xf32> to vector<64x32xbf16>
    %cst_23 = arith.constant dense<0.000000e+00> : vector<32x32xf32>
    %42 = tpu.matmul %40, %41, %cst_23 {dimension_numbers = #tpu.dot_dimension_numbers<[1], [0], [0], [1], [0, 0, 1, 1], [], []>} : vector<32x64xbf16>, vector<64x32xbf16>, vector<32x32xf32> -> vector<32x32xf32>
    %c1 = arith.constant 1 : index
    %c0_24 = arith.constant 0 : index
    %c0_25 = arith.constant 0 : index
    %43 = vector.load %arg4[%c1, %c0_24, %c0_25] : memref<4x128x32xbf16, #tpu.memory_space<vmem>>, vector<1x128x32xbf16>
    %44 = vector.shape_cast %43 : vector<1x128x32xbf16> to vector<128x32xbf16>
    %c1_26 = arith.constant 1 : index
    %c0_27 = arith.constant 0 : index
    %c0_28 = arith.constant 0 : index
    %45 = vector.load %arg5[%c1_26, %c0_27, %c0_28] : memref<4x1x32xf32, #tpu.memory_space<vmem>>, vector<1x1x32xf32>
    %46 = vector.shape_cast %45 : vector<1x1x32xf32> to vector<1x32xf32>
    %c1_29 = arith.constant 1 : index
    %c0_30 = arith.constant 0 : index
    %c0_31 = arith.constant 0 : index
    %47 = vector.load %arg6[%c1_29, %c0_30, %c0_31] : memref<4x1x32xf32, #tpu.memory_space<vmem>>, vector<1x1x32xf32>
    %48 = vector.shape_cast %47 : vector<1x1x32xf32> to vector<1x32xf32>
    %cst_32 = arith.constant dense<0.000000e+00> : vector<64x32xf32>
    %49 = tpu.matmul %1, %44, %cst_32 {dimension_numbers = #tpu.dot_dimension_numbers<[1], [0], [0], [1], [0, 0, 1, 1], [], []>} : vector<64x128xbf16>, vector<128x32xbf16>, vector<64x32xf32> -> vector<64x32xf32>
    %cst_33 = arith.constant dense<0.000000e+00> : vector<32x32xf32>
    %50 = tpu.matmul %3, %44, %cst_33 {dimension_numbers = #tpu.dot_dimension_numbers<[1], [0], [0], [1], [0, 0, 1, 1], [], []>} : vector<32x128xbf16>, vector<128x32xbf16>, vector<32x32xf32> -> vector<32x32xf32>
    %51 = vector.broadcast %46 : vector<1x32xf32> to vector<32x32xf32>
    %52 = arith.mulf %50, %51 : vector<32x32xf32>
    %cst_34 = arith.constant dense<0.000000e+00> : vector<32xf32>
    %53 = vector.multi_reduction <add>, %52, %cst_34 [1] : vector<32x32xf32> to vector<32xf32>
    %54 = vector.shape_cast %53 : vector<32xf32> to vector<32x1xf32>
    "tpu.trace_start"() <{level = 10 : i32, message = "of,nf->on"}> : () -> ()
    %cst_35 = arith.constant dense<0.000000e+00> : vector<1x64xf32>
    %55 = tpu.matmul %48, %49, %cst_35 {dimension_numbers = #tpu.dot_dimension_numbers<[1], [1], [0], [0], [0, 0, 1, 0], [], []>} : vector<1x32xf32>, vector<64x32xf32>, vector<1x64xf32> -> vector<1x64xf32>
    "tpu.trace_stop"() : () -> ()
    %56 = vector.broadcast %54 : vector<32x1xf32> to vector<32x64xf32>
    %57 = vector.broadcast %55 : vector<1x64xf32> to vector<32x64xf32>
    %58 = arith.addf %56, %57 : vector<32x64xf32>
    %cst_36 = arith.constant 0.000000e+00 : f32
    %59 = vector.broadcast %cst_36 : f32 to vector<32x64xf32>
    %60 = arith.cmpf ogt, %58, %59 : vector<32x64xf32>
    %cst_37 = arith.constant 2.000000e-01 : f32
    %61 = vector.broadcast %cst_37 : f32 to vector<32x64xf32>
    %62 = arith.mulf %61, %58 : vector<32x64xf32>
    %63 = arith.select %60, %58, %62 : vector<32x64xi1>, vector<32x64xf32>
    %cst_38 = arith.constant -9.000000e+15 : f32
    %64 = vector.broadcast %cst_38 : f32 to vector<32x64xf32>
    %65 = arith.select %6, %63, %64 : vector<32x64xi1>, vector<32x64xf32>
    %cst_39 = arith.constant dense<0xFF800000> : vector<32xf32>
    %66 = vector.multi_reduction <maximumf>, %65, %cst_39 [1] : vector<32x64xf32> to vector<32xf32>
    %67 = vector.shape_cast %66 : vector<32xf32> to vector<32x1xf32>
    %68 = vector.broadcast %67 : vector<32x1xf32> to vector<32x64xf32>
    %69 = arith.subf %65, %68 : vector<32x64xf32>
    %70 = math.exp %69 : vector<32x64xf32>
    %cst_40 = arith.constant dense<0.000000e+00> : vector<32xf32>
    %71 = vector.multi_reduction <add>, %70, %cst_40 [1] : vector<32x64xf32> to vector<32xf32>
    %72 = vector.shape_cast %71 : vector<32xf32> to vector<32x1xf32>
    %73 = tpu.reciprocal %72 {approx = true} : vector<32x1xf32> -> vector<32x1xf32>
    %74 = vector.broadcast %73 : vector<32x1xf32> to vector<32x64xf32>
    %75 = arith.mulf %70, %74 : vector<32x64xf32>
    %76 = arith.truncf %75 : vector<32x64xf32> to vector<32x64xbf16>
    %77 = arith.truncf %49 : vector<64x32xf32> to vector<64x32xbf16>
    %cst_41 = arith.constant dense<0.000000e+00> : vector<32x32xf32>
    %78 = tpu.matmul %76, %77, %cst_41 {dimension_numbers = #tpu.dot_dimension_numbers<[1], [0], [0], [1], [0, 0, 1, 1], [], []>} : vector<32x64xbf16>, vector<64x32xbf16>, vector<32x32xf32> -> vector<32x32xf32>
    %c2 = arith.constant 2 : index
    %c0_42 = arith.constant 0 : index
    %c0_43 = arith.constant 0 : index
    %79 = vector.load %arg4[%c2, %c0_42, %c0_43] : memref<4x128x32xbf16, #tpu.memory_space<vmem>>, vector<1x128x32xbf16>
    %80 = vector.shape_cast %79 : vector<1x128x32xbf16> to vector<128x32xbf16>
    %c2_44 = arith.constant 2 : index
    %c0_45 = arith.constant 0 : index
    %c0_46 = arith.constant 0 : index
    %81 = vector.load %arg5[%c2_44, %c0_45, %c0_46] : memref<4x1x32xf32, #tpu.memory_space<vmem>>, vector<1x1x32xf32>
    %82 = vector.shape_cast %81 : vector<1x1x32xf32> to vector<1x32xf32>
    %c2_47 = arith.constant 2 : index
    %c0_48 = arith.constant 0 : index
    %c0_49 = arith.constant 0 : index
    %83 = vector.load %arg6[%c2_47, %c0_48, %c0_49] : memref<4x1x32xf32, #tpu.memory_space<vmem>>, vector<1x1x32xf32>
    %84 = vector.shape_cast %83 : vector<1x1x32xf32> to vector<1x32xf32>
    %cst_50 = arith.constant dense<0.000000e+00> : vector<64x32xf32>
    %85 = tpu.matmul %1, %80, %cst_50 {dimension_numbers = #tpu.dot_dimension_numbers<[1], [0], [0], [1], [0, 0, 1, 1], [], []>} : vector<64x128xbf16>, vector<128x32xbf16>, vector<64x32xf32> -> vector<64x32xf32>
    %cst_51 = arith.constant dense<0.000000e+00> : vector<32x32xf32>
    %86 = tpu.matmul %3, %80, %cst_51 {dimension_numbers = #tpu.dot_dimension_numbers<[1], [0], [0], [1], [0, 0, 1, 1], [], []>} : vector<32x128xbf16>, vector<128x32xbf16>, vector<32x32xf32> -> vector<32x32xf32>
    %87 = vector.broadcast %82 : vector<1x32xf32> to vector<32x32xf32>
    %88 = arith.mulf %86, %87 : vector<32x32xf32>
    %cst_52 = arith.constant dense<0.000000e+00> : vector<32xf32>
    %89 = vector.multi_reduction <add>, %88, %cst_52 [1] : vector<32x32xf32> to vector<32xf32>
    %90 = vector.shape_cast %89 : vector<32xf32> to vector<32x1xf32>
    "tpu.trace_start"() <{level = 10 : i32, message = "of,nf->on"}> : () -> ()
    %cst_53 = arith.constant dense<0.000000e+00> : vector<1x64xf32>
    %91 = tpu.matmul %84, %85, %cst_53 {dimension_numbers = #tpu.dot_dimension_numbers<[1], [1], [0], [0], [0, 0, 1, 0], [], []>} : vector<1x32xf32>, vector<64x32xf32>, vector<1x64xf32> -> vector<1x64xf32>
    "tpu.trace_stop"() : () -> ()
    %92 = vector.broadcast %90 : vector<32x1xf32> to vector<32x64xf32>
    %93 = vector.broadcast %91 : vector<1x64xf32> to vector<32x64xf32>
    %94 = arith.addf %92, %93 : vector<32x64xf32>
    %cst_54 = arith.constant 0.000000e+00 : f32
    %95 = vector.broadcast %cst_54 : f32 to vector<32x64xf32>
    %96 = arith.cmpf ogt, %94, %95 : vector<32x64xf32>
    %cst_55 = arith.constant 2.000000e-01 : f32
    %97 = vector.broadcast %cst_55 : f32 to vector<32x64xf32>
    %98 = arith.mulf %97, %94 : vector<32x64xf32>
    %99 = arith.select %96, %94, %98 : vector<32x64xi1>, vector<32x64xf32>
    %cst_56 = arith.constant -9.000000e+15 : f32
    %100 = vector.broadcast %cst_56 : f32 to vector<32x64xf32>
    %101 = arith.select %6, %99, %100 : vector<32x64xi1>, vector<32x64xf32>
    %cst_57 = arith.constant dense<0xFF800000> : vector<32xf32>
    %102 = vector.multi_reduction <maximumf>, %101, %cst_57 [1] : vector<32x64xf32> to vector<32xf32>
    %103 = vector.shape_cast %102 : vector<32xf32> to vector<32x1xf32>
    %104 = vector.broadcast %103 : vector<32x1xf32> to vector<32x64xf32>
    %105 = arith.subf %101, %104 : vector<32x64xf32>
    %106 = math.exp %105 : vector<32x64xf32>
    %cst_58 = arith.constant dense<0.000000e+00> : vector<32xf32>
    %107 = vector.multi_reduction <add>, %106, %cst_58 [1] : vector<32x64xf32> to vector<32xf32>
    %108 = vector.shape_cast %107 : vector<32xf32> to vector<32x1xf32>
    %109 = tpu.reciprocal %108 {approx = true} : vector<32x1xf32> -> vector<32x1xf32>
    %110 = vector.broadcast %109 : vector<32x1xf32> to vector<32x64xf32>
    %111 = arith.mulf %106, %110 : vector<32x64xf32>
    %112 = arith.truncf %111 : vector<32x64xf32> to vector<32x64xbf16>
    %113 = arith.truncf %85 : vector<64x32xf32> to vector<64x32xbf16>
    %cst_59 = arith.constant dense<0.000000e+00> : vector<32x32xf32>
    %114 = tpu.matmul %112, %113, %cst_59 {dimension_numbers = #tpu.dot_dimension_numbers<[1], [0], [0], [1], [0, 0, 1, 1], [], []>} : vector<32x64xbf16>, vector<64x32xbf16>, vector<32x32xf32> -> vector<32x32xf32>
    %c3 = arith.constant 3 : index
    %c0_60 = arith.constant 0 : index
    %c0_61 = arith.constant 0 : index
    %115 = vector.load %arg4[%c3, %c0_60, %c0_61] : memref<4x128x32xbf16, #tpu.memory_space<vmem>>, vector<1x128x32xbf16>
    %116 = vector.shape_cast %115 : vector<1x128x32xbf16> to vector<128x32xbf16>
    %c3_62 = arith.constant 3 : index
    %c0_63 = arith.constant 0 : index
    %c0_64 = arith.constant 0 : index
    %117 = vector.load %arg5[%c3_62, %c0_63, %c0_64] : memref<4x1x32xf32, #tpu.memory_space<vmem>>, vector<1x1x32xf32>
    %118 = vector.shape_cast %117 : vector<1x1x32xf32> to vector<1x32xf32>
    %c3_65 = arith.constant 3 : index
    %c0_66 = arith.constant 0 : index
    %c0_67 = arith.constant 0 : index
    %119 = vector.load %arg6[%c3_65, %c0_66, %c0_67] : memref<4x1x32xf32, #tpu.memory_space<vmem>>, vector<1x1x32xf32>
    %120 = vector.shape_cast %119 : vector<1x1x32xf32> to vector<1x32xf32>
    %cst_68 = arith.constant dense<0.000000e+00> : vector<64x32xf32>
    %121 = tpu.matmul %1, %116, %cst_68 {dimension_numbers = #tpu.dot_dimension_numbers<[1], [0], [0], [1], [0, 0, 1, 1], [], []>} : vector<64x128xbf16>, vector<128x32xbf16>, vector<64x32xf32> -> vector<64x32xf32>
    %cst_69 = arith.constant dense<0.000000e+00> : vector<32x32xf32>
    %122 = tpu.matmul %3, %116, %cst_69 {dimension_numbers = #tpu.dot_dimension_numbers<[1], [0], [0], [1], [0, 0, 1, 1], [], []>} : vector<32x128xbf16>, vector<128x32xbf16>, vector<32x32xf32> -> vector<32x32xf32>
    %123 = vector.broadcast %118 : vector<1x32xf32> to vector<32x32xf32>
    %124 = arith.mulf %122, %123 : vector<32x32xf32>
    %cst_70 = arith.constant dense<0.000000e+00> : vector<32xf32>
    %125 = vector.multi_reduction <add>, %124, %cst_70 [1] : vector<32x32xf32> to vector<32xf32>
    %126 = vector.shape_cast %125 : vector<32xf32> to vector<32x1xf32>
    "tpu.trace_start"() <{level = 10 : i32, message = "of,nf->on"}> : () -> ()
    %cst_71 = arith.constant dense<0.000000e+00> : vector<1x64xf32>
    %127 = tpu.matmul %120, %121, %cst_71 {dimension_numbers = #tpu.dot_dimension_numbers<[1], [1], [0], [0], [0, 0, 1, 0], [], []>} : vector<1x32xf32>, vector<64x32xf32>, vector<1x64xf32> -> vector<1x64xf32>
    "tpu.trace_stop"() : () -> ()
    %128 = vector.broadcast %126 : vector<32x1xf32> to vector<32x64xf32>
    %129 = vector.broadcast %127 : vector<1x64xf32> to vector<32x64xf32>
    %130 = arith.addf %128, %129 : vector<32x64xf32>
    %cst_72 = arith.constant 0.000000e+00 : f32
    %131 = vector.broadcast %cst_72 : f32 to vector<32x64xf32>
    %132 = arith.cmpf ogt, %130, %131 : vector<32x64xf32>
    %cst_73 = arith.constant 2.000000e-01 : f32
    %133 = vector.broadcast %cst_73 : f32 to vector<32x64xf32>
    %134 = arith.mulf %133, %130 : vector<32x64xf32>
    %135 = arith.select %132, %130, %134 : vector<32x64xi1>, vector<32x64xf32>
    %cst_74 = arith.constant -9.000000e+15 : f32
    %136 = vector.broadcast %cst_74 : f32 to vector<32x64xf32>
    %137 = arith.select %6, %135, %136 : vector<32x64xi1>, vector<32x64xf32>
    %cst_75 = arith.constant dense<0xFF800000> : vector<32xf32>
    %138 = vector.multi_reduction <maximumf>, %137, %cst_75 [1] : vector<32x64xf32> to vector<32xf32>
    %139 = vector.shape_cast %138 : vector<32xf32> to vector<32x1xf32>
    %140 = vector.broadcast %139 : vector<32x1xf32> to vector<32x64xf32>
    %141 = arith.subf %137, %140 : vector<32x64xf32>
    %142 = math.exp %141 : vector<32x64xf32>
    %cst_76 = arith.constant dense<0.000000e+00> : vector<32xf32>
    %143 = vector.multi_reduction <add>, %142, %cst_76 [1] : vector<32x64xf32> to vector<32xf32>
    %144 = vector.shape_cast %143 : vector<32xf32> to vector<32x1xf32>
    %145 = tpu.reciprocal %144 {approx = true} : vector<32x1xf32> -> vector<32x1xf32>
    %146 = vector.broadcast %145 : vector<32x1xf32> to vector<32x64xf32>
    %147 = arith.mulf %142, %146 : vector<32x64xf32>
    %148 = arith.truncf %147 : vector<32x64xf32> to vector<32x64xbf16>
    %149 = arith.truncf %121 : vector<64x32xf32> to vector<64x32xbf16>
    %cst_77 = arith.constant dense<0.000000e+00> : vector<32x32xf32>
    %150 = tpu.matmul %148, %149, %cst_77 {dimension_numbers = #tpu.dot_dimension_numbers<[1], [0], [0], [1], [0, 0, 1, 1], [], []>} : vector<32x64xbf16>, vector<64x32xbf16>, vector<32x32xf32> -> vector<32x32xf32>
    %151 = tpu.concatenate %42, %78, %114, %150 in 1 : vector<32x32xf32>, vector<32x32xf32>, vector<32x32xf32>, vector<32x32xf32> -> vector<32x128xf32>
    %cst_78 = arith.constant 0.000000e+00 : f32
    %152 = vector.broadcast %cst_78 : f32 to vector<32x128xf32>
    %153 = arith.cmpf ogt, %151, %152 : vector<32x128xf32>
    %cst_79 = arith.constant 0.000000e+00 : f32
    %154 = vector.broadcast %cst_79 : f32 to vector<32x128xf32>
    %155 = arith.minimumf %151, %154 : vector<32x128xf32>
    %156 = math.exp %155 : vector<32x128xf32>
    %cst_80 = arith.constant 1.000000e+00 : f32
    %157 = vector.broadcast %cst_80 : f32 to vector<32x128xf32>
    %158 = arith.subf %156, %157 : vector<32x128xf32>
    %159 = arith.select %153, %151, %158 : vector<32x128xi1>, vector<32x128xf32>
    %c0_81 = arith.constant 0 : index
    %c0_82 = arith.constant 0 : index
    %160 = vector.load %arg7[%c0_81, %c0_82] : memref<32x128xf32, #tpu.memory_space<vmem>>, vector<32x128xf32>
    tpu.vector_store %arg7[%c0_81, %c0_82], %159 {strides = array<i32>} : memref<32x128xf32, #tpu.memory_space<vmem>>, vector<32x128xf32>,
    return
  }
  func.func @transform_0(%arg0: i32) -> (i32, i32) {
    %c0_i32 = arith.constant 0 : i32
    %c0_i32_0 = arith.constant 0 : i32
    %c0_i32_1 = arith.constant 0 : i32
    return %c0_i32, %c0_i32_0 : i32, i32
  }
  func.func @transform_1(%arg0: i32) -> (i32, i32) {
    %c0_i32 = arith.constant 0 : i32
    %c0_i32_0 = arith.constant 0 : i32
    return %arg0, %c0_i32 : i32, i32
  }
  func.func @transform_2(%arg0: i32) -> (i32, i32) {
    %c0_i32 = arith.constant 0 : i32
    %c0_i32_0 = arith.constant 0 : i32
    return %arg0, %c0_i32 : i32, i32
  }
  func.func @transform_3(%arg0: i32) -> (i32, i32, i32) {
    %c0_i32 = arith.constant 0 : i32
    %c0_i32_0 = arith.constant 0 : i32
    %c0_i32_1 = arith.constant 0 : i32
    %c0_i32_2 = arith.constant 0 : i32
    return %c0_i32, %c0_i32_0, %c0_i32_1 : i32, i32, i32
  }
  func.func @transform_4(%arg0: i32) -> (i32, i32, i32) {
    %c0_i32 = arith.constant 0 : i32
    %c0_i32_0 = arith.constant 0 : i32
    %c0_i32_1 = arith.constant 0 : i32
    %c0_i32_2 = arith.constant 0 : i32
    return %c0_i32, %c0_i32_0, %c0_i32_1 : i32, i32, i32
  }
  func.func @transform_5(%arg0: i32) -> (i32, i32, i32) {
    %c0_i32 = arith.constant 0 : i32
    %c0_i32_0 = arith.constant 0 : i32
    %c0_i32_1 = arith.constant 0 : i32
    %c0_i32_2 = arith.constant 0 : i32
    return %c0_i32, %c0_i32_0, %c0_i32_1 : i32, i32, i32
  }
  func.func @transform_6(%arg0: i32) -> (i32, i32) {
    %c0_i32 = arith.constant 0 : i32
    %c0_i32_0 = arith.constant 0 : i32
    return %arg0, %c0_i32 : i32, i32
  }
}

module attributes {stable_mosaic.version = 11 : i64} {
  func.func @_out_layer_kernel(%arg0: i32, %arg1: memref<64x128xf32, #tpu.memory_space<vmem>>, %arg2: memref<32x128xf32, #tpu.memory_space<vmem>>, %arg3: memref<32x64xbf16, #tpu.memory_space<vmem>>, %arg4: memref<1x128x7xbf16, #tpu.memory_space<vmem>>, %arg5: memref<1x1x7xf32, #tpu.memory_space<vmem>>, %arg6: memref<1x1x7xf32, #tpu.memory_space<vmem>>, %arg7: memref<32x7xf32, #tpu.memory_space<vmem>>) attributes {dimension_semantics = [#tpu.dimension_semantics<parallel>], iteration_bounds = array<i64: 2>, scalar_prefetch = 0 : i64, scratch_operands = 0 : i64, tpu.core_type = #tpu.core_type<tc>, window_params = [{pipeline_mode = #tpu.pipeline_mode<synchronous>, transform_indices = @transform_0, window_bounds = array<i64: 64, 128>}, {transform_indices = @transform_1, window_bounds = array<i64: 32, 128>}, {transform_indices = @transform_2, window_bounds = array<i64: 32, 64>}, {pipeline_mode = #tpu.pipeline_mode<synchronous>, transform_indices = @transform_3, window_bounds = array<i64: 1, 128, 7>}, {pipeline_mode = #tpu.pipeline_mode<synchronous>, transform_indices = @transform_4, window_bounds = array<i64: 1, 1, 7>}, {pipeline_mode = #tpu.pipeline_mode<synchronous>, transform_indices = @transform_5, window_bounds = array<i64: 1, 1, 7>}, {transform_indices = @transform_6, window_bounds = array<i64: 32, 7>}]} {
    %c0 = arith.constant 0 : index
    %c0_0 = arith.constant 0 : index
    %0 = vector.load %arg1[%c0, %c0_0] : memref<64x128xf32, #tpu.memory_space<vmem>>, vector<64x128xf32>
    %1 = arith.truncf %0 : vector<64x128xf32> to vector<64x128xbf16>
    %c0_1 = arith.constant 0 : index
    %c0_2 = arith.constant 0 : index
    %2 = vector.load %arg2[%c0_1, %c0_2] : memref<32x128xf32, #tpu.memory_space<vmem>>, vector<32x128xf32>
    %3 = arith.truncf %2 : vector<32x128xf32> to vector<32x128xbf16>
    %c0_3 = arith.constant 0 : index
    %c0_4 = arith.constant 0 : index
    %4 = vector.load %arg3[%c0_3, %c0_4] : memref<32x64xbf16, #tpu.memory_space<vmem>>, vector<32x64xbf16>
    %cst = arith.constant 0.000000e+00 : bf16
    %5 = vector.broadcast %cst : bf16 to vector<32x64xbf16>
    %6 = arith.cmpf ogt, %4, %5 : vector<32x64xbf16>
    %c0_5 = arith.constant 0 : index
    %c0_6 = arith.constant 0 : index
    %c0_7 = arith.constant 0 : index
    %7 = vector.load %arg4[%c0_5, %c0_6, %c0_7] : memref<1x128x7xbf16, #tpu.memory_space<vmem>>, vector<1x128x7xbf16>
    %8 = vector.shape_cast %7 : vector<1x128x7xbf16> to vector<128x7xbf16>
    %c0_8 = arith.constant 0 : index
    %c0_9 = arith.constant 0 : index
    %c0_10 = arith.constant 0 : index
    %9 = vector.load %arg5[%c0_8, %c0_9, %c0_10] : memref<1x1x7xf32, #tpu.memory_space<vmem>>, vector<1x1x7xf32>
    %10 = vector.shape_cast %9 : vector<1x1x7xf32> to vector<1x7xf32>
    %c0_11 = arith.constant 0 : index
    %c0_12 = arith.constant 0 : index
    %c0_13 = arith.constant 0 : index
    %11 = vector.load %arg6[%c0_11, %c0_12, %c0_13] : memref<1x1x7xf32, #tpu.memory_space<vmem>>, vector<1x1x7xf32>
    %12 = vector.shape_cast %11 : vector<1x1x7xf32> to vector<1x7xf32>
    %cst_14 = arith.constant dense<0.000000e+00> : vector<64x7xf32>
    %13 = tpu.matmul %1, %8, %cst_14 {dimension_numbers = #tpu.dot_dimension_numbers<[1], [0], [0], [1], [0, 0, 1, 1], [], []>} : vector<64x128xbf16>, vector<128x7xbf16>, vector<64x7xf32> -> vector<64x7xf32>
    %cst_15 = arith.constant dense<0.000000e+00> : vector<32x7xf32>
    %14 = tpu.matmul %3, %8, %cst_15 {dimension_numbers = #tpu.dot_dimension_numbers<[1], [0], [0], [1], [0, 0, 1, 1], [], []>} : vector<32x128xbf16>, vector<128x7xbf16>, vector<32x7xf32> -> vector<32x7xf32>
    %15 = vector.broadcast %10 : vector<1x7xf32> to vector<32x7xf32>
    %16 = arith.mulf %14, %15 : vector<32x7xf32>
    %cst_16 = arith.constant dense<0.000000e+00> : vector<32xf32>
    %17 = vector.multi_reduction <add>, %16, %cst_16 [1] : vector<32x7xf32> to vector<32xf32>
    %18 = vector.shape_cast %17 : vector<32xf32> to vector<32x1xf32>
    "tpu.trace_start"() <{level = 10 : i32, message = "of,nf->on"}> : () -> ()
    %cst_17 = arith.constant dense<0.000000e+00> : vector<1x64xf32>
    %19 = tpu.matmul %12, %13, %cst_17 {dimension_numbers = #tpu.dot_dimension_numbers<[1], [1], [0], [0], [0, 0, 1, 0], [], []>} : vector<1x7xf32>, vector<64x7xf32>, vector<1x64xf32> -> vector<1x64xf32>
    "tpu.trace_stop"() : () -> ()
    %20 = vector.broadcast %18 : vector<32x1xf32> to vector<32x64xf32>
    %21 = vector.broadcast %19 : vector<1x64xf32> to vector<32x64xf32>
    %22 = arith.addf %20, %21 : vector<32x64xf32>
    %cst_18 = arith.constant 0.000000e+00 : f32
    %23 = vector.broadcast %cst_18 : f32 to vector<32x64xf32>
    %24 = arith.cmpf ogt, %22, %23 : vector<32x64xf32>
    %cst_19 = arith.constant 2.000000e-01 : f32
    %25 = vector.broadcast %cst_19 : f32 to vector<32x64xf32>
    %26 = arith.mulf %25, %22 : vector<32x64xf32>
    %27 = arith.select %24, %22, %26 : vector<32x64xi1>, vector<32x64xf32>
    %cst_20 = arith.constant -9.000000e+15 : f32
    %28 = vector.broadcast %cst_20 : f32 to vector<32x64xf32>
    %29 = arith.select %6, %27, %28 : vector<32x64xi1>, vector<32x64xf32>
    %cst_21 = arith.constant dense<0xFF800000> : vector<32xf32>
    %30 = vector.multi_reduction <maximumf>, %29, %cst_21 [1] : vector<32x64xf32> to vector<32xf32>
    %31 = vector.shape_cast %30 : vector<32xf32> to vector<32x1xf32>
    %32 = vector.broadcast %31 : vector<32x1xf32> to vector<32x64xf32>
    %33 = arith.subf %29, %32 : vector<32x64xf32>
    %34 = math.exp %33 : vector<32x64xf32>
    %cst_22 = arith.constant dense<0.000000e+00> : vector<32xf32>
    %35 = vector.multi_reduction <add>, %34, %cst_22 [1] : vector<32x64xf32> to vector<32xf32>
    %36 = vector.shape_cast %35 : vector<32xf32> to vector<32x1xf32>
    %37 = tpu.reciprocal %36 {approx = true} : vector<32x1xf32> -> vector<32x1xf32>
    %38 = vector.broadcast %37 : vector<32x1xf32> to vector<32x64xf32>
    %39 = arith.mulf %34, %38 : vector<32x64xf32>
    %40 = arith.truncf %39 : vector<32x64xf32> to vector<32x64xbf16>
    %41 = arith.truncf %13 : vector<64x7xf32> to vector<64x7xbf16>
    %cst_23 = arith.constant dense<0.000000e+00> : vector<32x7xf32>
    %42 = tpu.matmul %40, %41, %cst_23 {dimension_numbers = #tpu.dot_dimension_numbers<[1], [0], [0], [1], [0, 0, 1, 1], [], []>} : vector<32x64xbf16>, vector<64x7xbf16>, vector<32x7xf32> -> vector<32x7xf32>
    %cst_24 = arith.constant 0.000000e+00 : f32
    %43 = vector.broadcast %cst_24 : f32 to vector<32x7xf32>
    %44 = arith.cmpf ogt, %42, %43 : vector<32x7xf32>
    %cst_25 = arith.constant 0.000000e+00 : f32
    %45 = vector.broadcast %cst_25 : f32 to vector<32x7xf32>
    %46 = arith.minimumf %42, %45 : vector<32x7xf32>
    %47 = math.exp %46 : vector<32x7xf32>
    %cst_26 = arith.constant 1.000000e+00 : f32
    %48 = vector.broadcast %cst_26 : f32 to vector<32x7xf32>
    %49 = arith.subf %47, %48 : vector<32x7xf32>
    %50 = arith.select %44, %42, %49 : vector<32x7xi1>, vector<32x7xf32>
    %cst_27 = arith.constant dense<0xFF800000> : vector<32xf32>
    %51 = vector.multi_reduction <maximumf>, %50, %cst_27 [1] : vector<32x7xf32> to vector<32xf32>
    %52 = vector.shape_cast %51 : vector<32xf32> to vector<32x1xf32>
    %53 = vector.broadcast %52 : vector<32x1xf32> to vector<32x7xf32>
    %54 = arith.subf %50, %53 : vector<32x7xf32>
    %55 = math.exp %54 : vector<32x7xf32>
    %cst_28 = arith.constant dense<0.000000e+00> : vector<32xf32>
    %56 = vector.multi_reduction <add>, %55, %cst_28 [1] : vector<32x7xf32> to vector<32xf32>
    %57 = vector.shape_cast %56 : vector<32xf32> to vector<32x1xf32>
    %58 = math.log %57 : vector<32x1xf32>
    %59 = arith.addf %52, %58 : vector<32x1xf32>
    %60 = vector.broadcast %59 : vector<32x1xf32> to vector<32x7xf32>
    %61 = arith.subf %50, %60 : vector<32x7xf32>
    %c0_29 = arith.constant 0 : index
    %c0_30 = arith.constant 0 : index
    %62 = vector.load %arg7[%c0_29, %c0_30] : memref<32x7xf32, #tpu.memory_space<vmem>>, vector<32x7xf32>
    tpu.vector_store %arg7[%c0_29, %c0_30], %61 {strides = array<i32>} : memref<32x7xf32, #tpu.memory_space<vmem>>, vector<32x7xf32>,
    return
  }
  func.func @transform_0(%arg0: i32) -> (i32, i32) {
    %c0_i32 = arith.constant 0 : i32
    %c0_i32_0 = arith.constant 0 : i32
    %c0_i32_1 = arith.constant 0 : i32
    return %c0_i32, %c0_i32_0 : i32, i32
  }
  func.func @transform_1(%arg0: i32) -> (i32, i32) {
    %c0_i32 = arith.constant 0 : i32
    %c0_i32_0 = arith.constant 0 : i32
    return %arg0, %c0_i32 : i32, i32
  }
  func.func @transform_2(%arg0: i32) -> (i32, i32) {
    %c0_i32 = arith.constant 0 : i32
    %c0_i32_0 = arith.constant 0 : i32
    return %arg0, %c0_i32 : i32, i32
  }
  func.func @transform_3(%arg0: i32) -> (i32, i32, i32) {
    %c0_i32 = arith.constant 0 : i32
    %c0_i32_0 = arith.constant 0 : i32
    %c0_i32_1 = arith.constant 0 : i32
    %c0_i32_2 = arith.constant 0 : i32
    return %c0_i32, %c0_i32_0, %c0_i32_1 : i32, i32, i32
  }
  func.func @transform_4(%arg0: i32) -> (i32, i32, i32) {
    %c0_i32 = arith.constant 0 : i32
    %c0_i32_0 = arith.constant 0 : i32
    %c0_i32_1 = arith.constant 0 : i32
    %c0_i32_2 = arith.constant 0 : i32
    return %c0_i32, %c0_i32_0, %c0_i32_1 : i32, i32, i32
  }
  func.func @transform_5(%arg0: i32) -> (i32, i32, i32) {
    %c0_i32 = arith.constant 0 : i32
    %c0_i32_0 = arith.constant 0 : i32
    %c0_i32_1 = arith.constant 0 : i32
    %c0_i32_2 = arith.constant 0 : i32
    return %c0_i32, %c0_i32_0, %c0_i32_1 : i32, i32, i32
  }
  func.func @transform_6(%arg0: i32) -> (i32, i32) {
    %c0_i32 = arith.constant 0 : i32
    %c0_i32_0 = arith.constant 0 : i32
    return %arg0, %c0_i32 : i32, i32
  }
}

</mosaic_0001>

<llo_original>
// kernel: gat_ordered_deep_forward.5
$region0: #{gat_ordered_deep_forward.5}
  #allocation0 [shape = 'u32[]', space=smem, size = 0x4, offset = 0x4, fixed_abs, tag = 'smem constant byte address 0x4 - core index']
  #allocation1 [shape = 'u32[144,128]{1,0:T(1,128)}', space=vmem, size = 0x12000, scoped, tag = 'internal scratch']
  %s0 = inlined_call_operand.vmem [shape: f32[64,128], index: 0, kind: input, shape index: {}, may-alias: {0,1}]
  %s1 = inlined_call_operand.vmem [shape: f32[64,128], index: 1, kind: input, shape index: {}, may-alias: {0,1}]
  %s2 = inlined_call_operand.vmem [shape: bf16[64,64], index: 2, kind: input, shape index: {}]
  %s3 = inlined_call_operand.vmem [shape: bf16[1,128,7], index: 3, kind: input, shape index: {}]
  %s4 = inlined_call_operand.vmem [shape: f32[1,1,7], index: 4, kind: input, shape index: {}]
  %s5 = inlined_call_operand.vmem [shape: f32[1,1,7], index: 5, kind: input, shape index: {}]
  %s6 = inlined_call_operand.vmem [shape: f32[64,7], index: 6, kind: output, shape index: {}]
  %s7 = sld [smem:[#allocation0]]
  $region57: #{gat_ordered_deep_forward.5} parent=0
    _
  %s9 = ssub.s32 1, %s7
  %s10 = scalar_select 0, %s9, %s7
  loop: start=0, step=1, limit=4
  $region2: #{gat_ordered_deep_forward.5} parent=0 // loop_pre_header
    _
  $region3: #{gat_ordered_deep_forward.5} parent=0 // loop_header
    %s12 = sphi 0, %s16
    %p13 = scmp.ge.s32.totalorder %s12, 4
    %s20 = sphi 0, %s20
    %s22 = sphi 0, %s20
    %s23 = sphi 0, %s22
    %s37 = sphi 0, %s23
    %s43 = sphi 0, %s45
    %s46 = sphi 0, %s43
    %s47 = sphi 0, %s46
    %s63 = sphi 0, %s47
    %s69 = sphi 0, %s71
    %s72 = sphi 0, %s69
    %s73 = sphi 0, %s72
    %s89 = sphi 0, %s73
    %s93 = sphi 0, %s93
    %s95 = sphi 0, %s93
    %s96 = sphi 0, %s95
    %s110 = sphi 0, %s96
    %s114 = sphi 0, %s114
    %s116 = sphi 0, %s114
    %s117 = sphi 0, %s116
    %s131 = sphi 0, %s117
    %s135 = sphi 0, %s135
    %s137 = sphi 0, %s135
    %s138 = sphi 0, %s137
    %s152 = sphi 0, %s138
    %s158 = sphi 0, %s160
    %s161 = sphi 0, %s158
    %s162 = sphi 0, %s161
    %s178 = sphi 0, %s162
  $region4: #{gat_ordered_deep_forward.5} parent=0 // loop_header_branch
    %15 = sbr.rel (%p13) target = $region8
  $region5: #{gat_ordered_deep_forward.5} parent=0 // loop_body
    %s17 = ssub.s32 %s12, 1
    %s18 = ssub.s32 %s12, 2
    %s19 = sadd.s32 %s12, 1
    %s21 = sadd.s32 %s20, 1
    %p24 = scmp.eq.s32.totalorder %s12, 1
    %p25 = scmp.ne.s32.totalorder %s20, %s22
    %p26 = scmp.eq.s32.totalorder %s12, 0
    %p27 = por %p25, %p26
    %p28 = scmp.ne.s32.totalorder %s20, %s22
    %p29 = scmp.eq.s32.totalorder %s17, 1
    %p30 = por %p28, %p29
    %p31 = scmp.ne.s32.totalorder %s22, %s23
    %p32 = scmp.eq.s32.totalorder %s17, 0
    %p33 = por %p31, %p32
    %p34 = scmp.ne.s32.totalorder %s22, %s23
    %p35 = scmp.eq.s32.totalorder %s18, 1
    %p36 = por %p34, %p35
    %p38 = scmp.ne.s32.totalorder %s23, %s37
    %p39 = scmp.eq.s32.totalorder %s18, 0
    %p40 = por %p38, %p39
    %s41 = ssub.s32 %s12, %s19
    %p42 = scmp.eq.s32.totalorder %s41, 0
    %s44 = sadd.s32 %s43, 1
    %s45 = scalar_select %p42, %s43, %s44
    %p48 = pneg %p42
    %p49 = scmp.eq.s32.totalorder %s12, 1
    %p50 = por %p48, %p49
    %p51 = scmp.ne.s32.totalorder %s43, %s46
    %p52 = scmp.eq.s32.totalorder %s12, 0
    %p53 = por %p51, %p52
    %p54 = scmp.ne.s32.totalorder %s43, %s46
    %p55 = scmp.eq.s32.totalorder %s17, 1
    %p56 = por %p54, %p55
    %p57 = scmp.ne.s32.totalorder %s46, %s47
    %p58 = scmp.eq.s32.totalorder %s17, 0
    %p59 = por %p57, %p58
    %p60 = scmp.ne.s32.totalorder %s46, %s47
    %p61 = scmp.eq.s32.totalorder %s18, 1
    %p62 = por %p60, %p61
    %p64 = scmp.ne.s32.totalorder %s47, %s63
    %p65 = scmp.eq.s32.totalorder %s18, 0
    %p66 = por %p64, %p65
    %s67 = ssub.s32 %s12, %s19
    %p68 = scmp.eq.s32.totalorder %s67, 0
    %s70 = sadd.s32 %s69, 1
    %s71 = scalar_select %p68, %s69, %s70
    %p74 = pneg %p68
    %p75 = scmp.eq.s32.totalorder %s12, 1
    %p76 = por %p74, %p75
    %p77 = scmp.ne.s32.totalorder %s69, %s72
    %p78 = scmp.eq.s32.totalorder %s12, 0
    %p79 = por %p77, %p78
    %p80 = scmp.ne.s32.totalorder %s69, %s72
    %p81 = scmp.eq.s32.totalorder %s17, 1
    %p82 = por %p80, %p81
    %p83 = scmp.ne.s32.totalorder %s72, %s73
    %p84 = scmp.eq.s32.totalorder %s17, 0
    %p85 = por %p83, %p84
    %p86 = scmp.ne.s32.totalorder %s72, %s73
    %p87 = scmp.eq.s32.totalorder %s18, 1
    %p88 = por %p86, %p87
    %p90 = scmp.ne.s32.totalorder %s73, %s89
    %p91 = scmp.eq.s32.totalorder %s18, 0
    %p92 = por %p90, %p91
    %s94 = sadd.s32 %s93, 1
    %p97 = scmp.eq.s32.totalorder %s12, 1
    %p98 = scmp.ne.s32.totalorder %s93, %s95
    %p99 = scmp.eq.s32.totalorder %s12, 0
    %p100 = por %p98, %p99
    %p101 = scmp.ne.s32.totalorder %s93, %s95
    %p102 = scmp.eq.s32.totalorder %s17, 1
    %p103 = por %p101, %p102
    %p104 = scmp.ne.s32.totalorder %s95, %s96
    %p105 = scmp.eq.s32.totalorder %s17, 0
    %p106 = por %p104, %p105
    %p107 = scmp.ne.s32.totalorder %s95, %s96
    %p108 = scmp.eq.s32.totalorder %s18, 1
    %p109 = por %p107, %p108
    %p111 = scmp.ne.s32.totalorder %s96, %s110
    %p112 = scmp.eq.s32.totalorder %s18, 0
    %p113 = por %p111, %p112
    %s115 = sadd.s32 %s114, 1
    %p118 = scmp.eq.s32.totalorder %s12, 1
    %p119 = scmp.ne.s32.totalorder %s114, %s116
    %p120 = scmp.eq.s32.totalorder %s12, 0
    %p121 = por %p119, %p120
    %p122 = scmp.ne.s32.totalorder %s114, %s116
    %p123 = scmp.eq.s32.totalorder %s17, 1
    %p124 = por %p122, %p123
    %p125 = scmp.ne.s32.totalorder %s116, %s117
    %p126 = scmp.eq.s32.totalorder %s17, 0
    %p127 = por %p125, %p126
    %p128 = scmp.ne.s32.totalorder %s116, %s117
    %p129 = scmp.eq.s32.totalorder %s18, 1
    %p130 = por %p128, %p129
    %p132 = scmp.ne.s32.totalorder %s117, %s131
    %p133 = scmp.eq.s32.totalorder %s18, 0
    %p134 = por %p132, %p133
    %s136 = sadd.s32 %s135, 1
    %p139 = scmp.eq.s32.totalorder %s12, 1
    %p140 = scmp.ne.s32.totalorder %s135, %s137
    %p141 = scmp.eq.s32.totalorder %s12, 0
    %p142 = por %p140, %p141
    %p143 = scmp.ne.s32.totalorder %s135, %s137
    %p144 = scmp.eq.s32.totalorder %s17, 1
    %p145 = por %p143, %p144
    %p146 = scmp.ne.s32.totalorder %s137, %s138
    %p147 = scmp.eq.s32.totalorder %s17, 0
    %p148 = por %p146, %p147
    %p149 = scmp.ne.s32.totalorder %s137, %s138
    %p150 = scmp.eq.s32.totalorder %s18, 1
    %p151 = por %p149, %p150
    %p153 = scmp.ne.s32.totalorder %s138, %s152
    %p154 = scmp.eq.s32.totalorder %s18, 0
    %p155 = por %p153, %p154
    %s156 = ssub.s32 %s12, %s19
    %p157 = scmp.eq.s32.totalorder %s156, 0
    %s159 = sadd.s32 %s158, 1
    %s160 = scalar_select %p157, %s158, %s159
    %p163 = pneg %p157
    %p164 = scmp.eq.s32.totalorder %s12, 1
    %p165 = por %p163, %p164
    %p166 = scmp.ne.s32.totalorder %s158, %s161
    %p167 = scmp.eq.s32.totalorder %s12, 0
    %p168 = por %p166, %p167
    %p169 = scmp.ne.s32.totalorder %s158, %s161
    %p170 = scmp.eq.s32.totalorder %s17, 1
    %p171 = por %p169, %p170
    %p172 = scmp.ne.s32.totalorder %s161, %s162
    %p173 = scmp.eq.s32.totalorder %s17, 0
    %p174 = por %p172, %p173
    %p175 = scmp.ne.s32.totalorder %s161, %s162
    %p176 = scmp.eq.s32.totalorder %s18, 1
    %p177 = por %p175, %p176
    %p179 = scmp.ne.s32.totalorder %s162, %s178
    %p180 = scmp.eq.s32.totalorder %s18, 0
    %p181 = por %p179, %p180
    %p182 = scmp.le.s32.totalorder 1, %s12
    %p183 = scmp.lt.s32.totalorder %s12, 3
    %p184 = pnand %p182, %p183
    %p185 = pneg %p184
    // Predicated region
    $region9: #{gat_ordered_deep_forward.5} parent=5 // pred_check
      _
    $region10: #{gat_ordered_deep_forward.5} parent=5 // pred_check_branch
      %187 = sbr.rel (%p184) target = $region12
    $region11: #{gat_ordered_deep_forward.5} parent=5 // pred_region
      %s188 = ssub.s32 %s12, 1
      // Predicated region
      $region13: #{gat_ordered_deep_forward.5} parent=11 // pred_check
        %p189 = pneg %p33
      $region14: #{gat_ordered_deep_forward.5} parent=11 // pred_check_branch
        %191 = sbr.rel (%p189) target = $region16
      $region15: #{gat_ordered_deep_forward.5} parent=11 // pred_region
        _
      $region16: #{gat_ordered_deep_forward.5} parent=11 // pred_fallthru
        _
      // Predicated region
      $region17: #{gat_ordered_deep_forward.5} parent=11 // pred_check
        %p192 = pneg %p106
      $region18: #{gat_ordered_deep_forward.5} parent=11 // pred_check_branch
        %194 = sbr.rel (%p192) target = $region20
      $region19: #{gat_ordered_deep_forward.5} parent=11 // pred_region
        _
      $region20: #{gat_ordered_deep_forward.5} parent=11 // pred_fallthru
        _
      // Predicated region
      $region21: #{gat_ordered_deep_forward.5} parent=11 // pred_check
        %p195 = pneg %p127
      $region22: #{gat_ordered_deep_forward.5} parent=11 // pred_check_branch
        %197 = sbr.rel (%p195) target = $region24
      $region23: #{gat_ordered_deep_forward.5} parent=11 // pred_region
        _
      $region24: #{gat_ordered_deep_forward.5} parent=11 // pred_fallthru
        _
      // Predicated region
      $region25: #{gat_ordered_deep_forward.5} parent=11 // pred_check
        %p198 = pneg %p148
      $region26: #{gat_ordered_deep_forward.5} parent=11 // pred_check_branch
        %200 = sbr.rel (%p198) target = $region28
      $region27: #{gat_ordered_deep_forward.5} parent=11 // pred_region
        _
      $region28: #{gat_ordered_deep_forward.5} parent=11 // pred_fallthru
        _
    $region12: #{gat_ordered_deep_forward.5} parent=5 // pred_fallthru
      _
    %p201 = scmp.lt.s32.totalorder %s12, 2
    // Predicated region
    $region29: #{gat_ordered_deep_forward.5} parent=5 // pred_check
      %p202 = pneg %p201
    $region30: #{gat_ordered_deep_forward.5} parent=5 // pred_check_branch
      %204 = sbr.rel (%p202) target = $region32
    $region31: #{gat_ordered_deep_forward.5} parent=5 // pred_region
      // Predicated region
      $region33: #{gat_ordered_deep_forward.5} parent=31 // pred_check
        %p205 = pneg %p53
      $region34: #{gat_ordered_deep_forward.5} parent=31 // pred_check_branch
        %207 = sbr.rel (%p205) target = $region36
      $region35: #{gat_ordered_deep_forward.5} parent=31 // pred_region
        %s208 = smul.u32 4, %s12
        %p209 = scmp.lt.s32.totalorder %s208, 7
        %s210 = scalar_select %p209, %s208, 7
        %s211 = smul.addr %s210, 8
        %s212 = scalar_lea.vmem %s1, %s211
        %s213 = smul.u32 4, %s12
      $region36: #{gat_ordered_deep_forward.5} parent=31 // pred_fallthru
        _
      // Predicated region
      $region37: #{gat_ordered_deep_forward.5} parent=31 // pred_check
        %p214 = pneg %p79
      $region38: #{gat_ordered_deep_forward.5} parent=31 // pred_check_branch
        %216 = sbr.rel (%p214) target = $region40
      $region39: #{gat_ordered_deep_forward.5} parent=31 // pred_region
        %s217 = smul.u32 4, %s12
        %p218 = scmp.lt.s32.totalorder %s217, 7
        %s219 = scalar_select %p218, %s217, 7
        %s220 = smul.addr %s219, 4
        %s221 = scalar_lea.vmem %s2, %s220
        %s222 = smul.u32 4, %s12
      $region40: #{gat_ordered_deep_forward.5} parent=31 // pred_fallthru
        _
    $region32: #{gat_ordered_deep_forward.5} parent=5 // pred_fallthru
      _
    %p223 = scmp.le.s32.totalorder 1, %s12
    %p224 = scmp.lt.s32.totalorder %s12, 3
    %p225 = pnand %p223, %p224
    %p226 = pneg %p225
    // Predicated region
    $region41: #{gat_ordered_deep_forward.5} parent=5 // pred_check
      _
    $region42: #{gat_ordered_deep_forward.5} parent=5 // pred_check_branch
      %228 = sbr.rel (%p225) target = $region44
    $region43: #{gat_ordered_deep_forward.5} parent=5 // pred_region
      %s229 = ssub.s32 %s12, 1
      %p230 = pneg %p33
      %p231 = pneg %p30
      %s232 = smul.u32 4, %s17
      %p233 = scmp.lt.s32.totalorder %s232, 7
      %s234 = scalar_select %p233, %s232, 7
      %s235 = smul.addr %s234, 8
      %s236 = scalar_lea.vmem %s1, %s235
      %p237 = pneg %p59
      %p238 = pneg %p56
      %s239 = smul.u32 4, %s17
      %p240 = scmp.lt.s32.totalorder %s239, 7
      %s241 = scalar_select %p240, %s239, 7
      %s242 = smul.addr %s241, 4
      %s243 = scalar_lea.vmem %s2, %s242
      %p244 = pneg %p85
      %p245 = pneg %p82
      %p246 = pneg %p106
      %p247 = pneg %p103
      %p248 = pneg %p127
      %p249 = pneg %p124
      %p250 = pneg %p148
      %p251 = pneg %p145
      %p252 = pneg %p174
      %p253 = pneg %p171
      %s254 = smul.u32 4, %s17
      %p255 = scmp.lt.s32.totalorder %s254, 7
      %s256 = scalar_select %p255, %s254, 7
      %s257 = smul.addr %s256, 8
      %s258 = scalar_lea.vmem %s6, %s257
      %s259 = smul.u32 4, %s17
      %p260 = scmp.lt.s32.totalorder %s259, 7
      %s261 = scalar_select %p260, %s259, 7
      %s262 = smul.addr %s261, 8
      %s263 = scalar_lea.vmem %s1, %s262
      %s264 = smul.u32 4, %s17
      %s265 = smul.u32 4, %s17
      %p266 = scmp.lt.s32.totalorder %s265, 7
      %s267 = scalar_select %p266, %s265, 7
      %s268 = smul.addr %s267, 4
      %s269 = scalar_lea.vmem %s2, %s268
      %s270 = smul.u32 4, %s17
      %s271 = smul.u32 4, %s17
      %p272 = scmp.lt.s32.totalorder %s271, 7
      %s273 = scalar_select %p272, %s271, 7
      %s274 = smul.addr %s273, 8
      %s275 = scalar_lea.vmem %s6, %s274
      %s276 = smul.u32 4, %s17
      %v280 = vld [vmem:[%s0] sm:$0xff]
      %v281 = vld [vmem:[%s0 + $0x8] sm:$0xff]
      %v282 = vld [vmem:[%s0 + $0x10] sm:$0xff]
      %v283 = vld [vmem:[%s0 + $0x18] sm:$0xff]
      %v284 = vld [vmem:[%s0 + $0x20] sm:$0xff]
      %v285 = vld [vmem:[%s0 + $0x28] sm:$0xff]
      %v286 = vld [vmem:[%s0 + $0x30] sm:$0xff]
      %v287 = vld [vmem:[%s0 + $0x38] sm:$0xff]
      %v288 = vpack.c.bf16 %v281, %v280
      %v289 = vpack.c.bf16 %v283, %v282
      %v290 = vpack.c.bf16 %v285, %v284
      %v291 = vpack.c.bf16 %v287, %v286
      %v292 = vld [vmem:[%s263] sm:$0xff]
      %v293 = vld [vmem:[%s263 + $0x8] sm:$0xff]
      %v294 = vld [vmem:[%s263 + $0x10] sm:$0xff]
      %v295 = vld [vmem:[%s263 + $0x18] sm:$0xff]
      %v296 = vpack.c.bf16 %v293, %v292
      %v297 = vpack.c.bf16 %v295, %v294
      %v298 = vld [vmem:[%s269] sm:$0xf]
      %v299 = vld [vmem:[%s269 + $0x4] sm:$0xf]
      %v300 = vld [vmem:[%s269 + $0x8] sm:$0xf]
      %v301 = vld [vmem:[%s269 + $0xc] sm:$0xf]
      %vm302 = vcmp.gt.bf16.partialorder %v298, 0
      %vm303 = vcmp.gt.bf16.partialorder %v299, 0
      %vm304 = vcmp.gt.bf16.partialorder %v300, 0
      %vm305 = vcmp.gt.bf16.partialorder %v301, 0
      %v306 = vld [vmem:[%s3] sm:$0xf]
      %v307 = vld [vmem:[%s3 + $0x4] sm:$0xf]
      %v308 = vld [vmem:[%s3 + $0x8] sm:$0xf]
      %v309 = vld [vmem:[%s3 + $0xc] sm:$0xf]
      %v310 = vld [vmem:[%s3 + $0x10] sm:$0xf]
      %v311 = vld [vmem:[%s3 + $0x14] sm:$0xf]
      %v312 = vld [vmem:[%s3 + $0x18] sm:$0xf]
      %v313 = vld [vmem:[%s3 + $0x1c] sm:$0xf]
      %v314 = vld [vmem:[%s3 + $0x20] sm:$0xf]
      %v315 = vld [vmem:[%s3 + $0x24] sm:$0xf]
      %v316 = vld [vmem:[%s3 + $0x28] sm:$0xf]
      %v317 = vld [vmem:[%s3 + $0x2c] sm:$0xf]
      %v318 = vld [vmem:[%s3 + $0x30] sm:$0xf]
      %v319 = vld [vmem:[%s3 + $0x34] sm:$0xf]
      %v320 = vld [vmem:[%s3 + $0x38] sm:$0xf]
      %v321 = vld [vmem:[%s3 + $0x3c] sm:$0xf]
      %v322 = vld [vmem:[%s4] sm:$0x1]
      %v323 = vld [vmem:[%s5] sm:$0x1]
      %v340 = vunpack.c.l.b16 %v306
      %v341 = vunpack.c.l.b16 %v307
      %v342 = vunpack.c.l.b16 %v308
      %v343 = vunpack.c.l.b16 %v309
      %v344 = vunpack.c.l.b16 %v310
      %v345 = vunpack.c.l.b16 %v311
      %v346 = vunpack.c.l.b16 %v312
      %v347 = vunpack.c.l.b16 %v313
      %v348 = vunpack.c.l.b16 %v314
      %v349 = vunpack.c.l.b16 %v315
      %v350 = vunpack.c.l.b16 %v316
      %v351 = vunpack.c.l.b16 %v317
      %v352 = vunpack.c.l.b16 %v318
      %v353 = vunpack.c.l.b16 %v319
      %v354 = vunpack.c.l.b16 %v320
      %v355 = vunpack.c.l.b16 %v321
      %v356 = vpack.c.b16 %v341, %v340
      %v357 = vpack.c.b16 %v343, %v342
      %v358 = vpack.c.b16 %v345, %v344
      %v359 = vpack.c.b16 %v347, %v346
      %v360 = vpack.c.b16 %v349, %v348
      %v361 = vpack.c.b16 %v351, %v350
      %v362 = vpack.c.b16 %v353, %v352
      %v363 = vpack.c.b16 %v355, %v354
      %372 = vmatprep.subr.bf16.mxu0 0
      %373 = vmatpush1.bf16.msra.mxu0 %v356
      %374 = vmatprep.subr.bf16.mxu0 0
      %375 = vmatpush1.bf16.msra.mxu0 %v357
      %376 = vmatprep.subr.bf16.mxu0 0
      %377 = vmatpush1.bf16.msra.mxu0 %v358
      %378 = vmatprep.subr.bf16.mxu0 0
      %379 = vmatpush1.bf16.msra.mxu0 %v359
      %380 = vmatprep.subr.bf16.mxu0 0
      %381 = vmatpush1.bf16.msra.mxu0 %v360
      %382 = vmatprep.subr.bf16.mxu0 0
      %383 = vmatpush1.bf16.msra.mxu0 %v361
      %384 = vmatprep.subr.bf16.mxu0 0
      %385 = vmatpush1.bf16.msra.mxu0 %v362
      %386 = vmatprep.subr.bf16.mxu0 0
      %387 = vmatpush1.bf16.msra.mxu0 %v363
      %388 = vmatprep.subr.bf16.mxu0 0
      %389 = vmatpush1.bf16.msra.mxu0 0
      %390 = vmatprep.subr.bf16.mxu0 0
      %391 = vmatpush1.bf16.msra.mxu0 0
      %392 = vmatprep.subr.bf16.mxu0 0
      %393 = vmatpush1.bf16.msra.mxu0 0
      %394 = vmatprep.subr.bf16.mxu0 0
      %395 = vmatpush1.bf16.msra.mxu0 0
      %396 = vmatprep.subr.bf16.mxu0 0
      %397 = vmatpush1.bf16.msra.mxu0 0
      %398 = vmatprep.subr.bf16.mxu0 0
      %399 = vmatpush1.bf16.msra.mxu0 0
      %400 = vmatprep.subr.bf16.mxu0 0
      %401 = vmatpush1.bf16.msra.mxu0 0
      %402 = vmatprep.subr.bf16.mxu0 0
      %403 = vmatpush1.bf16.msra.mxu0 0
      %404 = vmatprep.mubr.bf16.mxu0 0
      %405 = vmatmul.mubr.bf16.gmra.mrb[0].mxu0 %v288
      %v406 = vpop.f32.mrb[0].mxu0
      %v407 = vadd.f32 0.0, %v406
      %v408 = vpop.f32.mrb[0].mxu0
      %v409 = vpop.f32.mrb[0].mxu0
      %v410 = vadd.f32 0.0, %v409
      %v411 = vpop.f32.mrb[0].mxu0
      %412 = vmatprep.mubr.bf16.mxu0 0
      %413 = vmatmul.mubr.bf16.gmra.mrb[0].mxu0 %v289
      %v414 = vpop.f32.mrb[0].mxu0
      %v415 = vadd.f32 0.0, %v414
      %v416 = vpop.f32.mrb[0].mxu0
      %v417 = vpop.f32.mrb[0].mxu0
      %v418 = vadd.f32 0.0, %v417
      %v419 = vpop.f32.mrb[0].mxu0
      %420 = vmatprep.mubr.bf16.mxu0 0
      %421 = vmatmul.mubr.bf16.gmra.mrb[0].mxu0 %v290
      %v422 = vpop.f32.mrb[0].mxu0
      %v423 = vadd.f32 0.0, %v422
      %v424 = vpop.f32.mrb[0].mxu0
      %v425 = vpop.f32.mrb[0].mxu0
      %v426 = vadd.f32 0.0, %v425
      %v427 = vpop.f32.mrb[0].mxu0
      %428 = vmatprep.mubr.bf16.mxu0 0
      %429 = vmatmul.mubr.bf16.gmra.mrb[0].mxu0 %v291
      %v430 = vpop.f32.mrb[0].mxu0
      %v431 = vadd.f32 0.0, %v430
      %v432 = vpop.f32.mrb[0].mxu0
      %v433 = vpop.f32.mrb[0].mxu0
      %v434 = vadd.f32 0.0, %v433
      %v435 = vpop.f32.mrb[0].mxu0
      %436 = vdwg.mxu0
      %437 = vmatprep.subr.bf16.mxu0 0
      %438 = vmatpush1.bf16.msra.mxu0 %v356
      %439 = vmatprep.subr.bf16.mxu0 0
      %440 = vmatpush1.bf16.msra.mxu0 %v357
      %441 = vmatprep.subr.bf16.mxu0 0
      %442 = vmatpush1.bf16.msra.mxu0 %v358
      %443 = vmatprep.subr.bf16.mxu0 0
      %444 = vmatpush1.bf16.msra.mxu0 %v359
      %445 = vmatprep.subr.bf16.mxu0 0
      %446 = vmatpush1.bf16.msra.mxu0 %v360
      %447 = vmatprep.subr.bf16.mxu0 0
      %448 = vmatpush1.bf16.msra.mxu0 %v361
      %449 = vmatprep.subr.bf16.mxu0 0
      %450 = vmatpush1.bf16.msra.mxu0 %v362
      %451 = vmatprep.subr.bf16.mxu0 0
      %452 = vmatpush1.bf16.msra.mxu0 %v363
      %453 = vmatprep.subr.bf16.mxu0 0
      %454 = vmatpush1.bf16.msra.mxu0 0
      %455 = vmatprep.subr.bf16.mxu0 0
      %456 = vmatpush1.bf16.msra.mxu0 0
      %457 = vmatprep.subr.bf16.mxu0 0
      %458 = vmatpush1.bf16.msra.mxu0 0
      %459 = vmatprep.subr.bf16.mxu0 0
      %460 = vmatpush1.bf16.msra.mxu0 0
      %461 = vmatprep.subr.bf16.mxu0 0
      %462 = vmatpush1.bf16.msra.mxu0 0
      %463 = vmatprep.subr.bf16.mxu0 0
      %464 = vmatpush1.bf16.msra.mxu0 0
      %465 = vmatprep.subr.bf16.mxu0 0
      %466 = vmatpush1.bf16.msra.mxu0 0
      %467 = vmatprep.subr.bf16.mxu0 0
      %468 = vmatpush1.bf16.msra.mxu0 0
      %469 = vmatprep.mubr.bf16.mxu0 0
      %470 = vmatmul.mubr.bf16.gmra.mrb[0].mxu0 %v296
      %v471 = vpop.f32.mrb[0].mxu0
      %v472 = vadd.f32 0.0, %v471
      %v473 = vpop.f32.mrb[0].mxu0
      %v474 = vpop.f32.mrb[0].mxu0
      %v475 = vadd.f32 0.0, %v474
      %v476 = vpop.f32.mrb[0].mxu0
      %477 = vmatprep.mubr.bf16.mxu0 0
      %478 = vmatmul.mubr.bf16.gmra.mrb[0].mxu0 %v297
      %v479 = vpop.f32.mrb[0].mxu0
      %v480 = vadd.f32 0.0, %v479
      %v481 = vpop.f32.mrb[0].mxu0
      %v482 = vpop.f32.mrb[0].mxu0
      %v483 = vadd.f32 0.0, %v482
      %v484 = vpop.f32.mrb[0].mxu0
      %485 = vdwg.mxu0
      %v487 = vlaneseq
      %v488 = vshrl.u32 %v487, 7
      %v489 = vsub.s32 0, %v488
      %v490 = vrot.slane %v322, %v489
      %v492 = vmul.f32 %v472, %v490
      %v493 = vmul.f32 %v475, %v490
      %v494 = vmul.f32 %v480, %v490
      %v495 = vmul.f32 %v483, %v490
      %vm496 = vcmask 56320
      %v497 = vsel %vm496, %v492, 0.0
      %498 = vadd.xlane.f32.xlu0 %v497
      %v499 = vpop.xlane.xlu0 %498
      %v500 = vsel %vm496, %v493, 0.0
      %501 = vadd.xlane.f32.xlu0 %v500
      %v502 = vpop.xlane.xlu0 %501
      %v503 = vsel %vm496, %v494, 0.0
      %504 = vadd.xlane.f32.xlu0 %v503
      %v505 = vpop.xlane.xlu0 %504
      %v506 = vsel %vm496, %v495, 0.0
      %507 = vadd.xlane.f32.xlu0 %v506
      %v508 = vpop.xlane.xlu0 %507
      %v510 = vsel %vm496, %v323, 0
      %v513 = vsel %vm496, %v407, 0
      %v516 = vsel %vm496, %v410, 0
      %v519 = vsel %vm496, %v415, 0
      %v522 = vsel %vm496, %v418, 0
      %v525 = vsel %vm496, %v423, 0
      %v528 = vsel %vm496, %v426, 0
      %v531 = vsel %vm496, %v431, 0
      %v534 = vsel %vm496, %v434, 0
      %536 = vmatprep.subr.mxu0 0.0
      %537 = vmatpush1.xpose.msra.mxu0 %v513
      %538 = vmatprep.subr.mxu0 0.0
      %539 = vmatpush1.xpose.msra.mxu0 %v516
      %540 = vmatprep.subr.mxu0 0.0
      %541 = vmatpush1.xpose.msra.mxu0 %v519
      %542 = vmatprep.subr.mxu0 0.0
      %543 = vmatpush1.xpose.msra.mxu0 %v522
      %544 = vmatprep.subr.mxu0 0.0
      %545 = vmatpush1.xpose.msra.mxu0 %v525
      %546 = vmatprep.subr.mxu0 0.0
      %547 = vmatpush1.xpose.msra.mxu0 %v528
      %548 = vmatprep.subr.mxu0 0.0
      %549 = vmatpush1.xpose.msra.mxu0 %v531
      %550 = vmatprep.subr.mxu0 0.0
      %551 = vmatpush1.xpose.msra.mxu0 %v534
      %552 = vmatprep.subr.mxu0 0.0
      %553 = vmatpush1.xpose.msra.mxu0 0.0
      %554 = vmatprep.subr.mxu0 0.0
      %555 = vmatpush1.xpose.msra.mxu0 0.0
      %556 = vmatprep.subr.mxu0 0.0
      %557 = vmatpush1.xpose.msra.mxu0 0.0
      %558 = vmatprep.subr.mxu0 0.0
      %559 = vmatpush1.xpose.msra.mxu0 0.0
      %560 = vmatprep.subr.mxu0 0.0
      %561 = vmatpush1.xpose.msra.mxu0 0.0
      %562 = vmatprep.subr.mxu0 0.0
      %563 = vmatpush1.xpose.msra.mxu0 0.0
      %564 = vmatprep.subr.mxu0 0.0
      %565 = vmatpush1.xpose.msra.mxu0 0.0
      %566 = vmatprep.subr.mxu0 0.0
      %567 = vmatpush1.xpose.msra.mxu0 0.0
      %568 = vmatprep.subr.mxu0 0.0
      %569 = vmatpush1.xpose.msra.mxu0 0.0
      %570 = vmatprep.subr.mxu0 0.0
      %571 = vmatpush1.xpose.msra.mxu0 0.0
      %572 = vmatprep.subr.mxu0 0.0
      %573 = vmatpush1.xpose.msra.mxu0 0.0
      %574 = vmatprep.subr.mxu0 0.0
      %575 = vmatpush1.xpose.msra.mxu0 0.0
      %576 = vmatprep.subr.mxu0 0.0
      %577 = vmatpush1.xpose.msra.mxu0 0.0
      %578 = vmatprep.subr.mxu0 0.0
      %579 = vmatpush1.xpose.msra.mxu0 0.0
      %580 = vmatprep.subr.mxu0 0.0
      %581 = vmatpush1.xpose.msra.mxu0 0.0
      %582 = vmatprep.subr.mxu0 0.0
      %583 = vmatpush1.xpose.msra.mxu0 0.0
      %584 = vmatprep.subr.mxu0 0.0
      %585 = vmatpush1.xpose.msra.mxu0 0.0
      %586 = vmatprep.subr.mxu0 0.0
      %587 = vmatpush1.xpose.msra.mxu0 0.0
      %588 = vmatprep.subr.mxu0 0.0
      %589 = vmatpush1.xpose.msra.mxu0 0.0
      %590 = vmatprep.subr.mxu0 0.0
      %591 = vmatpush1.xpose.msra.mxu0 0.0
      %592 = vmatprep.subr.mxu0 0.0
      %593 = vmatpush1.xpose.msra.mxu0 0.0
      %594 = vmatprep.subr.mxu0 0.0
      %595 = vmatpush1.xpose.msra.mxu0 0.0
      %596 = vmatprep.subr.mxu0 0.0
      %597 = vmatpush1.xpose.msra.mxu0 0.0
      %598 = vmatprep.subr.mxu0 0.0
      %599 = vmatpush1.xpose.msra.mxu0 0.0
      %600 = vmatprep.mubr.f32.mxu0 0.0
      %601 = vmatmul.mubr.f32.gmra.mrb[0].mxu0 %v510
      %v602 = vpop.f32.mrb[0].mxu0
      %v603 = vadd.f32 0.0, %v602
      %v604 = vpop.f32.mrb[0].mxu0
      %605 = vdwg.mxu0
      %v606 = vlaneseq
      %v607 = vshrl.u32 %v606, 7
      %v608 = vsub.s32 0, %v607
      %v609 = vrot.slane %v603, %v608
      %v610 = vadd.f32 %v499, %v609
      %v611 = vadd.f32 %v502, %v609
      %v612 = vadd.f32 %v505, %v609
      %v613 = vadd.f32 %v508, %v609
      %vm614 = vcmp.gt.f32.partialorder %v610, 0.0
      %vm615 = vcmp.gt.f32.partialorder %v611, 0.0
      %vm616 = vcmp.gt.f32.partialorder %v612, 0.0
      %vm617 = vcmp.gt.f32.partialorder %v613, 0.0
      %v618 = vmul.f32 %v610, 0.2
      %v619 = vmul.f32 %v611, 0.2
      %v620 = vmul.f32 %v612, 0.2
      %v621 = vmul.f32 %v613, 0.2
      %v622 = vsel %vm614, %v610, %v618
      %v623 = vsel %vm615, %v611, %v619
      %v624 = vsel %vm616, %v612, %v620
      %v625 = vsel %vm617, %v613, %v621
      %v626 = vsel %vm302, 65537, 0
      %v627 = vsel %vm303, 65537, 0
      %v628 = vsel %vm304, 65537, 0
      %v629 = vsel %vm305, 65537, 0
      %v630 = vunpack.c.l.b16 %v626
      %v631 = vunpack.c.l.b16 %v627
      %v632 = vunpack.c.l.b16 %v628
      %v633 = vunpack.c.l.b16 %v629
      %vm634 = vcmp.ne.s32.totalorder %v630, 0
      %vm635 = vcmp.ne.s32.totalorder %v631, 0
      %vm636 = vcmp.ne.s32.totalorder %v632, 0
      %vm637 = vcmp.ne.s32.totalorder %v633, 0
      %v638 = vsel %vm634, %v622, -9e+15
      %v639 = vsel %vm635, %v623, -9e+15
      %v640 = vsel %vm636, %v624, -9e+15
      %v641 = vsel %vm637, %v625, -9e+15
      %vm642 = vcmask 523264
      %v643 = vsel %vm642, %v638, -inf
      %644 = vmax.xlane.f32.xlu0 %v643
      %v645 = vpop.xlane.xlu0 %644
      %v646 = vsel %vm642, %v639, -inf
      %647 = vmax.xlane.f32.xlu0 %v646
      %v648 = vpop.xlane.xlu0 %647
      %v649 = vsel %vm642, %v640, -inf
      %650 = vmax.xlane.f32.xlu0 %v649
      %v651 = vpop.xlane.xlu0 %650
      %v652 = vsel %vm642, %v641, -inf
      %653 = vmax.xlane.f32.xlu0 %v652
      %v654 = vpop.xlane.xlu0 %653
      %v655 = vsub.f32 %v638, %v645
      %v656 = vsub.f32 %v639, %v648
      %v657 = vsub.f32 %v640, %v651
      %v658 = vsub.f32 %v641, %v654
      %v659 = vmul.f32 %v655, 1.442695
      %v660 = vpow.pop %v659
      %v661 = vmul.f32 %v656, 1.442695
      %v662 = vpow.pop %v661
      %v663 = vmul.f32 %v657, 1.442695
      %v664 = vpow.pop %v663
      %v665 = vmul.f32 %v658, 1.442695
      %v666 = vpow.pop %v665
      %v667 = vsel %vm642, %v660, 0.0
      %668 = vadd.xlane.f32.xlu0 %v667
      %v669 = vpop.xlane.xlu0 %668
      %v670 = vsel %vm642, %v662, 0.0
      %671 = vadd.xlane.f32.xlu0 %v670
      %v672 = vpop.xlane.xlu0 %671
      %v673 = vsel %vm642, %v664, 0.0
      %674 = vadd.xlane.f32.xlu0 %v673
      %v675 = vpop.xlane.xlu0 %674
      %v676 = vsel %vm642, %v666, 0.0
      %677 = vadd.xlane.f32.xlu0 %v676
      %v678 = vpop.xlane.xlu0 %677
      %v679 = vrcp.pop %v669
      %v680 = vrcp.pop %v672
      %v681 = vrcp.pop %v675
      %v682 = vrcp.pop %v678
      %v683 = vmul.f32 %v660, %v679
      %v684 = vmul.f32 %v662, %v680
      %v685 = vmul.f32 %v664, %v681
      %v686 = vmul.f32 %v666, %v682
      %v687 = vpack.c.bf16 %v684, %v683
      %v688 = vpack.c.bf16 %v686, %v685
      %v689 = vpack.c.bf16 %v410, %v407
      %v690 = vpack.c.bf16 %v418, %v415
      %v691 = vpack.c.bf16 %v426, %v423
      %v692 = vpack.c.bf16 %v434, %v431
      %v694 = vsel %vm642, %v687, 0
      %v697 = vsel %vm642, %v688, 0
      %699 = vmatprep.subr.bf16.mxu0 0
      %700 = vmatpush1.bf16.msra.mxu0 %v689
      %701 = vmatprep.subr.bf16.mxu0 0
      %702 = vmatpush1.bf16.msra.mxu0 %v690
      %703 = vmatprep.subr.bf16.mxu0 0
      %704 = vmatpush1.bf16.msra.mxu0 %v691
      %705 = vmatprep.subr.bf16.mxu0 0
      %706 = vmatpush1.bf16.msra.mxu0 %v692
      %707 = vmatprep.subr.bf16.mxu0 0
      %708 = vmatpush1.bf16.msra.mxu0 0
      %709 = vmatprep.subr.bf16.mxu0 0
      %710 = vmatpush1.bf16.msra.mxu0 0
      %711 = vmatprep.subr.bf16.mxu0 0
      %712 = vmatpush1.bf16.msra.mxu0 0
      %713 = vmatprep.subr.bf16.mxu0 0
      %714 = vmatpush1.bf16.msra.mxu0 0
      %715 = vmatprep.subr.bf16.mxu0 0
      %716 = vmatpush1.bf16.msra.mxu0 0
      %717 = vmatprep.subr.bf16.mxu0 0
      %718 = vmatpush1.bf16.msra.mxu0 0
      %719 = vmatprep.subr.bf16.mxu0 0
      %720 = vmatpush1.bf16.msra.mxu0 0
      %721 = vmatprep.subr.bf16.mxu0 0
      %722 = vmatpush1.bf16.msra.mxu0 0
      %723 = vmatprep.subr.bf16.mxu0 0
      %724 = vmatpush1.bf16.msra.mxu0 0
      %725 = vmatprep.subr.bf16.mxu0 0
      %726 = vmatpush1.bf16.msra.mxu0 0
      %727 = vmatprep.subr.bf16.mxu0 0
      %728 = vmatpush1.bf16.msra.mxu0 0
      %729 = vmatprep.subr.bf16.mxu0 0
      %730 = vmatpush1.bf16.msra.mxu0 0
      %731 = vmatprep.mubr.bf16.mxu0 0
      %732 = vmatmul.mubr.bf16.gmra.mrb[0].mxu0 %v694
      %v733 = vpop.f32.mrb[0].mxu0
      %v734 = vadd.f32 0.0, %v733
      %v735 = vpop.f32.mrb[0].mxu0
      %v736 = vpop.f32.mrb[0].mxu0
      %v737 = vadd.f32 0.0, %v736
      %v738 = vpop.f32.mrb[0].mxu0
      %739 = vmatprep.mubr.bf16.mxu0 0
      %740 = vmatmul.mubr.bf16.gmra.mrb[0].mxu0 %v697
      %v741 = vpop.f32.mrb[0].mxu0
      %v742 = vadd.f32 0.0, %v741
      %v743 = vpop.f32.mrb[0].mxu0
      %v744 = vpop.f32.mrb[0].mxu0
      %v745 = vadd.f32 0.0, %v744
      %v746 = vpop.f32.mrb[0].mxu0
      %747 = vdwg.mxu0
      %vm748 = vcmp.gt.f32.partialorder %v734, 0.0
      %vm749 = vcmp.gt.f32.partialorder %v737, 0.0
      %vm750 = vcmp.gt.f32.partialorder %v742, 0.0
      %vm751 = vcmp.gt.f32.partialorder %v745, 0.0
      %v752 = vmin.f32 %v734, 0.0
      %v753 = vmin.f32 %v737, 0.0
      %v754 = vmin.f32 %v742, 0.0
      %v755 = vmin.f32 %v745, 0.0
      %v756 = vmul.f32 %v752, 1.442695
      %v757 = vpow.pop %v756
      %v758 = vmul.f32 %v753, 1.442695
      %v759 = vpow.pop %v758
      %v760 = vmul.f32 %v754, 1.442695
      %v761 = vpow.pop %v760
      %v762 = vmul.f32 %v755, 1.442695
      %v763 = vpow.pop %v762
      %v764 = vsub.f32 %v757, 1.0
      %v765 = vsub.f32 %v759, 1.0
      %v766 = vsub.f32 %v761, 1.0
      %v767 = vsub.f32 %v763, 1.0
      %v768 = vsel %vm748, %v734, %v764
      %v769 = vsel %vm749, %v737, %v765
      %v770 = vsel %vm750, %v742, %v766
      %v771 = vsel %vm751, %v745, %v767
      %v772 = vsel %vm496, %v768, -inf
      %773 = vmax.xlane.f32.xlu0 %v772
      %v774 = vpop.xlane.xlu0 %773
      %v775 = vsel %vm496, %v769, -inf
      %776 = vmax.xlane.f32.xlu0 %v775
      %v777 = vpop.xlane.xlu0 %776
      %v778 = vsel %vm496, %v770, -inf
      %779 = vmax.xlane.f32.xlu0 %v778
      %v780 = vpop.xlane.xlu0 %779
      %v781 = vsel %vm496, %v771, -inf
      %782 = vmax.xlane.f32.xlu0 %v781
      %v783 = vpop.xlane.xlu0 %782
      %v784 = vsub.f32 %v768, %v774
      %v785 = vsub.f32 %v769, %v777
      %v786 = vsub.f32 %v770, %v780
      %v787 = vsub.f32 %v771, %v783
      %v788 = vmul.f32 %v784, 1.442695
      %v789 = vpow.pop %v788
      %v790 = vmul.f32 %v785, 1.442695
      %v791 = vpow.pop %v790
      %v792 = vmul.f32 %v786, 1.442695
      %v793 = vpow.pop %v792
      %v794 = vmul.f32 %v787, 1.442695
      %v795 = vpow.pop %v794
      %v796 = vsel %vm496, %v789, 0.0
      %797 = vadd.xlane.f32.xlu0 %v796
      %v798 = vpop.xlane.xlu0 %797
      %v799 = vsel %vm496, %v791, 0.0
      %800 = vadd.xlane.f32.xlu0 %v799
      %v801 = vpop.xlane.xlu0 %800
      %v802 = vsel %vm496, %v793, 0.0
      %803 = vadd.xlane.f32.xlu0 %v802
      %v804 = vpop.xlane.xlu0 %803
      %v805 = vsel %vm496, %v795, 0.0
      %806 = vadd.xlane.f32.xlu0 %v805
      %v807 = vpop.xlane.xlu0 %806
      %v808 = vlog2.pop %v798
      %v809 = vmul.f32 %v808, 0.6931472
      %v810 = vlog2.pop %v801
      %v811 = vmul.f32 %v810, 0.6931472
      %v812 = vlog2.pop %v804
      %v813 = vmul.f32 %v812, 0.6931472
      %v814 = vlog2.pop %v807
      %v815 = vmul.f32 %v814, 0.6931472
      %v816 = vadd.f32 %v774, %v809
      %v817 = vadd.f32 %v777, %v811
      %v818 = vadd.f32 %v780, %v813
      %v819 = vadd.f32 %v783, %v815
      %v820 = vsub.f32 %v768, %v816
      %v821 = vsub.f32 %v769, %v817
      %v822 = vsub.f32 %v770, %v818
      %v823 = vsub.f32 %v771, %v819
      %824 = vst.msk [vmem:[%s275] sm:$0xff] %vm496, %v820
      %825 = vst.msk [vmem:[%s275 + $0x8] sm:$0xff] %vm496, %v821
      %826 = vst.msk [vmem:[%s275 + $0x10] sm:$0xff] %vm496, %v822
      %827 = vst.msk [vmem:[%s275 + $0x18] sm:$0xff] %vm496, %v823
      %s828 = smul.u32 4, %s17
      %p829 = scmp.lt.s32.totalorder %s828, 7
      %s830 = scalar_select %p829, %s828, 7
      %s831 = smul.addr %s830, 8
      %s832 = scalar_lea.vmem %s6, %s831
      // Predicated region
      $region45: #{gat_ordered_deep_forward.5} parent=43 // pred_check
        %p833 = pneg %p171
      $region46: #{gat_ordered_deep_forward.5} parent=43 // pred_check_branch
        %835 = sbr.rel (%p833) target = $region48
      $region47: #{gat_ordered_deep_forward.5} parent=43 // pred_region
        %s836 = smul.u32 4, %s17
      $region48: #{gat_ordered_deep_forward.5} parent=43 // pred_fallthru
        _
    $region44: #{gat_ordered_deep_forward.5} parent=5 // pred_fallthru
      _
    %p837 = scmp.le.s32.totalorder 2, %s12
    // Predicated region
    $region49: #{gat_ordered_deep_forward.5} parent=5 // pred_check
      %p838 = pneg %p837
    $region50: #{gat_ordered_deep_forward.5} parent=5 // pred_check_branch
      %840 = sbr.rel (%p838) target = $region52
    $region51: #{gat_ordered_deep_forward.5} parent=5 // pred_region
      %s841 = ssub.s32 %s12, 2
      // Predicated region
      $region53: #{gat_ordered_deep_forward.5} parent=51 // pred_check
        %p842 = pneg %p177
      $region54: #{gat_ordered_deep_forward.5} parent=51 // pred_check_branch
        %844 = sbr.rel (%p842) target = $region56
      $region55: #{gat_ordered_deep_forward.5} parent=51 // pred_region
        %s845 = smul.u32 4, %s18
        %p846 = scmp.lt.s32.totalorder %s845, 7
        %s847 = scalar_select %p846, %s845, 7
        %s848 = smul.addr %s847, 8
        %s849 = scalar_lea.vmem %s6, %s848
      $region56: #{gat_ordered_deep_forward.5} parent=51 // pred_fallthru
        _
    $region52: #{gat_ordered_deep_forward.5} parent=5 // pred_fallthru
      _
  $region6: #{gat_ordered_deep_forward.5} parent=0 // loop_footer
    %s16 = sadd.s32 1, %s12
  $region7: #{gat_ordered_deep_forward.5} parent=0 // loop_footer_branch
    %11 = sbr.rel target = $region3
  $region8: #{gat_ordered_deep_forward.5} parent=0 // loop_exit
    _

// kernel: gat_ordered_deep_forward.3
$region0: #{gat_ordered_deep_forward.3}
  #allocation0 [shape = 'u32[]', space=smem, size = 0x4, offset = 0x4, fixed_abs, tag = 'smem constant byte address 0x4 - core index']
  #allocation1 [shape = 'u32[144,128]{1,0:T(1,128)}', space=vmem, size = 0x12000, scoped, tag = 'internal scratch']
  %s0 = inlined_call_operand.vmem [shape: f32[64,32], index: 0, kind: input, shape index: {}, may-alias: {0,1}]
  %s1 = inlined_call_operand.vmem [shape: f32[64,32], index: 1, kind: input, shape index: {}, may-alias: {0,1}]
  %s2 = inlined_call_operand.vmem [shape: bf16[64,64], index: 2, kind: input, shape index: {}]
  %s3 = inlined_call_operand.vmem [shape: bf16[4,32,32], index: 3, kind: input, shape index: {}]
  %s4 = inlined_call_operand.vmem [shape: f32[4,1,32], index: 4, kind: input, shape index: {}]
  %s5 = inlined_call_operand.vmem [shape: f32[4,1,32], index: 5, kind: input, shape index: {}]
  %s6 = inlined_call_operand.vmem [shape: f32[64,128], index: 6, kind: output, shape index: {}]
  %s7 = sld [smem:[#allocation0]]
  $region57: #{gat_ordered_deep_forward.3} parent=0
    _
  %s9 = ssub.s32 1, %s7
  %s10 = scalar_select 0, %s9, %s7
  loop: start=0, step=1, limit=4
  $region2: #{gat_ordered_deep_forward.3} parent=0 // loop_pre_header
    _
  $region3: #{gat_ordered_deep_forward.3} parent=0 // loop_header
    %s12 = sphi 0, %s16
    %p13 = scmp.ge.s32.totalorder %s12, 4
    %s20 = sphi 0, %s20
    %s22 = sphi 0, %s20
    %s23 = sphi 0, %s22
    %s37 = sphi 0, %s23
    %s43 = sphi 0, %s45
    %s46 = sphi 0, %s43
    %s47 = sphi 0, %s46
    %s63 = sphi 0, %s47
    %s69 = sphi 0, %s71
    %s72 = sphi 0, %s69
    %s73 = sphi 0, %s72
    %s89 = sphi 0, %s73
    %s93 = sphi 0, %s93
    %s95 = sphi 0, %s93
    %s96 = sphi 0, %s95
    %s110 = sphi 0, %s96
    %s114 = sphi 0, %s114
    %s116 = sphi 0, %s114
    %s117 = sphi 0, %s116
    %s131 = sphi 0, %s117
    %s135 = sphi 0, %s135
    %s137 = sphi 0, %s135
    %s138 = sphi 0, %s137
    %s152 = sphi 0, %s138
    %s158 = sphi 0, %s160
    %s161 = sphi 0, %s158
    %s162 = sphi 0, %s161
    %s178 = sphi 0, %s162
  $region4: #{gat_ordered_deep_forward.3} parent=0 // loop_header_branch
    %15 = sbr.rel (%p13) target = $region8
  $region5: #{gat_ordered_deep_forward.3} parent=0 // loop_body
    %s17 = ssub.s32 %s12, 1
    %s18 = ssub.s32 %s12, 2
    %s19 = sadd.s32 %s12, 1
    %s21 = sadd.s32 %s20, 1
    %p24 = scmp.eq.s32.totalorder %s12, 1
    %p25 = scmp.ne.s32.totalorder %s20, %s22
    %p26 = scmp.eq.s32.totalorder %s12, 0
    %p27 = por %p25, %p26
    %p28 = scmp.ne.s32.totalorder %s20, %s22
    %p29 = scmp.eq.s32.totalorder %s17, 1
    %p30 = por %p28, %p29
    %p31 = scmp.ne.s32.totalorder %s22, %s23
    %p32 = scmp.eq.s32.totalorder %s17, 0
    %p33 = por %p31, %p32
    %p34 = scmp.ne.s32.totalorder %s22, %s23
    %p35 = scmp.eq.s32.totalorder %s18, 1
    %p36 = por %p34, %p35
    %p38 = scmp.ne.s32.totalorder %s23, %s37
    %p39 = scmp.eq.s32.totalorder %s18, 0
    %p40 = por %p38, %p39
    %s41 = ssub.s32 %s12, %s19
    %p42 = scmp.eq.s32.totalorder %s41, 0
    %s44 = sadd.s32 %s43, 1
    %s45 = scalar_select %p42, %s43, %s44
    %p48 = pneg %p42
    %p49 = scmp.eq.s32.totalorder %s12, 1
    %p50 = por %p48, %p49
    %p51 = scmp.ne.s32.totalorder %s43, %s46
    %p52 = scmp.eq.s32.totalorder %s12, 0
    %p53 = por %p51, %p52
    %p54 = scmp.ne.s32.totalorder %s43, %s46
    %p55 = scmp.eq.s32.totalorder %s17, 1
    %p56 = por %p54, %p55
    %p57 = scmp.ne.s32.totalorder %s46, %s47
    %p58 = scmp.eq.s32.totalorder %s17, 0
    %p59 = por %p57, %p58
    %p60 = scmp.ne.s32.totalorder %s46, %s47
    %p61 = scmp.eq.s32.totalorder %s18, 1
    %p62 = por %p60, %p61
    %p64 = scmp.ne.s32.totalorder %s47, %s63
    %p65 = scmp.eq.s32.totalorder %s18, 0
    %p66 = por %p64, %p65
    %s67 = ssub.s32 %s12, %s19
    %p68 = scmp.eq.s32.totalorder %s67, 0
    %s70 = sadd.s32 %s69, 1
    %s71 = scalar_select %p68, %s69, %s70
    %p74 = pneg %p68
    %p75 = scmp.eq.s32.totalorder %s12, 1
    %p76 = por %p74, %p75
    %p77 = scmp.ne.s32.totalorder %s69, %s72
    %p78 = scmp.eq.s32.totalorder %s12, 0
    %p79 = por %p77, %p78
    %p80 = scmp.ne.s32.totalorder %s69, %s72
    %p81 = scmp.eq.s32.totalorder %s17, 1
    %p82 = por %p80, %p81
    %p83 = scmp.ne.s32.totalorder %s72, %s73
    %p84 = scmp.eq.s32.totalorder %s17, 0
    %p85 = por %p83, %p84
    %p86 = scmp.ne.s32.totalorder %s72, %s73
    %p87 = scmp.eq.s32.totalorder %s18, 1
    %p88 = por %p86, %p87
    %p90 = scmp.ne.s32.totalorder %s73, %s89
    %p91 = scmp.eq.s32.totalorder %s18, 0
    %p92 = por %p90, %p91
    %s94 = sadd.s32 %s93, 1
    %p97 = scmp.eq.s32.totalorder %s12, 1
    %p98 = scmp.ne.s32.totalorder %s93, %s95
    %p99 = scmp.eq.s32.totalorder %s12, 0
    %p100 = por %p98, %p99
    %p101 = scmp.ne.s32.totalorder %s93, %s95
    %p102 = scmp.eq.s32.totalorder %s17, 1
    %p103 = por %p101, %p102
    %p104 = scmp.ne.s32.totalorder %s95, %s96
    %p105 = scmp.eq.s32.totalorder %s17, 0
    %p106 = por %p104, %p105
    %p107 = scmp.ne.s32.totalorder %s95, %s96
    %p108 = scmp.eq.s32.totalorder %s18, 1
    %p109 = por %p107, %p108
    %p111 = scmp.ne.s32.totalorder %s96, %s110
    %p112 = scmp.eq.s32.totalorder %s18, 0
    %p113 = por %p111, %p112
    %s115 = sadd.s32 %s114, 1
    %p118 = scmp.eq.s32.totalorder %s12, 1
    %p119 = scmp.ne.s32.totalorder %s114, %s116
    %p120 = scmp.eq.s32.totalorder %s12, 0
    %p121 = por %p119, %p120
    %p122 = scmp.ne.s32.totalorder %s114, %s116
    %p123 = scmp.eq.s32.totalorder %s17, 1
    %p124 = por %p122, %p123
    %p125 = scmp.ne.s32.totalorder %s116, %s117
    %p126 = scmp.eq.s32.totalorder %s17, 0
    %p127 = por %p125, %p126
    %p128 = scmp.ne.s32.totalorder %s116, %s117
    %p129 = scmp.eq.s32.totalorder %s18, 1
    %p130 = por %p128, %p129
    %p132 = scmp.ne.s32.totalorder %s117, %s131
    %p133 = scmp.eq.s32.totalorder %s18, 0
    %p134 = por %p132, %p133
    %s136 = sadd.s32 %s135, 1
    %p139 = scmp.eq.s32.totalorder %s12, 1
    %p140 = scmp.ne.s32.totalorder %s135, %s137
    %p141 = scmp.eq.s32.totalorder %s12, 0
    %p142 = por %p140, %p141
    %p143 = scmp.ne.s32.totalorder %s135, %s137
    %p144 = scmp.eq.s32.totalorder %s17, 1
    %p145 = por %p143, %p144
    %p146 = scmp.ne.s32.totalorder %s137, %s138
    %p147 = scmp.eq.s32.totalorder %s17, 0
    %p148 = por %p146, %p147
    %p149 = scmp.ne.s32.totalorder %s137, %s138
    %p150 = scmp.eq.s32.totalorder %s18, 1
    %p151 = por %p149, %p150
    %p153 = scmp.ne.s32.totalorder %s138, %s152
    %p154 = scmp.eq.s32.totalorder %s18, 0
    %p155 = por %p153, %p154
    %s156 = ssub.s32 %s12, %s19
    %p157 = scmp.eq.s32.totalorder %s156, 0
    %s159 = sadd.s32 %s158, 1
    %s160 = scalar_select %p157, %s158, %s159
    %p163 = pneg %p157
    %p164 = scmp.eq.s32.totalorder %s12, 1
    %p165 = por %p163, %p164
    %p166 = scmp.ne.s32.totalorder %s158, %s161
    %p167 = scmp.eq.s32.totalorder %s12, 0
    %p168 = por %p166, %p167
    %p169 = scmp.ne.s32.totalorder %s158, %s161
    %p170 = scmp.eq.s32.totalorder %s17, 1
    %p171 = por %p169, %p170
    %p172 = scmp.ne.s32.totalorder %s161, %s162
    %p173 = scmp.eq.s32.totalorder %s17, 0
    %p174 = por %p172, %p173
    %p175 = scmp.ne.s32.totalorder %s161, %s162
    %p176 = scmp.eq.s32.totalorder %s18, 1
    %p177 = por %p175, %p176
    %p179 = scmp.ne.s32.totalorder %s162, %s178
    %p180 = scmp.eq.s32.totalorder %s18, 0
    %p181 = por %p179, %p180
    %p182 = scmp.le.s32.totalorder 1, %s12
    %p183 = scmp.lt.s32.totalorder %s12, 3
    %p184 = pnand %p182, %p183
    %p185 = pneg %p184
    // Predicated region
    $region9: #{gat_ordered_deep_forward.3} parent=5 // pred_check
      _
    $region10: #{gat_ordered_deep_forward.3} parent=5 // pred_check_branch
      %187 = sbr.rel (%p184) target = $region12
    $region11: #{gat_ordered_deep_forward.3} parent=5 // pred_region
      %s188 = ssub.s32 %s12, 1
      // Predicated region
      $region13: #{gat_ordered_deep_forward.3} parent=11 // pred_check
        %p189 = pneg %p33
      $region14: #{gat_ordered_deep_forward.3} parent=11 // pred_check_branch
        %191 = sbr.rel (%p189) target = $region16
      $region15: #{gat_ordered_deep_forward.3} parent=11 // pred_region
        _
      $region16: #{gat_ordered_deep_forward.3} parent=11 // pred_fallthru
        _
      // Predicated region
      $region17: #{gat_ordered_deep_forward.3} parent=11 // pred_check
        %p192 = pneg %p106
      $region18: #{gat_ordered_deep_forward.3} parent=11 // pred_check_branch
        %194 = sbr.rel (%p192) target = $region20
      $region19: #{gat_ordered_deep_forward.3} parent=11 // pred_region
        _
      $region20: #{gat_ordered_deep_forward.3} parent=11 // pred_fallthru
        _
      // Predicated region
      $region21: #{gat_ordered_deep_forward.3} parent=11 // pred_check
        %p195 = pneg %p127
      $region22: #{gat_ordered_deep_forward.3} parent=11 // pred_check_branch
        %197 = sbr.rel (%p195) target = $region24
      $region23: #{gat_ordered_deep_forward.3} parent=11 // pred_region
        _
      $region24: #{gat_ordered_deep_forward.3} parent=11 // pred_fallthru
        _
      // Predicated region
      $region25: #{gat_ordered_deep_forward.3} parent=11 // pred_check
        %p198 = pneg %p148
      $region26: #{gat_ordered_deep_forward.3} parent=11 // pred_check_branch
        %200 = sbr.rel (%p198) target = $region28
      $region27: #{gat_ordered_deep_forward.3} parent=11 // pred_region
        _
      $region28: #{gat_ordered_deep_forward.3} parent=11 // pred_fallthru
        _
    $region12: #{gat_ordered_deep_forward.3} parent=5 // pred_fallthru
      _
    %p201 = scmp.lt.s32.totalorder %s12, 2
    // Predicated region
    $region29: #{gat_ordered_deep_forward.3} parent=5 // pred_check
      %p202 = pneg %p201
    $region30: #{gat_ordered_deep_forward.3} parent=5 // pred_check_branch
      %204 = sbr.rel (%p202) target = $region32
    $region31: #{gat_ordered_deep_forward.3} parent=5 // pred_region
      // Predicated region
      $region33: #{gat_ordered_deep_forward.3} parent=31 // pred_check
        %p205 = pneg %p53
      $region34: #{gat_ordered_deep_forward.3} parent=31 // pred_check_branch
        %207 = sbr.rel (%p205) target = $region36
      $region35: #{gat_ordered_deep_forward.3} parent=31 // pred_region
        %s208 = smul.u32 4, %s12
        %p209 = scmp.lt.s32.totalorder %s208, 7
        %s210 = scalar_select %p209, %s208, 7
        %s211 = smul.addr %s210, 8
        %s212 = scalar_lea.vmem %s1, %s211
        %s213 = smul.u32 4, %s12
      $region36: #{gat_ordered_deep_forward.3} parent=31 // pred_fallthru
        _
      // Predicated region
      $region37: #{gat_ordered_deep_forward.3} parent=31 // pred_check
        %p214 = pneg %p79
      $region38: #{gat_ordered_deep_forward.3} parent=31 // pred_check_branch
        %216 = sbr.rel (%p214) target = $region40
      $region39: #{gat_ordered_deep_forward.3} parent=31 // pred_region
        %s217 = smul.u32 4, %s12
        %p218 = scmp.lt.s32.totalorder %s217, 7
        %s219 = scalar_select %p218, %s217, 7
        %s220 = smul.addr %s219, 4
        %s221 = scalar_lea.vmem %s2, %s220
        %s222 = smul.u32 4, %s12
      $region40: #{gat_ordered_deep_forward.3} parent=31 // pred_fallthru
        _
    $region32: #{gat_ordered_deep_forward.3} parent=5 // pred_fallthru
      _
    %p223 = scmp.le.s32.totalorder 1, %s12
    %p224 = scmp.lt.s32.totalorder %s12, 3
    %p225 = pnand %p223, %p224
    %p226 = pneg %p225
    // Predicated region
    $region41: #{gat_ordered_deep_forward.3} parent=5 // pred_check
      _
    $region42: #{gat_ordered_deep_forward.3} parent=5 // pred_check_branch
      %228 = sbr.rel (%p225) target = $region44
    $region43: #{gat_ordered_deep_forward.3} parent=5 // pred_region
      %s229 = ssub.s32 %s12, 1
      %p230 = pneg %p33
      %p231 = pneg %p30
      %s232 = smul.u32 4, %s17
      %p233 = scmp.lt.s32.totalorder %s232, 7
      %s234 = scalar_select %p233, %s232, 7
      %s235 = smul.addr %s234, 8
      %s236 = scalar_lea.vmem %s1, %s235
      %p237 = pneg %p59
      %p238 = pneg %p56
      %s239 = smul.u32 4, %s17
      %p240 = scmp.lt.s32.totalorder %s239, 7
      %s241 = scalar_select %p240, %s239, 7
      %s242 = smul.addr %s241, 4
      %s243 = scalar_lea.vmem %s2, %s242
      %p244 = pneg %p85
      %p245 = pneg %p82
      %p246 = pneg %p106
      %p247 = pneg %p103
      %p248 = pneg %p127
      %p249 = pneg %p124
      %p250 = pneg %p148
      %p251 = pneg %p145
      %p252 = pneg %p174
      %p253 = pneg %p171
      %s254 = smul.u32 4, %s17
      %p255 = scmp.lt.s32.totalorder %s254, 7
      %s256 = scalar_select %p255, %s254, 7
      %s257 = smul.addr %s256, 8
      %s258 = scalar_lea.vmem %s6, %s257
      %s259 = smul.u32 4, %s17
      %p260 = scmp.lt.s32.totalorder %s259, 7
      %s261 = scalar_select %p260, %s259, 7
      %s262 = smul.addr %s261, 8
      %s263 = scalar_lea.vmem %s1, %s262
      %s264 = smul.u32 4, %s17
      %s265 = smul.u32 4, %s17
      %p266 = scmp.lt.s32.totalorder %s265, 7
      %s267 = scalar_select %p266, %s265, 7
      %s268 = smul.addr %s267, 4
      %s269 = scalar_lea.vmem %s2, %s268
      %s270 = smul.u32 4, %s17
      %s271 = smul.u32 4, %s17
      %p272 = scmp.lt.s32.totalorder %s271, 7
      %s273 = scalar_select %p272, %s271, 7
      %s274 = smul.addr %s273, 8
      %s275 = scalar_lea.vmem %s6, %s274
      %s276 = smul.u32 4, %s17
      %v280 = vld [vmem:[%s0] sm:$0xff]
      %v281 = vld [vmem:[%s0 + $0x8] sm:$0xff]
      %v282 = vld [vmem:[%s0 + $0x10] sm:$0xff]
      %v283 = vld [vmem:[%s0 + $0x18] sm:$0xff]
      %v284 = vld [vmem:[%s0 + $0x20] sm:$0xff]
      %v285 = vld [vmem:[%s0 + $0x28] sm:$0xff]
      %v286 = vld [vmem:[%s0 + $0x30] sm:$0xff]
      %v287 = vld [vmem:[%s0 + $0x38] sm:$0xff]
      %v288 = vpack.c.bf16 %v281, %v280
      %v289 = vpack.c.bf16 %v283, %v282
      %v290 = vpack.c.bf16 %v285, %v284
      %v291 = vpack.c.bf16 %v287, %v286
      %v292 = vld [vmem:[%s263] sm:$0xff]
      %v293 = vld [vmem:[%s263 + $0x8] sm:$0xff]
      %v294 = vld [vmem:[%s263 + $0x10] sm:$0xff]
      %v295 = vld [vmem:[%s263 + $0x18] sm:$0xff]
      %v296 = vpack.c.bf16 %v293, %v292
      %v297 = vpack.c.bf16 %v295, %v294
      %v298 = vld [vmem:[%s269] sm:$0xf]
      %v299 = vld [vmem:[%s269 + $0x4] sm:$0xf]
      %v300 = vld [vmem:[%s269 + $0x8] sm:$0xf]
      %v301 = vld [vmem:[%s269 + $0xc] sm:$0xf]
      %vm302 = vcmp.gt.bf16.partialorder %v298, 0
      %vm303 = vcmp.gt.bf16.partialorder %v299, 0
      %vm304 = vcmp.gt.bf16.partialorder %v300, 0
      %vm305 = vcmp.gt.bf16.partialorder %v301, 0
      %v306 = vld [vmem:[%s3] sm:$0xf]
      %v307 = vld [vmem:[%s3 + $0x4] sm:$0xf]
      %v308 = vld [vmem:[%s3 + $0x8] sm:$0xf]
      %v309 = vld [vmem:[%s3 + $0xc] sm:$0xf]
      %v310 = vld [vmem:[%s4] sm:$0x1]
      %v311 = vld [vmem:[%s5] sm:$0x1]
      %v316 = vunpack.c.l.b16 %v306
      %v317 = vunpack.c.l.b16 %v307
      %v318 = vunpack.c.l.b16 %v308
      %v319 = vunpack.c.l.b16 %v309
      %v320 = vpack.c.b16 %v317, %v316
      %v321 = vpack.c.b16 %v319, %v318
      %vm324 = vcmask 261120
      %v326 = vsel %vm324, %v288, 0
      %v329 = vsel %vm324, %v289, 0
      %v332 = vsel %vm324, %v290, 0
      %v335 = vsel %vm324, %v291, 0
      %337 = vmatprep.subr.bf16.mxu0 0
      %338 = vmatpush1.bf16.msra.mxu0 %v320
      %339 = vmatprep.subr.bf16.mxu0 0
      %340 = vmatpush1.bf16.msra.mxu0 %v321
      %341 = vmatprep.subr.bf16.mxu0 0
      %342 = vmatpush1.bf16.msra.mxu0 0
      %343 = vmatprep.subr.bf16.mxu0 0
      %344 = vmatpush1.bf16.msra.mxu0 0
      %345 = vmatprep.subr.bf16.mxu0 0
      %346 = vmatpush1.bf16.msra.mxu0 0
      %347 = vmatprep.subr.bf16.mxu0 0
      %348 = vmatpush1.bf16.msra.mxu0 0
      %349 = vmatprep.subr.bf16.mxu0 0
      %350 = vmatpush1.bf16.msra.mxu0 0
      %351 = vmatprep.subr.bf16.mxu0 0
      %352 = vmatpush1.bf16.msra.mxu0 0
      %353 = vmatprep.subr.bf16.mxu0 0
      %354 = vmatpush1.bf16.msra.mxu0 0
      %355 = vmatprep.subr.bf16.mxu0 0
      %356 = vmatpush1.bf16.msra.mxu0 0
      %357 = vmatprep.subr.bf16.mxu0 0
      %358 = vmatpush1.bf16.msra.mxu0 0
      %359 = vmatprep.subr.bf16.mxu0 0
      %360 = vmatpush1.bf16.msra.mxu0 0
      %361 = vmatprep.subr.bf16.mxu0 0
      %362 = vmatpush1.bf16.msra.mxu0 0
      %363 = vmatprep.subr.bf16.mxu0 0
      %364 = vmatpush1.bf16.msra.mxu0 0
      %365 = vmatprep.subr.bf16.mxu0 0
      %366 = vmatpush1.bf16.msra.mxu0 0
      %367 = vmatprep.subr.bf16.mxu0 0
      %368 = vmatpush1.bf16.msra.mxu0 0
      %369 = vmatprep.mubr.bf16.mxu0 0
      %370 = vmatmul.mubr.bf16.gmra.mrb[0].mxu0 %v326
      %v371 = vpop.f32.mrb[0].mxu0
      %v372 = vadd.f32 0.0, %v371
      %v373 = vpop.f32.mrb[0].mxu0
      %v374 = vpop.f32.mrb[0].mxu0
      %v375 = vadd.f32 0.0, %v374
      %v376 = vpop.f32.mrb[0].mxu0
      %377 = vmatprep.mubr.bf16.mxu0 0
      %378 = vmatmul.mubr.bf16.gmra.mrb[0].mxu0 %v329
      %v379 = vpop.f32.mrb[0].mxu0
      %v380 = vadd.f32 0.0, %v379
      %v381 = vpop.f32.mrb[0].mxu0
      %v382 = vpop.f32.mrb[0].mxu0
      %v383 = vadd.f32 0.0, %v382
      %v384 = vpop.f32.mrb[0].mxu0
      %385 = vmatprep.mubr.bf16.mxu0 0
      %386 = vmatmul.mubr.bf16.gmra.mrb[0].mxu0 %v332
      %v387 = vpop.f32.mrb[0].mxu0
      %v388 = vadd.f32 0.0, %v387
      %v389 = vpop.f32.mrb[0].mxu0
      %v390 = vpop.f32.mrb[0].mxu0
      %v391 = vadd.f32 0.0, %v390
      %v392 = vpop.f32.mrb[0].mxu0
      %393 = vmatprep.mubr.bf16.mxu0 0
      %394 = vmatmul.mubr.bf16.gmra.mrb[0].mxu0 %v335
      %v395 = vpop.f32.mrb[0].mxu0
      %v396 = vadd.f32 0.0, %v395
      %v397 = vpop.f32.mrb[0].mxu0
      %v398 = vpop.f32.mrb[0].mxu0
      %v399 = vadd.f32 0.0, %v398
      %v400 = vpop.f32.mrb[0].mxu0
      %401 = vdwg.mxu0
      %v403 = vsel %vm324, %v296, 0
      %v406 = vsel %vm324, %v297, 0
      %408 = vmatprep.subr.bf16.mxu0 0
      %409 = vmatpush1.bf16.msra.mxu0 %v320
      %410 = vmatprep.subr.bf16.mxu0 0
      %411 = vmatpush1.bf16.msra.mxu0 %v321
      %412 = vmatprep.subr.bf16.mxu0 0
      %413 = vmatpush1.bf16.msra.mxu0 0
      %414 = vmatprep.subr.bf16.mxu0 0
      %415 = vmatpush1.bf16.msra.mxu0 0
      %416 = vmatprep.subr.bf16.mxu0 0
      %417 = vmatpush1.bf16.msra.mxu0 0
      %418 = vmatprep.subr.bf16.mxu0 0
      %419 = vmatpush1.bf16.msra.mxu0 0
      %420 = vmatprep.subr.bf16.mxu0 0
      %421 = vmatpush1.bf16.msra.mxu0 0
      %422 = vmatprep.subr.bf16.mxu0 0
      %423 = vmatpush1.bf16.msra.mxu0 0
      %424 = vmatprep.subr.bf16.mxu0 0
      %425 = vmatpush1.bf16.msra.mxu0 0
      %426 = vmatprep.subr.bf16.mxu0 0
      %427 = vmatpush1.bf16.msra.mxu0 0
      %428 = vmatprep.subr.bf16.mxu0 0
      %429 = vmatpush1.bf16.msra.mxu0 0
      %430 = vmatprep.subr.bf16.mxu0 0
      %431 = vmatpush1.bf16.msra.mxu0 0
      %432 = vmatprep.subr.bf16.mxu0 0
      %433 = vmatpush1.bf16.msra.mxu0 0
      %434 = vmatprep.subr.bf16.mxu0 0
      %435 = vmatpush1.bf16.msra.mxu0 0
      %436 = vmatprep.subr.bf16.mxu0 0
      %437 = vmatpush1.bf16.msra.mxu0 0
      %438 = vmatprep.subr.bf16.mxu0 0
      %439 = vmatpush1.bf16.msra.mxu0 0
      %440 = vmatprep.mubr.bf16.mxu0 0
      %441 = vmatmul.mubr.bf16.gmra.mrb[0].mxu0 %v403
      %v442 = vpop.f32.mrb[0].mxu0
      %v443 = vadd.f32 0.0, %v442
      %v444 = vpop.f32.mrb[0].mxu0
      %v445 = vpop.f32.mrb[0].mxu0
      %v446 = vadd.f32 0.0, %v445
      %v447 = vpop.f32.mrb[0].mxu0
      %448 = vmatprep.mubr.bf16.mxu0 0
      %449 = vmatmul.mubr.bf16.gmra.mrb[0].mxu0 %v406
      %v450 = vpop.f32.mrb[0].mxu0
      %v451 = vadd.f32 0.0, %v450
      %v452 = vpop.f32.mrb[0].mxu0
      %v453 = vpop.f32.mrb[0].mxu0
      %v454 = vadd.f32 0.0, %v453
      %v455 = vpop.f32.mrb[0].mxu0
      %456 = vdwg.mxu0
      %v458 = vlaneseq
      %v459 = vshrl.u32 %v458, 7
      %v460 = vsub.s32 0, %v459
      %v461 = vrot.slane %v310, %v460
      %v463 = vmul.f32 %v443, %v461
      %v464 = vmul.f32 %v446, %v461
      %v465 = vmul.f32 %v451, %v461
      %v466 = vmul.f32 %v454, %v461
      %v467 = vsel %vm324, %v463, 0.0
      %468 = vadd.xlane.f32.xlu0 %v467
      %v469 = vpop.xlane.xlu0 %468
      %v470 = vsel %vm324, %v464, 0.0
      %471 = vadd.xlane.f32.xlu0 %v470
      %v472 = vpop.xlane.xlu0 %471
      %v473 = vsel %vm324, %v465, 0.0
      %474 = vadd.xlane.f32.xlu0 %v473
      %v475 = vpop.xlane.xlu0 %474
      %v476 = vsel %vm324, %v466, 0.0
      %477 = vadd.xlane.f32.xlu0 %v476
      %v478 = vpop.xlane.xlu0 %477
      %v480 = vsel %vm324, %v311, 0
      %v483 = vsel %vm324, %v372, 0
      %v486 = vsel %vm324, %v375, 0
      %v489 = vsel %vm324, %v380, 0
      %v492 = vsel %vm324, %v383, 0
      %v495 = vsel %vm324, %v388, 0
      %v498 = vsel %vm324, %v391, 0
      %v501 = vsel %vm324, %v396, 0
      %v504 = vsel %vm324, %v399, 0
      %506 = vmatprep.subr.mxu0 0.0
      %507 = vmatpush1.xpose.msra.mxu0 %v483
      %508 = vmatprep.subr.mxu0 0.0
      %509 = vmatpush1.xpose.msra.mxu0 %v486
      %510 = vmatprep.subr.mxu0 0.0
      %511 = vmatpush1.xpose.msra.mxu0 %v489
      %512 = vmatprep.subr.mxu0 0.0
      %513 = vmatpush1.xpose.msra.mxu0 %v492
      %514 = vmatprep.subr.mxu0 0.0
      %515 = vmatpush1.xpose.msra.mxu0 %v495
      %516 = vmatprep.subr.mxu0 0.0
      %517 = vmatpush1.xpose.msra.mxu0 %v498
      %518 = vmatprep.subr.mxu0 0.0
      %519 = vmatpush1.xpose.msra.mxu0 %v501
      %520 = vmatprep.subr.mxu0 0.0
      %521 = vmatpush1.xpose.msra.mxu0 %v504
      %522 = vmatprep.subr.mxu0 0.0
      %523 = vmatpush1.xpose.msra.mxu0 0.0
      %524 = vmatprep.subr.mxu0 0.0
      %525 = vmatpush1.xpose.msra.mxu0 0.0
      %526 = vmatprep.subr.mxu0 0.0
      %527 = vmatpush1.xpose.msra.mxu0 0.0
      %528 = vmatprep.subr.mxu0 0.0
      %529 = vmatpush1.xpose.msra.mxu0 0.0
      %530 = vmatprep.subr.mxu0 0.0
      %531 = vmatpush1.xpose.msra.mxu0 0.0
      %532 = vmatprep.subr.mxu0 0.0
      %533 = vmatpush1.xpose.msra.mxu0 0.0
      %534 = vmatprep.subr.mxu0 0.0
      %535 = vmatpush1.xpose.msra.mxu0 0.0
      %536 = vmatprep.subr.mxu0 0.0
      %537 = vmatpush1.xpose.msra.mxu0 0.0
      %538 = vmatprep.subr.mxu0 0.0
      %539 = vmatpush1.xpose.msra.mxu0 0.0
      %540 = vmatprep.subr.mxu0 0.0
      %541 = vmatpush1.xpose.msra.mxu0 0.0
      %542 = vmatprep.subr.mxu0 0.0
      %543 = vmatpush1.xpose.msra.mxu0 0.0
      %544 = vmatprep.subr.mxu0 0.0
      %545 = vmatpush1.xpose.msra.mxu0 0.0
      %546 = vmatprep.subr.mxu0 0.0
      %547 = vmatpush1.xpose.msra.mxu0 0.0
      %548 = vmatprep.subr.mxu0 0.0
      %549 = vmatpush1.xpose.msra.mxu0 0.0
      %550 = vmatprep.subr.mxu0 0.0
      %551 = vmatpush1.xpose.msra.mxu0 0.0
      %552 = vmatprep.subr.mxu0 0.0
      %553 = vmatpush1.xpose.msra.mxu0 0.0
      %554 = vmatprep.subr.mxu0 0.0
      %555 = vmatpush1.xpose.msra.mxu0 0.0
      %556 = vmatprep.subr.mxu0 0.0
      %557 = vmatpush1.xpose.msra.mxu0 0.0
      %558 = vmatprep.subr.mxu0 0.0
      %559 = vmatpush1.xpose.msra.mxu0 0.0
      %560 = vmatprep.subr.mxu0 0.0
      %561 = vmatpush1.xpose.msra.mxu0 0.0
      %562 = vmatprep.subr.mxu0 0.0
      %563 = vmatpush1.xpose.msra.mxu0 0.0
      %564 = vmatprep.subr.mxu0 0.0
      %565 = vmatpush1.xpose.msra.mxu0 0.0
      %566 = vmatprep.subr.mxu0 0.0
      %567 = vmatpush1.xpose.msra.mxu0 0.0
      %568 = vmatprep.subr.mxu0 0.0
      %569 = vmatpush1.xpose.msra.mxu0 0.0
      %570 = vmatprep.mubr.f32.mxu0 0.0
      %571 = vmatmul.mubr.f32.gmra.mrb[0].mxu0 %v480
      %v572 = vpop.f32.mrb[0].mxu0
      %v573 = vadd.f32 0.0, %v572
      %v574 = vpop.f32.mrb[0].mxu0
      %575 = vdwg.mxu0
      %v576 = vlaneseq
      %v577 = vshrl.u32 %v576, 7
      %v578 = vsub.s32 0, %v577
      %v579 = vrot.slane %v573, %v578
      %v580 = vadd.f32 %v469, %v579
      %v581 = vadd.f32 %v472, %v579
      %v582 = vadd.f32 %v475, %v579
      %v583 = vadd.f32 %v478, %v579
      %vm584 = vcmp.gt.f32.partialorder %v580, 0.0
      %vm585 = vcmp.gt.f32.partialorder %v581, 0.0
      %vm586 = vcmp.gt.f32.partialorder %v582, 0.0
      %vm587 = vcmp.gt.f32.partialorder %v583, 0.0
      %v588 = vmul.f32 %v580, 0.2
      %v589 = vmul.f32 %v581, 0.2
      %v590 = vmul.f32 %v582, 0.2
      %v591 = vmul.f32 %v583, 0.2
      %v592 = vsel %vm584, %v580, %v588
      %v593 = vsel %vm585, %v581, %v589
      %v594 = vsel %vm586, %v582, %v590
      %v595 = vsel %vm587, %v583, %v591
      %v596 = vsel %vm302, 65537, 0
      %v597 = vsel %vm303, 65537, 0
      %v598 = vsel %vm304, 65537, 0
      %v599 = vsel %vm305, 65537, 0
      %v600 = vunpack.c.l.b16 %v596
      %v601 = vunpack.c.l.b16 %v597
      %v602 = vunpack.c.l.b16 %v598
      %v603 = vunpack.c.l.b16 %v599
      %vm604 = vcmp.ne.s32.totalorder %v600, 0
      %vm605 = vcmp.ne.s32.totalorder %v601, 0
      %vm606 = vcmp.ne.s32.totalorder %v602, 0
      %vm607 = vcmp.ne.s32.totalorder %v603, 0
      %v608 = vsel %vm604, %v592, -9e+15
      %v609 = vsel %vm605, %v593, -9e+15
      %v610 = vsel %vm606, %v594, -9e+15
      %v611 = vsel %vm607, %v595, -9e+15
      %vm612 = vcmask 523264
      %v613 = vsel %vm612, %v608, -inf
      %614 = vmax.xlane.f32.xlu0 %v613
      %v615 = vpop.xlane.xlu0 %614
      %v616 = vsel %vm612, %v609, -inf
      %617 = vmax.xlane.f32.xlu0 %v616
      %v618 = vpop.xlane.xlu0 %617
      %v619 = vsel %vm612, %v610, -inf
      %620 = vmax.xlane.f32.xlu0 %v619
      %v621 = vpop.xlane.xlu0 %620
      %v622 = vsel %vm612, %v611, -inf
      %623 = vmax.xlane.f32.xlu0 %v622
      %v624 = vpop.xlane.xlu0 %623
      %v625 = vsub.f32 %v608, %v615
      %v626 = vsub.f32 %v609, %v618
      %v627 = vsub.f32 %v610, %v621
      %v628 = vsub.f32 %v611, %v624
      %v629 = vmul.f32 %v625, 1.442695
      %v630 = vpow.pop %v629
      %v631 = vmul.f32 %v626, 1.442695
      %v632 = vpow.pop %v631
      %v633 = vmul.f32 %v627, 1.442695
      %v634 = vpow.pop %v633
      %v635 = vmul.f32 %v628, 1.442695
      %v636 = vpow.pop %v635
      %v637 = vsel %vm612, %v630, 0.0
      %638 = vadd.xlane.f32.xlu0 %v637
      %v639 = vpop.xlane.xlu0 %638
      %v640 = vsel %vm612, %v632, 0.0
      %641 = vadd.xlane.f32.xlu0 %v640
      %v642 = vpop.xlane.xlu0 %641
      %v643 = vsel %vm612, %v634, 0.0
      %644 = vadd.xlane.f32.xlu0 %v643
      %v645 = vpop.xlane.xlu0 %644
      %v646 = vsel %vm612, %v636, 0.0
      %647 = vadd.xlane.f32.xlu0 %v646
      %v648 = vpop.xlane.xlu0 %647
      %v649 = vrcp.pop %v639
      %v650 = vrcp.pop %v642
      %v651 = vrcp.pop %v645
      %v652 = vrcp.pop %v648
      %v653 = vmul.f32 %v630, %v649
      %v654 = vmul.f32 %v632, %v650
      %v655 = vmul.f32 %v634, %v651
      %v656 = vmul.f32 %v636, %v652
      %v657 = vpack.c.bf16 %v654, %v653
      %v658 = vpack.c.bf16 %v656, %v655
      %v659 = vpack.c.bf16 %v375, %v372
      %v660 = vpack.c.bf16 %v383, %v380
      %v661 = vpack.c.bf16 %v391, %v388
      %v662 = vpack.c.bf16 %v399, %v396
      %v664 = vsel %vm612, %v657, 0
      %v667 = vsel %vm612, %v658, 0
      %669 = vmatprep.subr.bf16.mxu0 0
      %670 = vmatpush1.bf16.msra.mxu0 %v659
      %671 = vmatprep.subr.bf16.mxu0 0
      %672 = vmatpush1.bf16.msra.mxu0 %v660
      %673 = vmatprep.subr.bf16.mxu0 0
      %674 = vmatpush1.bf16.msra.mxu0 %v661
      %675 = vmatprep.subr.bf16.mxu0 0
      %676 = vmatpush1.bf16.msra.mxu0 %v662
      %677 = vmatprep.subr.bf16.mxu0 0
      %678 = vmatpush1.bf16.msra.mxu0 0
      %679 = vmatprep.subr.bf16.mxu0 0
      %680 = vmatpush1.bf16.msra.mxu0 0
      %681 = vmatprep.subr.bf16.mxu0 0
      %682 = vmatpush1.bf16.msra.mxu0 0
      %683 = vmatprep.subr.bf16.mxu0 0
      %684 = vmatpush1.bf16.msra.mxu0 0
      %685 = vmatprep.subr.bf16.mxu0 0
      %686 = vmatpush1.bf16.msra.mxu0 0
      %687 = vmatprep.subr.bf16.mxu0 0
      %688 = vmatpush1.bf16.msra.mxu0 0
      %689 = vmatprep.subr.bf16.mxu0 0
      %690 = vmatpush1.bf16.msra.mxu0 0
      %691 = vmatprep.subr.bf16.mxu0 0
      %692 = vmatpush1.bf16.msra.mxu0 0
      %693 = vmatprep.subr.bf16.mxu0 0
      %694 = vmatpush1.bf16.msra.mxu0 0
      %695 = vmatprep.subr.bf16.mxu0 0
      %696 = vmatpush1.bf16.msra.mxu0 0
      %697 = vmatprep.subr.bf16.mxu0 0
      %698 = vmatpush1.bf16.msra.mxu0 0
      %699 = vmatprep.subr.bf16.mxu0 0
      %700 = vmatpush1.bf16.msra.mxu0 0
      %701 = vmatprep.mubr.bf16.mxu0 0
      %702 = vmatmul.mubr.bf16.gmra.mrb[0].mxu0 %v664
      %v703 = vpop.f32.mrb[0].mxu0
      %v704 = vadd.f32 0.0, %v703
      %v705 = vpop.f32.mrb[0].mxu0
      %v706 = vpop.f32.mrb[0].mxu0
      %v707 = vadd.f32 0.0, %v706
      %v708 = vpop.f32.mrb[0].mxu0
      %709 = vmatprep.mubr.bf16.mxu0 0
      %710 = vmatmul.mubr.bf16.gmra.mrb[0].mxu0 %v667
      %v711 = vpop.f32.mrb[0].mxu0
      %v712 = vadd.f32 0.0, %v711
      %v713 = vpop.f32.mrb[0].mxu0
      %v714 = vpop.f32.mrb[0].mxu0
      %v715 = vadd.f32 0.0, %v714
      %v716 = vpop.f32.mrb[0].mxu0
      %717 = vdwg.mxu0
      %s718 = scalar_lea.vmem %s3, 16
      %v719 = vld [vmem:[%s718] sm:$0xf]
      %v720 = vld [vmem:[%s718 + $0x4] sm:$0xf]
      %v721 = vld [vmem:[%s718 + $0x8] sm:$0xf]
      %v722 = vld [vmem:[%s718 + $0xc] sm:$0xf]
      %s723 = scalar_lea.vmem %s4, 1
      %v724 = vld [vmem:[%s723] sm:$0x1]
      %s725 = scalar_lea.vmem %s5, 1
      %v726 = vld [vmem:[%s725] sm:$0x1]
      %v731 = vunpack.c.l.b16 %v719
      %v732 = vunpack.c.l.b16 %v720
      %v733 = vunpack.c.l.b16 %v721
      %v734 = vunpack.c.l.b16 %v722
      %v735 = vpack.c.b16 %v732, %v731
      %v736 = vpack.c.b16 %v734, %v733
      %739 = vmatprep.subr.bf16.mxu0 0
      %740 = vmatpush1.bf16.msra.mxu0 %v735
      %741 = vmatprep.subr.bf16.mxu0 0
      %742 = vmatpush1.bf16.msra.mxu0 %v736
      %743 = vmatprep.subr.bf16.mxu0 0
      %744 = vmatpush1.bf16.msra.mxu0 0
      %745 = vmatprep.subr.bf16.mxu0 0
      %746 = vmatpush1.bf16.msra.mxu0 0
      %747 = vmatprep.subr.bf16.mxu0 0
      %748 = vmatpush1.bf16.msra.mxu0 0
      %749 = vmatprep.subr.bf16.mxu0 0
      %750 = vmatpush1.bf16.msra.mxu0 0
      %751 = vmatprep.subr.bf16.mxu0 0
      %752 = vmatpush1.bf16.msra.mxu0 0
      %753 = vmatprep.subr.bf16.mxu0 0
      %754 = vmatpush1.bf16.msra.mxu0 0
      %755 = vmatprep.subr.bf16.mxu0 0
      %756 = vmatpush1.bf16.msra.mxu0 0
      %757 = vmatprep.subr.bf16.mxu0 0
      %758 = vmatpush1.bf16.msra.mxu0 0
      %759 = vmatprep.subr.bf16.mxu0 0
      %760 = vmatpush1.bf16.msra.mxu0 0
      %761 = vmatprep.subr.bf16.mxu0 0
      %762 = vmatpush1.bf16.msra.mxu0 0
      %763 = vmatprep.subr.bf16.mxu0 0
      %764 = vmatpush1.bf16.msra.mxu0 0
      %765 = vmatprep.subr.bf16.mxu0 0
      %766 = vmatpush1.bf16.msra.mxu0 0
      %767 = vmatprep.subr.bf16.mxu0 0
      %768 = vmatpush1.bf16.msra.mxu0 0
      %769 = vmatprep.subr.bf16.mxu0 0
      %770 = vmatpush1.bf16.msra.mxu0 0
      %771 = vmatprep.mubr.bf16.mxu0 0
      %772 = vmatmul.mubr.bf16.gmra.mrb[0].mxu0 %v326
      %v773 = vpop.f32.mrb[0].mxu0
      %v774 = vadd.f32 0.0, %v773
      %v775 = vpop.f32.mrb[0].mxu0
      %v776 = vpop.f32.mrb[0].mxu0
      %v777 = vadd.f32 0.0, %v776
      %v778 = vpop.f32.mrb[0].mxu0
      %779 = vmatprep.mubr.bf16.mxu0 0
      %780 = vmatmul.mubr.bf16.gmra.mrb[0].mxu0 %v329
      %v781 = vpop.f32.mrb[0].mxu0
      %v782 = vadd.f32 0.0, %v781
      %v783 = vpop.f32.mrb[0].mxu0
      %v784 = vpop.f32.mrb[0].mxu0
      %v785 = vadd.f32 0.0, %v784
      %v786 = vpop.f32.mrb[0].mxu0
      %787 = vmatprep.mubr.bf16.mxu0 0
      %788 = vmatmul.mubr.bf16.gmra.mrb[0].mxu0 %v332
      %v789 = vpop.f32.mrb[0].mxu0
      %v790 = vadd.f32 0.0, %v789
      %v791 = vpop.f32.mrb[0].mxu0
      %v792 = vpop.f32.mrb[0].mxu0
      %v793 = vadd.f32 0.0, %v792
      %v794 = vpop.f32.mrb[0].mxu0
      %795 = vmatprep.mubr.bf16.mxu0 0
      %796 = vmatmul.mubr.bf16.gmra.mrb[0].mxu0 %v335
      %v797 = vpop.f32.mrb[0].mxu0
      %v798 = vadd.f32 0.0, %v797
      %v799 = vpop.f32.mrb[0].mxu0
      %v800 = vpop.f32.mrb[0].mxu0
      %v801 = vadd.f32 0.0, %v800
      %v802 = vpop.f32.mrb[0].mxu0
      %803 = vdwg.mxu0
      %804 = vmatprep.subr.bf16.mxu0 0
      %805 = vmatpush1.bf16.msra.mxu0 %v735
      %806 = vmatprep.subr.bf16.mxu0 0
      %807 = vmatpush1.bf16.msra.mxu0 %v736
      %808 = vmatprep.subr.bf16.mxu0 0
      %809 = vmatpush1.bf16.msra.mxu0 0
      %810 = vmatprep.subr.bf16.mxu0 0
      %811 = vmatpush1.bf16.msra.mxu0 0
      %812 = vmatprep.subr.bf16.mxu0 0
      %813 = vmatpush1.bf16.msra.mxu0 0
      %814 = vmatprep.subr.bf16.mxu0 0
      %815 = vmatpush1.bf16.msra.mxu0 0
      %816 = vmatprep.subr.bf16.mxu0 0
      %817 = vmatpush1.bf16.msra.mxu0 0
      %818 = vmatprep.subr.bf16.mxu0 0
      %819 = vmatpush1.bf16.msra.mxu0 0
      %820 = vmatprep.subr.bf16.mxu0 0
      %821 = vmatpush1.bf16.msra.mxu0 0
      %822 = vmatprep.subr.bf16.mxu0 0
      %823 = vmatpush1.bf16.msra.mxu0 0
      %824 = vmatprep.subr.bf16.mxu0 0
      %825 = vmatpush1.bf16.msra.mxu0 0
      %826 = vmatprep.subr.bf16.mxu0 0
      %827 = vmatpush1.bf16.msra.mxu0 0
      %828 = vmatprep.subr.bf16.mxu0 0
      %829 = vmatpush1.bf16.msra.mxu0 0
      %830 = vmatprep.subr.bf16.mxu0 0
      %831 = vmatpush1.bf16.msra.mxu0 0
      %832 = vmatprep.subr.bf16.mxu0 0
      %833 = vmatpush1.bf16.msra.mxu0 0
      %834 = vmatprep.subr.bf16.mxu0 0
      %835 = vmatpush1.bf16.msra.mxu0 0
      %836 = vmatprep.mubr.bf16.mxu0 0
      %837 = vmatmul.mubr.bf16.gmra.mrb[0].mxu0 %v403
      %v838 = vpop.f32.mrb[0].mxu0
      %v839 = vadd.f32 0.0, %v838
      %v840 = vpop.f32.mrb[0].mxu0
      %v841 = vpop.f32.mrb[0].mxu0
      %v842 = vadd.f32 0.0, %v841
      %v843 = vpop.f32.mrb[0].mxu0
      %844 = vmatprep.mubr.bf16.mxu0 0
      %845 = vmatmul.mubr.bf16.gmra.mrb[0].mxu0 %v406
      %v846 = vpop.f32.mrb[0].mxu0
      %v847 = vadd.f32 0.0, %v846
      %v848 = vpop.f32.mrb[0].mxu0
      %v849 = vpop.f32.mrb[0].mxu0
      %v850 = vadd.f32 0.0, %v849
      %v851 = vpop.f32.mrb[0].mxu0
      %852 = vdwg.mxu0
      %v854 = vlaneseq
      %v855 = vshrl.u32 %v854, 7
      %v856 = vsub.s32 0, %v855
      %v857 = vrot.slane %v724, %v856
      %v859 = vmul.f32 %v839, %v857
      %v860 = vmul.f32 %v842, %v857
      %v861 = vmul.f32 %v847, %v857
      %v862 = vmul.f32 %v850, %v857
      %v863 = vsel %vm324, %v859, 0.0
      %864 = vadd.xlane.f32.xlu0 %v863
      %v865 = vpop.xlane.xlu0 %864
      %v866 = vsel %vm324, %v860, 0.0
      %867 = vadd.xlane.f32.xlu0 %v866
      %v868 = vpop.xlane.xlu0 %867
      %v869 = vsel %vm324, %v861, 0.0
      %870 = vadd.xlane.f32.xlu0 %v869
      %v871 = vpop.xlane.xlu0 %870
      %v872 = vsel %vm324, %v862, 0.0
      %873 = vadd.xlane.f32.xlu0 %v872
      %v874 = vpop.xlane.xlu0 %873
      %v876 = vsel %vm324, %v726, 0
      %v879 = vsel %vm324, %v774, 0
      %v882 = vsel %vm324, %v777, 0
      %v885 = vsel %vm324, %v782, 0
      %v888 = vsel %vm324, %v785, 0
      %v891 = vsel %vm324, %v790, 0
      %v894 = vsel %vm324, %v793, 0
      %v897 = vsel %vm324, %v798, 0
      %v900 = vsel %vm324, %v801, 0
      %902 = vmatprep.subr.mxu0 0.0
      %903 = vmatpush1.xpose.msra.mxu0 %v879
      %904 = vmatprep.subr.mxu0 0.0
      %905 = vmatpush1.xpose.msra.mxu0 %v882
      %906 = vmatprep.subr.mxu0 0.0
      %907 = vmatpush1.xpose.msra.mxu0 %v885
      %908 = vmatprep.subr.mxu0 0.0
      %909 = vmatpush1.xpose.msra.mxu0 %v888
      %910 = vmatprep.subr.mxu0 0.0
      %911 = vmatpush1.xpose.msra.mxu0 %v891
      %912 = vmatprep.subr.mxu0 0.0
      %913 = vmatpush1.xpose.msra.mxu0 %v894
      %914 = vmatprep.subr.mxu0 0.0
      %915 = vmatpush1.xpose.msra.mxu0 %v897
      %916 = vmatprep.subr.mxu0 0.0
      %917 = vmatpush1.xpose.msra.mxu0 %v900
      %918 = vmatprep.subr.mxu0 0.0
      %919 = vmatpush1.xpose.msra.mxu0 0.0
      %920 = vmatprep.subr.mxu0 0.0
      %921 = vmatpush1.xpose.msra.mxu0 0.0
      %922 = vmatprep.subr.mxu0 0.0
      %923 = vmatpush1.xpose.msra.mxu0 0.0
      %924 = vmatprep.subr.mxu0 0.0
      %925 = vmatpush1.xpose.msra.mxu0 0.0
      %926 = vmatprep.subr.mxu0 0.0
      %927 = vmatpush1.xpose.msra.mxu0 0.0
      %928 = vmatprep.subr.mxu0 0.0
      %929 = vmatpush1.xpose.msra.mxu0 0.0
      %930 = vmatprep.subr.mxu0 0.0
      %931 = vmatpush1.xpose.msra.mxu0 0.0
      %932 = vmatprep.subr.mxu0 0.0
      %933 = vmatpush1.xpose.msra.mxu0 0.0
      %934 = vmatprep.subr.mxu0 0.0
      %935 = vmatpush1.xpose.msra.mxu0 0.0
      %936 = vmatprep.subr.mxu0 0.0
      %937 = vmatpush1.xpose.msra.mxu0 0.0
      %938 = vmatprep.subr.mxu0 0.0
      %939 = vmatpush1.xpose.msra.mxu0 0.0
      %940 = vmatprep.subr.mxu0 0.0
      %941 = vmatpush1.xpose.msra.mxu0 0.0
      %942 = vmatprep.subr.mxu0 0.0
      %943 = vmatpush1.xpose.msra.mxu0 0.0
      %944 = vmatprep.subr.mxu0 0.0
      %945 = vmatpush1.xpose.msra.mxu0 0.0
      %946 = vmatprep.subr.mxu0 0.0
      %947 = vmatpush1.xpose.msra.mxu0 0.0
      %948 = vmatprep.subr.mxu0 0.0
      %949 = vmatpush1.xpose.msra.mxu0 0.0
      %950 = vmatprep.subr.mxu0 0.0
      %951 = vmatpush1.xpose.msra.mxu0 0.0
      %952 = vmatprep.subr.mxu0 0.0
      %953 = vmatpush1.xpose.msra.mxu0 0.0
      %954 = vmatprep.subr.mxu0 0.0
      %955 = vmatpush1.xpose.msra.mxu0 0.0
      %956 = vmatprep.subr.mxu0 0.0
      %957 = vmatpush1.xpose.msra.mxu0 0.0
      %958 = vmatprep.subr.mxu0 0.0
      %959 = vmatpush1.xpose.msra.mxu0 0.0
      %960 = vmatprep.subr.mxu0 0.0
      %961 = vmatpush1.xpose.msra.mxu0 0.0
      %962 = vmatprep.subr.mxu0 0.0
      %963 = vmatpush1.xpose.msra.mxu0 0.0
      %964 = vmatprep.subr.mxu0 0.0
      %965 = vmatpush1.xpose.msra.mxu0 0.0
      %966 = vmatprep.mubr.f32.mxu0 0.0
      %967 = vmatmul.mubr.f32.gmra.mrb[0].mxu0 %v876
      %v968 = vpop.f32.mrb[0].mxu0
      %v969 = vadd.f32 0.0, %v968
      %v970 = vpop.f32.mrb[0].mxu0
      %971 = vdwg.mxu0
      %v972 = vlaneseq
      %v973 = vshrl.u32 %v972, 7
      %v974 = vsub.s32 0, %v973
      %v975 = vrot.slane %v969, %v974
      %v976 = vadd.f32 %v865, %v975
      %v977 = vadd.f32 %v868, %v975
      %v978 = vadd.f32 %v871, %v975
      %v979 = vadd.f32 %v874, %v975
      %vm980 = vcmp.gt.f32.partialorder %v976, 0.0
      %vm981 = vcmp.gt.f32.partialorder %v977, 0.0
      %vm982 = vcmp.gt.f32.partialorder %v978, 0.0
      %vm983 = vcmp.gt.f32.partialorder %v979, 0.0
      %v984 = vmul.f32 %v976, 0.2
      %v985 = vmul.f32 %v977, 0.2
      %v986 = vmul.f32 %v978, 0.2
      %v987 = vmul.f32 %v979, 0.2
      %v988 = vsel %vm980, %v976, %v984
      %v989 = vsel %vm981, %v977, %v985
      %v990 = vsel %vm982, %v978, %v986
      %v991 = vsel %vm983, %v979, %v987
      %v992 = vsel %vm604, %v988, -9e+15
      %v993 = vsel %vm605, %v989, -9e+15
      %v994 = vsel %vm606, %v990, -9e+15
      %v995 = vsel %vm607, %v991, -9e+15
      %v996 = vsel %vm612, %v992, -inf
      %997 = vmax.xlane.f32.xlu0 %v996
      %v998 = vpop.xlane.xlu0 %997
      %v999 = vsel %vm612, %v993, -inf
      %1000 = vmax.xlane.f32.xlu0 %v999
      %v1001 = vpop.xlane.xlu0 %1000
      %v1002 = vsel %vm612, %v994, -inf
      %1003 = vmax.xlane.f32.xlu0 %v1002
      %v1004 = vpop.xlane.xlu0 %1003
      %v1005 = vsel %vm612, %v995, -inf
      %1006 = vmax.xlane.f32.xlu0 %v1005
      %v1007 = vpop.xlane.xlu0 %1006
      %v1008 = vsub.f32 %v992, %v998
      %v1009 = vsub.f32 %v993, %v1001
      %v1010 = vsub.f32 %v994, %v1004
      %v1011 = vsub.f32 %v995, %v1007
      %v1012 = vmul.f32 %v1008, 1.442695
      %v1013 = vpow.pop %v1012
      %v1014 = vmul.f32 %v1009, 1.442695
      %v1015 = vpow.pop %v1014
      %v1016 = vmul.f32 %v1010, 1.442695
      %v1017 = vpow.pop %v1016
      %v1018 = vmul.f32 %v1011, 1.442695
      %v1019 = vpow.pop %v1018
      %v1020 = vsel %vm612, %v1013, 0.0
      %1021 = vadd.xlane.f32.xlu0 %v1020
      %v1022 = vpop.xlane.xlu0 %1021
      %v1023 = vsel %vm612, %v1015, 0.0
      %1024 = vadd.xlane.f32.xlu0 %v1023
      %v1025 = vpop.xlane.xlu0 %1024
      %v1026 = vsel %vm612, %v1017, 0.0
      %1027 = vadd.xlane.f32.xlu0 %v1026
      %v1028 = vpop.xlane.xlu0 %1027
      %v1029 = vsel %vm612, %v1019, 0.0
      %1030 = vadd.xlane.f32.xlu0 %v1029
      %v1031 = vpop.xlane.xlu0 %1030
      %v1032 = vrcp.pop %v1022
      %v1033 = vrcp.pop %v1025
      %v1034 = vrcp.pop %v1028
      %v1035 = vrcp.pop %v1031
      %v1036 = vmul.f32 %v1013, %v1032
      %v1037 = vmul.f32 %v1015, %v1033
      %v1038 = vmul.f32 %v1017, %v1034
      %v1039 = vmul.f32 %v1019, %v1035
      %v1040 = vpack.c.bf16 %v1037, %v1036
      %v1041 = vpack.c.bf16 %v1039, %v1038
      %v1042 = vpack.c.bf16 %v777, %v774
      %v1043 = vpack.c.bf16 %v785, %v782
      %v1044 = vpack.c.bf16 %v793, %v790
      %v1045 = vpack.c.bf16 %v801, %v798
      %v1047 = vsel %vm612, %v1040, 0
      %v1050 = vsel %vm612, %v1041, 0
      %1052 = vmatprep.subr.bf16.mxu0 0
      %1053 = vmatpush1.bf16.msra.mxu0 %v1042
      %1054 = vmatprep.subr.bf16.mxu0 0
      %1055 = vmatpush1.bf16.msra.mxu0 %v1043
      %1056 = vmatprep.subr.bf16.mxu0 0
      %1057 = vmatpush1.bf16.msra.mxu0 %v1044
      %1058 = vmatprep.subr.bf16.mxu0 0
      %1059 = vmatpush1.bf16.msra.mxu0 %v1045
      %1060 = vmatprep.subr.bf16.mxu0 0
      %1061 = vmatpush1.bf16.msra.mxu0 0
      %1062 = vmatprep.subr.bf16.mxu0 0
      %1063 = vmatpush1.bf16.msra.mxu0 0
      %1064 = vmatprep.subr.bf16.mxu0 0
      %1065 = vmatpush1.bf16.msra.mxu0 0
      %1066 = vmatprep.subr.bf16.mxu0 0
      %1067 = vmatpush1.bf16.msra.mxu0 0
      %1068 = vmatprep.subr.bf16.mxu0 0
      %1069 = vmatpush1.bf16.msra.mxu0 0
      %1070 = vmatprep.subr.bf16.mxu0 0
      %1071 = vmatpush1.bf16.msra.mxu0 0
      %1072 = vmatprep.subr.bf16.mxu0 0
      %1073 = vmatpush1.bf16.msra.mxu0 0
      %1074 = vmatprep.subr.bf16.mxu0 0
      %1075 = vmatpush1.bf16.msra.mxu0 0
      %1076 = vmatprep.subr.bf16.mxu0 0
      %1077 = vmatpush1.bf16.msra.mxu0 0
      %1078 = vmatprep.subr.bf16.mxu0 0
      %1079 = vmatpush1.bf16.msra.mxu0 0
      %1080 = vmatprep.subr.bf16.mxu0 0
      %1081 = vmatpush1.bf16.msra.mxu0 0
      %1082 = vmatprep.subr.bf16.mxu0 0
      %1083 = vmatpush1.bf16.msra.mxu0 0
      %1084 = vmatprep.mubr.bf16.mxu0 0
      %1085 = vmatmul.mubr.bf16.gmra.mrb[0].mxu0 %v1047
      %v1086 = vpop.f32.mrb[0].mxu0
      %v1087 = vadd.f32 0.0, %v1086
      %v1088 = vpop.f32.mrb[0].mxu0
      %v1089 = vpop.f32.mrb[0].mxu0
      %v1090 = vadd.f32 0.0, %v1089
      %v1091 = vpop.f32.mrb[0].mxu0
      %1092 = vmatprep.mubr.bf16.mxu0 0
      %1093 = vmatmul.mubr.bf16.gmra.mrb[0].mxu0 %v1050
      %v1094 = vpop.f32.mrb[0].mxu0
      %v1095 = vadd.f32 0.0, %v1094
      %v1096 = vpop.f32.mrb[0].mxu0
      %v1097 = vpop.f32.mrb[0].mxu0
      %v1098 = vadd.f32 0.0, %v1097
      %v1099 = vpop.f32.mrb[0].mxu0
      %1100 = vdwg.mxu0
      %s1101 = scalar_lea.vmem %s3, 32
      %v1102 = vld [vmem:[%s1101] sm:$0xf]
      %v1103 = vld [vmem:[%s1101 + $0x4] sm:$0xf]
      %v1104 = vld [vmem:[%s1101 + $0x8] sm:$0xf]
      %v1105 = vld [vmem:[%s1101 + $0xc] sm:$0xf]
      %s1106 = scalar_lea.vmem %s4, 2
      %v1107 = vld [vmem:[%s1106] sm:$0x1]
      %s1108 = scalar_lea.vmem %s5, 2
      %v1109 = vld [vmem:[%s1108] sm:$0x1]
      %v1114 = vunpack.c.l.b16 %v1102
      %v1115 = vunpack.c.l.b16 %v1103
      %v1116 = vunpack.c.l.b16 %v1104
      %v1117 = vunpack.c.l.b16 %v1105
      %v1118 = vpack.c.b16 %v1115, %v1114
      %v1119 = vpack.c.b16 %v1117, %v1116
      %1122 = vmatprep.subr.bf16.mxu0 0
      %1123 = vmatpush1.bf16.msra.mxu0 %v1118
      %1124 = vmatprep.subr.bf16.mxu0 0
      %1125 = vmatpush1.bf16.msra.mxu0 %v1119
      %1126 = vmatprep.subr.bf16.mxu0 0
      %1127 = vmatpush1.bf16.msra.mxu0 0
      %1128 = vmatprep.subr.bf16.mxu0 0
      %1129 = vmatpush1.bf16.msra.mxu0 0
      %1130 = vmatprep.subr.bf16.mxu0 0
      %1131 = vmatpush1.bf16.msra.mxu0 0
      %1132 = vmatprep.subr.bf16.mxu0 0
      %1133 = vmatpush1.bf16.msra.mxu0 0
      %1134 = vmatprep.subr.bf16.mxu0 0
      %1135 = vmatpush1.bf16.msra.mxu0 0
      %1136 = vmatprep.subr.bf16.mxu0 0
      %1137 = vmatpush1.bf16.msra.mxu0 0
      %1138 = vmatprep.subr.bf16.mxu0 0
      %1139 = vmatpush1.bf16.msra.mxu0 0
      %1140 = vmatprep.subr.bf16.mxu0 0
      %1141 = vmatpush1.bf16.msra.mxu0 0
      %1142 = vmatprep.subr.bf16.mxu0 0
      %1143 = vmatpush1.bf16.msra.mxu0 0
      %1144 = vmatprep.subr.bf16.mxu0 0
      %1145 = vmatpush1.bf16.msra.mxu0 0
      %1146 = vmatprep.subr.bf16.mxu0 0
      %1147 = vmatpush1.bf16.msra.mxu0 0
      %1148 = vmatprep.subr.bf16.mxu0 0
      %1149 = vmatpush1.bf16.msra.mxu0 0
      %1150 = vmatprep.subr.bf16.mxu0 0
      %1151 = vmatpush1.bf16.msra.mxu0 0
      %1152 = vmatprep.subr.bf16.mxu0 0
      %1153 = vmatpush1.bf16.msra.mxu0 0
      %1154 = vmatprep.mubr.bf16.mxu0 0
      %1155 = vmatmul.mubr.bf16.gmra.mrb[0].mxu0 %v326
      %v1156 = vpop.f32.mrb[0].mxu0
      %v1157 = vadd.f32 0.0, %v1156
      %v1158 = vpop.f32.mrb[0].mxu0
      %v1159 = vpop.f32.mrb[0].mxu0
      %v1160 = vadd.f32 0.0, %v1159
      %v1161 = vpop.f32.mrb[0].mxu0
      %1162 = vmatprep.mubr.bf16.mxu0 0
      %1163 = vmatmul.mubr.bf16.gmra.mrb[0].mxu0 %v329
      %v1164 = vpop.f32.mrb[0].mxu0
      %v1165 = vadd.f32 0.0, %v1164
      %v1166 = vpop.f32.mrb[0].mxu0
      %v1167 = vpop.f32.mrb[0].mxu0
      %v1168 = vadd.f32 0.0, %v1167
      %v1169 = vpop.f32.mrb[0].mxu0
      %1170 = vmatprep.mubr.bf16.mxu0 0
      %1171 = vmatmul.mubr.bf16.gmra.mrb[0].mxu0 %v332
      %v1172 = vpop.f32.mrb[0].mxu0
      %v1173 = vadd.f32 0.0, %v1172
      %v1174 = vpop.f32.mrb[0].mxu0
      %v1175 = vpop.f32.mrb[0].mxu0
      %v1176 = vadd.f32 0.0, %v1175
      %v1177 = vpop.f32.mrb[0].mxu0
      %1178 = vmatprep.mubr.bf16.mxu0 0
      %1179 = vmatmul.mubr.bf16.gmra.mrb[0].mxu0 %v335
      %v1180 = vpop.f32.mrb[0].mxu0
      %v1181 = vadd.f32 0.0, %v1180
      %v1182 = vpop.f32.mrb[0].mxu0
      %v1183 = vpop.f32.mrb[0].mxu0
      %v1184 = vadd.f32 0.0, %v1183
      %v1185 = vpop.f32.mrb[0].mxu0
      %1186 = vdwg.mxu0
      %1187 = vmatprep.subr.bf16.mxu0 0
      %1188 = vmatpush1.bf16.msra.mxu0 %v1118
      %1189 = vmatprep.subr.bf16.mxu0 0
      %1190 = vmatpush1.bf16.msra.mxu0 %v1119
      %1191 = vmatprep.subr.bf16.mxu0 0
      %1192 = vmatpush1.bf16.msra.mxu0 0
      %1193 = vmatprep.subr.bf16.mxu0 0
      %1194 = vmatpush1.bf16.msra.mxu0 0
      %1195 = vmatprep.subr.bf16.mxu0 0
      %1196 = vmatpush1.bf16.msra.mxu0 0
      %1197 = vmatprep.subr.bf16.mxu0 0
      %1198 = vmatpush1.bf16.msra.mxu0 0
      %1199 = vmatprep.subr.bf16.mxu0 0
      %1200 = vmatpush1.bf16.msra.mxu0 0
      %1201 = vmatprep.subr.bf16.mxu0 0
      %1202 = vmatpush1.bf16.msra.mxu0 0
      %1203 = vmatprep.subr.bf16.mxu0 0
      %1204 = vmatpush1.bf16.msra.mxu0 0
      %1205 = vmatprep.subr.bf16.mxu0 0
      %1206 = vmatpush1.bf16.msra.mxu0 0
      %1207 = vmatprep.subr.bf16.mxu0 0
      %1208 = vmatpush1.bf16.msra.mxu0 0
      %1209 = vmatprep.subr.bf16.mxu0 0
      %1210 = vmatpush1.bf16.msra.mxu0 0
      %1211 = vmatprep.subr.bf16.mxu0 0
      %1212 = vmatpush1.bf16.msra.mxu0 0
      %1213 = vmatprep.subr.bf16.mxu0 0
      %1214 = vmatpush1.bf16.msra.mxu0 0
      %1215 = vmatprep.subr.bf16.mxu0 0
      %1216 = vmatpush1.bf16.msra.mxu0 0
      %1217 = vmatprep.subr.bf16.mxu0 0
      %1218 = vmatpush1.bf16.msra.mxu0 0
      %1219 = vmatprep.mubr.bf16.mxu0 0
      %1220 = vmatmul.mubr.bf16.gmra.mrb[0].mxu0 %v403
      %v1221 = vpop.f32.mrb[0].mxu0
      %v1222 = vadd.f32 0.0, %v1221
      %v1223 = vpop.f32.mrb[0].mxu0
      %v1224 = vpop.f32.mrb[0].mxu0
      %v1225 = vadd.f32 0.0, %v1224
      %v1226 = vpop.f32.mrb[0].mxu0
      %1227 = vmatprep.mubr.bf16.mxu0 0
      %1228 = vmatmul.mubr.bf16.gmra.mrb[0].mxu0 %v406
      %v1229 = vpop.f32.mrb[0].mxu0
      %v1230 = vadd.f32 0.0, %v1229
      %v1231 = vpop.f32.mrb[0].mxu0
      %v1232 = vpop.f32.mrb[0].mxu0
      %v1233 = vadd.f32 0.0, %v1232
      %v1234 = vpop.f32.mrb[0].mxu0
      %1235 = vdwg.mxu0
      %v1237 = vlaneseq
      %v1238 = vshrl.u32 %v1237, 7
      %v1239 = vsub.s32 0, %v1238
      %v1240 = vrot.slane %v1107, %v1239
      %v1242 = vmul.f32 %v1222, %v1240
      %v1243 = vmul.f32 %v1225, %v1240
      %v1244 = vmul.f32 %v1230, %v1240
      %v1245 = vmul.f32 %v1233, %v1240
      %v1246 = vsel %vm324, %v1242, 0.0
      %1247 = vadd.xlane.f32.xlu0 %v1246
      %v1248 = vpop.xlane.xlu0 %1247
      %v1249 = vsel %vm324, %v1243, 0.0
      %1250 = vadd.xlane.f32.xlu0 %v1249
      %v1251 = vpop.xlane.xlu0 %1250
      %v1252 = vsel %vm324, %v1244, 0.0
      %1253 = vadd.xlane.f32.xlu0 %v1252
      %v1254 = vpop.xlane.xlu0 %1253
      %v1255 = vsel %vm324, %v1245, 0.0
      %1256 = vadd.xlane.f32.xlu0 %v1255
      %v1257 = vpop.xlane.xlu0 %1256
      %v1259 = vsel %vm324, %v1109, 0
      %v1262 = vsel %vm324, %v1157, 0
      %v1265 = vsel %vm324, %v1160, 0
      %v1268 = vsel %vm324, %v1165, 0
      %v1271 = vsel %vm324, %v1168, 0
      %v1274 = vsel %vm324, %v1173, 0
      %v1277 = vsel %vm324, %v1176, 0
      %v1280 = vsel %vm324, %v1181, 0
      %v1283 = vsel %vm324, %v1184, 0
      %1285 = vmatprep.subr.mxu0 0.0
      %1286 = vmatpush1.xpose.msra.mxu0 %v1262
      %1287 = vmatprep.subr.mxu0 0.0
      %1288 = vmatpush1.xpose.msra.mxu0 %v1265
      %1289 = vmatprep.subr.mxu0 0.0
      %1290 = vmatpush1.xpose.msra.mxu0 %v1268
      %1291 = vmatprep.subr.mxu0 0.0
      %1292 = vmatpush1.xpose.msra.mxu0 %v1271
      %1293 = vmatprep.subr.mxu0 0.0
      %1294 = vmatpush1.xpose.msra.mxu0 %v1274
      %1295 = vmatprep.subr.mxu0 0.0
      %1296 = vmatpush1.xpose.msra.mxu0 %v1277
      %1297 = vmatprep.subr.mxu0 0.0
      %1298 = vmatpush1.xpose.msra.mxu0 %v1280
      %1299 = vmatprep.subr.mxu0 0.0
      %1300 = vmatpush1.xpose.msra.mxu0 %v1283
      %1301 = vmatprep.subr.mxu0 0.0
      %1302 = vmatpush1.xpose.msra.mxu0 0.0
      %1303 = vmatprep.subr.mxu0 0.0
      %1304 = vmatpush1.xpose.msra.mxu0 0.0
      %1305 = vmatprep.subr.mxu0 0.0
      %1306 = vmatpush1.xpose.msra.mxu0 0.0
      %1307 = vmatprep.subr.mxu0 0.0
      %1308 = vmatpush1.xpose.msra.mxu0 0.0
      %1309 = vmatprep.subr.mxu0 0.0
      %1310 = vmatpush1.xpose.msra.mxu0 0.0
      %1311 = vmatprep.subr.mxu0 0.0
      %1312 = vmatpush1.xpose.msra.mxu0 0.0
      %1313 = vmatprep.subr.mxu0 0.0
      %1314 = vmatpush1.xpose.msra.mxu0 0.0
      %1315 = vmatprep.subr.mxu0 0.0
      %1316 = vmatpush1.xpose.msra.mxu0 0.0
      %1317 = vmatprep.subr.mxu0 0.0
      %1318 = vmatpush1.xpose.msra.mxu0 0.0
      %1319 = vmatprep.subr.mxu0 0.0
      %1320 = vmatpush1.xpose.msra.mxu0 0.0
      %1321 = vmatprep.subr.mxu0 0.0
      %1322 = vmatpush1.xpose.msra.mxu0 0.0
      %1323 = vmatprep.subr.mxu0 0.0
      %1324 = vmatpush1.xpose.msra.mxu0 0.0
      %1325 = vmatprep.subr.mxu0 0.0
      %1326 = vmatpush1.xpose.msra.mxu0 0.0
      %1327 = vmatprep.subr.mxu0 0.0
      %1328 = vmatpush1.xpose.msra.mxu0 0.0
      %1329 = vmatprep.subr.mxu0 0.0
      %1330 = vmatpush1.xpose.msra.mxu0 0.0
      %1331 = vmatprep.subr.mxu0 0.0
      %1332 = vmatpush1.xpose.msra.mxu0 0.0
      %1333 = vmatprep.subr.mxu0 0.0
      %1334 = vmatpush1.xpose.msra.mxu0 0.0
      %1335 = vmatprep.subr.mxu0 0.0
      %1336 = vmatpush1.xpose.msra.mxu0 0.0
      %1337 = vmatprep.subr.mxu0 0.0
      %1338 = vmatpush1.xpose.msra.mxu0 0.0
      %1339 = vmatprep.subr.mxu0 0.0
      %1340 = vmatpush1.xpose.msra.mxu0 0.0
      %1341 = vmatprep.subr.mxu0 0.0
      %1342 = vmatpush1.xpose.msra.mxu0 0.0
      %1343 = vmatprep.subr.mxu0 0.0
      %1344 = vmatpush1.xpose.msra.mxu0 0.0
      %1345 = vmatprep.subr.mxu0 0.0
      %1346 = vmatpush1.xpose.msra.mxu0 0.0
      %1347 = vmatprep.subr.mxu0 0.0
      %1348 = vmatpush1.xpose.msra.mxu0 0.0
      %1349 = vmatprep.mubr.f32.mxu0 0.0
      %1350 = vmatmul.mubr.f32.gmra.mrb[0].mxu0 %v1259
      %v1351 = vpop.f32.mrb[0].mxu0
      %v1352 = vadd.f32 0.0, %v1351
      %v1353 = vpop.f32.mrb[0].mxu0
      %1354 = vdwg.mxu0
      %v1355 = vlaneseq
      %v1356 = vshrl.u32 %v1355, 7
      %v1357 = vsub.s32 0, %v1356
      %v1358 = vrot.slane %v1352, %v1357
      %v1359 = vadd.f32 %v1248, %v1358
      %v1360 = vadd.f32 %v1251, %v1358
      %v1361 = vadd.f32 %v1254, %v1358
      %v1362 = vadd.f32 %v1257, %v1358
      %vm1363 = vcmp.gt.f32.partialorder %v1359, 0.0
      %vm1364 = vcmp.gt.f32.partialorder %v1360, 0.0
      %vm1365 = vcmp.gt.f32.partialorder %v1361, 0.0
      %vm1366 = vcmp.gt.f32.partialorder %v1362, 0.0
      %v1367 = vmul.f32 %v1359, 0.2
      %v1368 = vmul.f32 %v1360, 0.2
      %v1369 = vmul.f32 %v1361, 0.2
      %v1370 = vmul.f32 %v1362, 0.2
      %v1371 = vsel %vm1363, %v1359, %v1367
      %v1372 = vsel %vm1364, %v1360, %v1368
      %v1373 = vsel %vm1365, %v1361, %v1369
      %v1374 = vsel %vm1366, %v1362, %v1370
      %v1375 = vsel %vm604, %v1371, -9e+15
      %v1376 = vsel %vm605, %v1372, -9e+15
      %v1377 = vsel %vm606, %v1373, -9e+15
      %v1378 = vsel %vm607, %v1374, -9e+15
      %v1379 = vsel %vm612, %v1375, -inf
      %1380 = vmax.xlane.f32.xlu0 %v1379
      %v1381 = vpop.xlane.xlu0 %1380
      %v1382 = vsel %vm612, %v1376, -inf
      %1383 = vmax.xlane.f32.xlu0 %v1382
      %v1384 = vpop.xlane.xlu0 %1383
      %v1385 = vsel %vm612, %v1377, -inf
      %1386 = vmax.xlane.f32.xlu0 %v1385
      %v1387 = vpop.xlane.xlu0 %1386
      %v1388 = vsel %vm612, %v1378, -inf
      %1389 = vmax.xlane.f32.xlu0 %v1388
      %v1390 = vpop.xlane.xlu0 %1389
      %v1391 = vsub.f32 %v1375, %v1381
      %v1392 = vsub.f32 %v1376, %v1384
      %v1393 = vsub.f32 %v1377, %v1387
      %v1394 = vsub.f32 %v1378, %v1390
      %v1395 = vmul.f32 %v1391, 1.442695
      %v1396 = vpow.pop %v1395
      %v1397 = vmul.f32 %v1392, 1.442695
      %v1398 = vpow.pop %v1397
      %v1399 = vmul.f32 %v1393, 1.442695
      %v1400 = vpow.pop %v1399
      %v1401 = vmul.f32 %v1394, 1.442695
      %v1402 = vpow.pop %v1401
      %v1403 = vsel %vm612, %v1396, 0.0
      %1404 = vadd.xlane.f32.xlu0 %v1403
      %v1405 = vpop.xlane.xlu0 %1404
      %v1406 = vsel %vm612, %v1398, 0.0
      %1407 = vadd.xlane.f32.xlu0 %v1406
      %v1408 = vpop.xlane.xlu0 %1407
      %v1409 = vsel %vm612, %v1400, 0.0
      %1410 = vadd.xlane.f32.xlu0 %v1409
      %v1411 = vpop.xlane.xlu0 %1410
      %v1412 = vsel %vm612, %v1402, 0.0
      %1413 = vadd.xlane.f32.xlu0 %v1412
      %v1414 = vpop.xlane.xlu0 %1413
      %v1415 = vrcp.pop %v1405
      %v1416 = vrcp.pop %v1408
      %v1417 = vrcp.pop %v1411
      %v1418 = vrcp.pop %v1414
      %v1419 = vmul.f32 %v1396, %v1415
      %v1420 = vmul.f32 %v1398, %v1416
      %v1421 = vmul.f32 %v1400, %v1417
      %v1422 = vmul.f32 %v1402, %v1418
      %v1423 = vpack.c.bf16 %v1420, %v1419
      %v1424 = vpack.c.bf16 %v1422, %v1421
      %v1425 = vpack.c.bf16 %v1160, %v1157
      %v1426 = vpack.c.bf16 %v1168, %v1165
      %v1427 = vpack.c.bf16 %v1176, %v1173
      %v1428 = vpack.c.bf16 %v1184, %v1181
      %v1430 = vsel %vm612, %v1423, 0
      %v1433 = vsel %vm612, %v1424, 0
      %1435 = vmatprep.subr.bf16.mxu0 0
      %1436 = vmatpush1.bf16.msra.mxu0 %v1425
      %1437 = vmatprep.subr.bf16.mxu0 0
      %1438 = vmatpush1.bf16.msra.mxu0 %v1426
      %1439 = vmatprep.subr.bf16.mxu0 0
      %1440 = vmatpush1.bf16.msra.mxu0 %v1427
      %1441 = vmatprep.subr.bf16.mxu0 0
      %1442 = vmatpush1.bf16.msra.mxu0 %v1428
      %1443 = vmatprep.subr.bf16.mxu0 0
      %1444 = vmatpush1.bf16.msra.mxu0 0
      %1445 = vmatprep.subr.bf16.mxu0 0
      %1446 = vmatpush1.bf16.msra.mxu0 0
      %1447 = vmatprep.subr.bf16.mxu0 0
      %1448 = vmatpush1.bf16.msra.mxu0 0
      %1449 = vmatprep.subr.bf16.mxu0 0
      %1450 = vmatpush1.bf16.msra.mxu0 0
      %1451 = vmatprep.subr.bf16.mxu0 0
      %1452 = vmatpush1.bf16.msra.mxu0 0
      %1453 = vmatprep.subr.bf16.mxu0 0
      %1454 = vmatpush1.bf16.msra.mxu0 0
      %1455 = vmatprep.subr.bf16.mxu0 0
      %1456 = vmatpush1.bf16.msra.mxu0 0
      %1457 = vmatprep.subr.bf16.mxu0 0
      %1458 = vmatpush1.bf16.msra.mxu0 0
      %1459 = vmatprep.subr.bf16.mxu0 0
      %1460 = vmatpush1.bf16.msra.mxu0 0
      %1461 = vmatprep.subr.bf16.mxu0 0
      %1462 = vmatpush1.bf16.msra.mxu0 0
      %1463 = vmatprep.subr.bf16.mxu0 0
      %1464 = vmatpush1.bf16.msra.mxu0 0
      %1465 = vmatprep.subr.bf16.mxu0 0
      %1466 = vmatpush1.bf16.msra.mxu0 0
      %1467 = vmatprep.mubr.bf16.mxu0 0
      %1468 = vmatmul.mubr.bf16.gmra.mrb[0].mxu0 %v1430
      %v1469 = vpop.f32.mrb[0].mxu0
      %v1470 = vadd.f32 0.0, %v1469
      %v1471 = vpop.f32.mrb[0].mxu0
      %v1472 = vpop.f32.mrb[0].mxu0
      %v1473 = vadd.f32 0.0, %v1472
      %v1474 = vpop.f32.mrb[0].mxu0
      %1475 = vmatprep.mubr.bf16.mxu0 0
      %1476 = vmatmul.mubr.bf16.gmra.mrb[0].mxu0 %v1433
      %v1477 = vpop.f32.mrb[0].mxu0
      %v1478 = vadd.f32 0.0, %v1477
      %v1479 = vpop.f32.mrb[0].mxu0
      %v1480 = vpop.f32.mrb[0].mxu0
      %v1481 = vadd.f32 0.0, %v1480
      %v1482 = vpop.f32.mrb[0].mxu0
      %1483 = vdwg.mxu0
      %s1484 = scalar_lea.vmem %s3, 48
      %v1485 = vld [vmem:[%s1484] sm:$0xf]
      %v1486 = vld [vmem:[%s1484 + $0x4] sm:$0xf]
      %v1487 = vld [vmem:[%s1484 + $0x8] sm:$0xf]
      %v1488 = vld [vmem:[%s1484 + $0xc] sm:$0xf]
      %s1489 = scalar_lea.vmem %s4, 3
      %v1490 = vld [vmem:[%s1489] sm:$0x1]
      %s1491 = scalar_lea.vmem %s5, 3
      %v1492 = vld [vmem:[%s1491] sm:$0x1]
      %v1497 = vunpack.c.l.b16 %v1485
      %v1498 = vunpack.c.l.b16 %v1486
      %v1499 = vunpack.c.l.b16 %v1487
      %v1500 = vunpack.c.l.b16 %v1488
      %v1501 = vpack.c.b16 %v1498, %v1497
      %v1502 = vpack.c.b16 %v1500, %v1499
      %1505 = vmatprep.subr.bf16.mxu0 0
      %1506 = vmatpush1.bf16.msra.mxu0 %v1501
      %1507 = vmatprep.subr.bf16.mxu0 0
      %1508 = vmatpush1.bf16.msra.mxu0 %v1502
      %1509 = vmatprep.subr.bf16.mxu0 0
      %1510 = vmatpush1.bf16.msra.mxu0 0
      %1511 = vmatprep.subr.bf16.mxu0 0
      %1512 = vmatpush1.bf16.msra.mxu0 0
      %1513 = vmatprep.subr.bf16.mxu0 0
      %1514 = vmatpush1.bf16.msra.mxu0 0
      %1515 = vmatprep.subr.bf16.mxu0 0
      %1516 = vmatpush1.bf16.msra.mxu0 0
      %1517 = vmatprep.subr.bf16.mxu0 0
      %1518 = vmatpush1.bf16.msra.mxu0 0
      %1519 = vmatprep.subr.bf16.mxu0 0
      %1520 = vmatpush1.bf16.msra.mxu0 0
      %1521 = vmatprep.subr.bf16.mxu0 0
      %1522 = vmatpush1.bf16.msra.mxu0 0
      %1523 = vmatprep.subr.bf16.mxu0 0
      %1524 = vmatpush1.bf16.msra.mxu0 0
      %1525 = vmatprep.subr.bf16.mxu0 0
      %1526 = vmatpush1.bf16.msra.mxu0 0
      %1527 = vmatprep.subr.bf16.mxu0 0
      %1528 = vmatpush1.bf16.msra.mxu0 0
      %1529 = vmatprep.subr.bf16.mxu0 0
      %1530 = vmatpush1.bf16.msra.mxu0 0
      %1531 = vmatprep.subr.bf16.mxu0 0
      %1532 = vmatpush1.bf16.msra.mxu0 0
      %1533 = vmatprep.subr.bf16.mxu0 0
      %1534 = vmatpush1.bf16.msra.mxu0 0
      %1535 = vmatprep.subr.bf16.mxu0 0
      %1536 = vmatpush1.bf16.msra.mxu0 0
      %1537 = vmatprep.mubr.bf16.mxu0 0
      %1538 = vmatmul.mubr.bf16.gmra.mrb[0].mxu0 %v326
      %v1539 = vpop.f32.mrb[0].mxu0
      %v1540 = vadd.f32 0.0, %v1539
      %v1541 = vpop.f32.mrb[0].mxu0
      %v1542 = vpop.f32.mrb[0].mxu0
      %v1543 = vadd.f32 0.0, %v1542
      %v1544 = vpop.f32.mrb[0].mxu0
      %1545 = vmatprep.mubr.bf16.mxu0 0
      %1546 = vmatmul.mubr.bf16.gmra.mrb[0].mxu0 %v329
      %v1547 = vpop.f32.mrb[0].mxu0
      %v1548 = vadd.f32 0.0, %v1547
      %v1549 = vpop.f32.mrb[0].mxu0
      %v1550 = vpop.f32.mrb[0].mxu0
      %v1551 = vadd.f32 0.0, %v1550
      %v1552 = vpop.f32.mrb[0].mxu0
      %1553 = vmatprep.mubr.bf16.mxu0 0
      %1554 = vmatmul.mubr.bf16.gmra.mrb[0].mxu0 %v332
      %v1555 = vpop.f32.mrb[0].mxu0
      %v1556 = vadd.f32 0.0, %v1555
      %v1557 = vpop.f32.mrb[0].mxu0
      %v1558 = vpop.f32.mrb[0].mxu0
      %v1559 = vadd.f32 0.0, %v1558
      %v1560 = vpop.f32.mrb[0].mxu0
      %1561 = vmatprep.mubr.bf16.mxu0 0
      %1562 = vmatmul.mubr.bf16.gmra.mrb[0].mxu0 %v335
      %v1563 = vpop.f32.mrb[0].mxu0
      %v1564 = vadd.f32 0.0, %v1563
      %v1565 = vpop.f32.mrb[0].mxu0
      %v1566 = vpop.f32.mrb[0].mxu0
      %v1567 = vadd.f32 0.0, %v1566
      %v1568 = vpop.f32.mrb[0].mxu0
      %1569 = vdwg.mxu0
      %1570 = vmatprep.subr.bf16.mxu0 0
      %1571 = vmatpush1.bf16.msra.mxu0 %v1501
      %1572 = vmatprep.subr.bf16.mxu0 0
      %1573 = vmatpush1.bf16.msra.mxu0 %v1502
      %1574 = vmatprep.subr.bf16.mxu0 0
      %1575 = vmatpush1.bf16.msra.mxu0 0
      %1576 = vmatprep.subr.bf16.mxu0 0
      %1577 = vmatpush1.bf16.msra.mxu0 0
      %1578 = vmatprep.subr.bf16.mxu0 0
      %1579 = vmatpush1.bf16.msra.mxu0 0
      %1580 = vmatprep.subr.bf16.mxu0 0
      %1581 = vmatpush1.bf16.msra.mxu0 0
      %1582 = vmatprep.subr.bf16.mxu0 0
      %1583 = vmatpush1.bf16.msra.mxu0 0
      %1584 = vmatprep.subr.bf16.mxu0 0
      %1585 = vmatpush1.bf16.msra.mxu0 0
      %1586 = vmatprep.subr.bf16.mxu0 0
      %1587 = vmatpush1.bf16.msra.mxu0 0
      %1588 = vmatprep.subr.bf16.mxu0 0
      %1589 = vmatpush1.bf16.msra.mxu0 0
      %1590 = vmatprep.subr.bf16.mxu0 0
      %1591 = vmatpush1.bf16.msra.mxu0 0
      %1592 = vmatprep.subr.bf16.mxu0 0
      %1593 = vmatpush1.bf16.msra.mxu0 0
      %1594 = vmatprep.subr.bf16.mxu0 0
      %1595 = vmatpush1.bf16.msra.mxu0 0
      %1596 = vmatprep.subr.bf16.mxu0 0
      %1597 = vmatpush1.bf16.msra.mxu0 0
      %1598 = vmatprep.subr.bf16.mxu0 0
      %1599 = vmatpush1.bf16.msra.mxu0 0
      %1600 = vmatprep.subr.bf16.mxu0 0
      %1601 = vmatpush1.bf16.msra.mxu0 0
      %1602 = vmatprep.mubr.bf16.mxu0 0
      %1603 = vmatmul.mubr.bf16.gmra.mrb[0].mxu0 %v403
      %v1604 = vpop.f32.mrb[0].mxu0
      %v1605 = vadd.f32 0.0, %v1604
      %v1606 = vpop.f32.mrb[0].mxu0
      %v1607 = vpop.f32.mrb[0].mxu0
      %v1608 = vadd.f32 0.0, %v1607
      %v1609 = vpop.f32.mrb[0].mxu0
      %1610 = vmatprep.mubr.bf16.mxu0 0
      %1611 = vmatmul.mubr.bf16.gmra.mrb[0].mxu0 %v406
      %v1612 = vpop.f32.mrb[0].mxu0
      %v1613 = vadd.f32 0.0, %v1612
      %v1614 = vpop.f32.mrb[0].mxu0
      %v1615 = vpop.f32.mrb[0].mxu0
      %v1616 = vadd.f32 0.0, %v1615
      %v1617 = vpop.f32.mrb[0].mxu0
      %1618 = vdwg.mxu0
      %v1620 = vlaneseq
      %v1621 = vshrl.u32 %v1620, 7
      %v1622 = vsub.s32 0, %v1621
      %v1623 = vrot.slane %v1490, %v1622
      %v1625 = vmul.f32 %v1605, %v1623
      %v1626 = vmul.f32 %v1608, %v1623
      %v1627 = vmul.f32 %v1613, %v1623
      %v1628 = vmul.f32 %v1616, %v1623
      %v1629 = vsel %vm324, %v1625, 0.0
      %1630 = vadd.xlane.f32.xlu0 %v1629
      %v1631 = vpop.xlane.xlu0 %1630
      %v1632 = vsel %vm324, %v1626, 0.0
      %1633 = vadd.xlane.f32.xlu0 %v1632
      %v1634 = vpop.xlane.xlu0 %1633
      %v1635 = vsel %vm324, %v1627, 0.0
      %1636 = vadd.xlane.f32.xlu0 %v1635
      %v1637 = vpop.xlane.xlu0 %1636
      %v1638 = vsel %vm324, %v1628, 0.0
      %1639 = vadd.xlane.f32.xlu0 %v1638
      %v1640 = vpop.xlane.xlu0 %1639
      %v1642 = vsel %vm324, %v1492, 0
      %v1645 = vsel %vm324, %v1540, 0
      %v1648 = vsel %vm324, %v1543, 0
      %v1651 = vsel %vm324, %v1548, 0
      %v1654 = vsel %vm324, %v1551, 0
      %v1657 = vsel %vm324, %v1556, 0
      %v1660 = vsel %vm324, %v1559, 0
      %v1663 = vsel %vm324, %v1564, 0
      %v1666 = vsel %vm324, %v1567, 0
      %1668 = vmatprep.subr.mxu0 0.0
      %1669 = vmatpush1.xpose.msra.mxu0 %v1645
      %1670 = vmatprep.subr.mxu0 0.0
      %1671 = vmatpush1.xpose.msra.mxu0 %v1648
      %1672 = vmatprep.subr.mxu0 0.0
      %1673 = vmatpush1.xpose.msra.mxu0 %v1651
      %1674 = vmatprep.subr.mxu0 0.0
      %1675 = vmatpush1.xpose.msra.mxu0 %v1654
      %1676 = vmatprep.subr.mxu0 0.0
      %1677 = vmatpush1.xpose.msra.mxu0 %v1657
      %1678 = vmatprep.subr.mxu0 0.0
      %1679 = vmatpush1.xpose.msra.mxu0 %v1660
      %1680 = vmatprep.subr.mxu0 0.0
      %1681 = vmatpush1.xpose.msra.mxu0 %v1663
      %1682 = vmatprep.subr.mxu0 0.0
      %1683 = vmatpush1.xpose.msra.mxu0 %v1666
      %1684 = vmatprep.subr.mxu0 0.0
      %1685 = vmatpush1.xpose.msra.mxu0 0.0
      %1686 = vmatprep.subr.mxu0 0.0
      %1687 = vmatpush1.xpose.msra.mxu0 0.0
      %1688 = vmatprep.subr.mxu0 0.0
      %1689 = vmatpush1.xpose.msra.mxu0 0.0
      %1690 = vmatprep.subr.mxu0 0.0
      %1691 = vmatpush1.xpose.msra.mxu0 0.0
      %1692 = vmatprep.subr.mxu0 0.0
      %1693 = vmatpush1.xpose.msra.mxu0 0.0
      %1694 = vmatprep.subr.mxu0 0.0
      %1695 = vmatpush1.xpose.msra.mxu0 0.0
      %1696 = vmatprep.subr.mxu0 0.0
      %1697 = vmatpush1.xpose.msra.mxu0 0.0
      %1698 = vmatprep.subr.mxu0 0.0
      %1699 = vmatpush1.xpose.msra.mxu0 0.0
      %1700 = vmatprep.subr.mxu0 0.0
      %1701 = vmatpush1.xpose.msra.mxu0 0.0
      %1702 = vmatprep.subr.mxu0 0.0
      %1703 = vmatpush1.xpose.msra.mxu0 0.0
      %1704 = vmatprep.subr.mxu0 0.0
      %1705 = vmatpush1.xpose.msra.mxu0 0.0
      %1706 = vmatprep.subr.mxu0 0.0
      %1707 = vmatpush1.xpose.msra.mxu0 0.0
      %1708 = vmatprep.subr.mxu0 0.0
      %1709 = vmatpush1.xpose.msra.mxu0 0.0
      %1710 = vmatprep.subr.mxu0 0.0
      %1711 = vmatpush1.xpose.msra.mxu0 0.0
      %1712 = vmatprep.subr.mxu0 0.0
      %1713 = vmatpush1.xpose.msra.mxu0 0.0
      %1714 = vmatprep.subr.mxu0 0.0
      %1715 = vmatpush1.xpose.msra.mxu0 0.0
      %1716 = vmatprep.subr.mxu0 0.0
      %1717 = vmatpush1.xpose.msra.mxu0 0.0
      %1718 = vmatprep.subr.mxu0 0.0
      %1719 = vmatpush1.xpose.msra.mxu0 0.0
      %1720 = vmatprep.subr.mxu0 0.0
      %1721 = vmatpush1.xpose.msra.mxu0 0.0
      %1722 = vmatprep.subr.mxu0 0.0
      %1723 = vmatpush1.xpose.msra.mxu0 0.0
      %1724 = vmatprep.subr.mxu0 0.0
      %1725 = vmatpush1.xpose.msra.mxu0 0.0
      %1726 = vmatprep.subr.mxu0 0.0
      %1727 = vmatpush1.xpose.msra.mxu0 0.0
      %1728 = vmatprep.subr.mxu0 0.0
      %1729 = vmatpush1.xpose.msra.mxu0 0.0
      %1730 = vmatprep.subr.mxu0 0.0
      %1731 = vmatpush1.xpose.msra.mxu0 0.0
      %1732 = vmatprep.mubr.f32.mxu0 0.0
      %1733 = vmatmul.mubr.f32.gmra.mrb[0].mxu0 %v1642
      %v1734 = vpop.f32.mrb[0].mxu0
      %v1735 = vadd.f32 0.0, %v1734
      %v1736 = vpop.f32.mrb[0].mxu0
      %1737 = vdwg.mxu0
      %v1738 = vlaneseq
      %v1739 = vshrl.u32 %v1738, 7
      %v1740 = vsub.s32 0, %v1739
      %v1741 = vrot.slane %v1735, %v1740
      %v1742 = vadd.f32 %v1631, %v1741
      %v1743 = vadd.f32 %v1634, %v1741
      %v1744 = vadd.f32 %v1637, %v1741
      %v1745 = vadd.f32 %v1640, %v1741
      %vm1746 = vcmp.gt.f32.partialorder %v1742, 0.0
      %vm1747 = vcmp.gt.f32.partialorder %v1743, 0.0
      %vm1748 = vcmp.gt.f32.partialorder %v1744, 0.0
      %vm1749 = vcmp.gt.f32.partialorder %v1745, 0.0
      %v1750 = vmul.f32 %v1742, 0.2
      %v1751 = vmul.f32 %v1743, 0.2
      %v1752 = vmul.f32 %v1744, 0.2
      %v1753 = vmul.f32 %v1745, 0.2
      %v1754 = vsel %vm1746, %v1742, %v1750
      %v1755 = vsel %vm1747, %v1743, %v1751
      %v1756 = vsel %vm1748, %v1744, %v1752
      %v1757 = vsel %vm1749, %v1745, %v1753
      %v1758 = vsel %vm604, %v1754, -9e+15
      %v1759 = vsel %vm605, %v1755, -9e+15
      %v1760 = vsel %vm606, %v1756, -9e+15
      %v1761 = vsel %vm607, %v1757, -9e+15
      %v1762 = vsel %vm612, %v1758, -inf
      %1763 = vmax.xlane.f32.xlu0 %v1762
      %v1764 = vpop.xlane.xlu0 %1763
      %v1765 = vsel %vm612, %v1759, -inf
      %1766 = vmax.xlane.f32.xlu0 %v1765
      %v1767 = vpop.xlane.xlu0 %1766
      %v1768 = vsel %vm612, %v1760, -inf
      %1769 = vmax.xlane.f32.xlu0 %v1768
      %v1770 = vpop.xlane.xlu0 %1769
      %v1771 = vsel %vm612, %v1761, -inf
      %1772 = vmax.xlane.f32.xlu0 %v1771
      %v1773 = vpop.xlane.xlu0 %1772
      %v1774 = vsub.f32 %v1758, %v1764
      %v1775 = vsub.f32 %v1759, %v1767
      %v1776 = vsub.f32 %v1760, %v1770
      %v1777 = vsub.f32 %v1761, %v1773
      %v1778 = vmul.f32 %v1774, 1.442695
      %v1779 = vpow.pop %v1778
      %v1780 = vmul.f32 %v1775, 1.442695
      %v1781 = vpow.pop %v1780
      %v1782 = vmul.f32 %v1776, 1.442695
      %v1783 = vpow.pop %v1782
      %v1784 = vmul.f32 %v1777, 1.442695
      %v1785 = vpow.pop %v1784
      %v1786 = vsel %vm612, %v1779, 0.0
      %1787 = vadd.xlane.f32.xlu0 %v1786
      %v1788 = vpop.xlane.xlu0 %1787
      %v1789 = vsel %vm612, %v1781, 0.0
      %1790 = vadd.xlane.f32.xlu0 %v1789
      %v1791 = vpop.xlane.xlu0 %1790
      %v1792 = vsel %vm612, %v1783, 0.0
      %1793 = vadd.xlane.f32.xlu0 %v1792
      %v1794 = vpop.xlane.xlu0 %1793
      %v1795 = vsel %vm612, %v1785, 0.0
      %1796 = vadd.xlane.f32.xlu0 %v1795
      %v1797 = vpop.xlane.xlu0 %1796
      %v1798 = vrcp.pop %v1788
      %v1799 = vrcp.pop %v1791
      %v1800 = vrcp.pop %v1794
      %v1801 = vrcp.pop %v1797
      %v1802 = vmul.f32 %v1779, %v1798
      %v1803 = vmul.f32 %v1781, %v1799
      %v1804 = vmul.f32 %v1783, %v1800
      %v1805 = vmul.f32 %v1785, %v1801
      %v1806 = vpack.c.bf16 %v1803, %v1802
      %v1807 = vpack.c.bf16 %v1805, %v1804
      %v1808 = vpack.c.bf16 %v1543, %v1540
      %v1809 = vpack.c.bf16 %v1551, %v1548
      %v1810 = vpack.c.bf16 %v1559, %v1556
      %v1811 = vpack.c.bf16 %v1567, %v1564
      %v1813 = vsel %vm612, %v1806, 0
      %v1816 = vsel %vm612, %v1807, 0
      %1818 = vmatprep.subr.bf16.mxu0 0
      %1819 = vmatpush1.bf16.msra.mxu0 %v1808
      %1820 = vmatprep.subr.bf16.mxu0 0
      %1821 = vmatpush1.bf16.msra.mxu0 %v1809
      %1822 = vmatprep.subr.bf16.mxu0 0
      %1823 = vmatpush1.bf16.msra.mxu0 %v1810
      %1824 = vmatprep.subr.bf16.mxu0 0
      %1825 = vmatpush1.bf16.msra.mxu0 %v1811
      %1826 = vmatprep.subr.bf16.mxu0 0
      %1827 = vmatpush1.bf16.msra.mxu0 0
      %1828 = vmatprep.subr.bf16.mxu0 0
      %1829 = vmatpush1.bf16.msra.mxu0 0
      %1830 = vmatprep.subr.bf16.mxu0 0
      %1831 = vmatpush1.bf16.msra.mxu0 0
      %1832 = vmatprep.subr.bf16.mxu0 0
      %1833 = vmatpush1.bf16.msra.mxu0 0
      %1834 = vmatprep.subr.bf16.mxu0 0
      %1835 = vmatpush1.bf16.msra.mxu0 0
      %1836 = vmatprep.subr.bf16.mxu0 0
      %1837 = vmatpush1.bf16.msra.mxu0 0
      %1838 = vmatprep.subr.bf16.mxu0 0
      %1839 = vmatpush1.bf16.msra.mxu0 0
      %1840 = vmatprep.subr.bf16.mxu0 0
      %1841 = vmatpush1.bf16.msra.mxu0 0
      %1842 = vmatprep.subr.bf16.mxu0 0
      %1843 = vmatpush1.bf16.msra.mxu0 0
      %1844 = vmatprep.subr.bf16.mxu0 0
      %1845 = vmatpush1.bf16.msra.mxu0 0
      %1846 = vmatprep.subr.bf16.mxu0 0
      %1847 = vmatpush1.bf16.msra.mxu0 0
      %1848 = vmatprep.subr.bf16.mxu0 0
      %1849 = vmatpush1.bf16.msra.mxu0 0
      %1850 = vmatprep.mubr.bf16.mxu0 0
      %1851 = vmatmul.mubr.bf16.gmra.mrb[0].mxu0 %v1813
      %v1852 = vpop.f32.mrb[0].mxu0
      %v1853 = vadd.f32 0.0, %v1852
      %v1854 = vpop.f32.mrb[0].mxu0
      %v1855 = vpop.f32.mrb[0].mxu0
      %v1856 = vadd.f32 0.0, %v1855
      %v1857 = vpop.f32.mrb[0].mxu0
      %1858 = vmatprep.mubr.bf16.mxu0 0
      %1859 = vmatmul.mubr.bf16.gmra.mrb[0].mxu0 %v1816
      %v1860 = vpop.f32.mrb[0].mxu0
      %v1861 = vadd.f32 0.0, %v1860
      %v1862 = vpop.f32.mrb[0].mxu0
      %v1863 = vpop.f32.mrb[0].mxu0
      %v1864 = vadd.f32 0.0, %v1863
      %v1865 = vpop.f32.mrb[0].mxu0
      %1866 = vdwg.mxu0
      %1871 = vrot.lane.b32.xlu0 %v1087, 32
      %v1872 = vpop.permute.xlu0 %1871
      %1873 = vrot.lane.b32.xlu0 %v1090, 32
      %v1874 = vpop.permute.xlu0 %1873
      %1875 = vrot.lane.b32.xlu0 %v1095, 32
      %v1876 = vpop.permute.xlu0 %1875
      %1877 = vrot.lane.b32.xlu0 %v1098, 32
      %v1878 = vpop.permute.xlu0 %1877
      %1887 = vrot.lane.b32.xlu0 %v1470, 64
      %v1888 = vpop.permute.xlu0 %1887
      %1889 = vrot.lane.b32.xlu0 %v1473, 64
      %v1890 = vpop.permute.xlu0 %1889
      %1891 = vrot.lane.b32.xlu0 %v1478, 64
      %v1892 = vpop.permute.xlu0 %1891
      %1893 = vrot.lane.b32.xlu0 %v1481, 64
      %v1894 = vpop.permute.xlu0 %1893
      %1903 = vrot.lane.b32.xlu0 %v1853, 96
      %v1904 = vpop.permute.xlu0 %1903
      %1905 = vrot.lane.b32.xlu0 %v1856, 96
      %v1906 = vpop.permute.xlu0 %1905
      %1907 = vrot.lane.b32.xlu0 %v1861, 96
      %v1908 = vpop.permute.xlu0 %1907
      %1909 = vrot.lane.b32.xlu0 %v1864, 96
      %v1910 = vpop.permute.xlu0 %1909
      %v1915 = vsel %vm324, %v704, %v1872
      %v1916 = vsel %vm324, %v707, %v1874
      %v1917 = vsel %vm324, %v712, %v1876
      %v1918 = vsel %vm324, %v715, %v1878
      %v1919 = vsel %vm612, %v1915, %v1888
      %v1920 = vsel %vm612, %v1916, %v1890
      %v1921 = vsel %vm612, %v1917, %v1892
      %v1922 = vsel %vm612, %v1918, %v1894
      %vm1923 = vcmask 785408
      %v1924 = vsel %vm1923, %v1919, %v1904
      %v1925 = vsel %vm1923, %v1920, %v1906
      %v1926 = vsel %vm1923, %v1921, %v1908
      %v1927 = vsel %vm1923, %v1922, %v1910
      %vm1928 = vcmp.gt.f32.partialorder %v1924, 0.0
      %vm1929 = vcmp.gt.f32.partialorder %v1925, 0.0
      %vm1930 = vcmp.gt.f32.partialorder %v1926, 0.0
      %vm1931 = vcmp.gt.f32.partialorder %v1927, 0.0
      %v1932 = vmin.f32 %v1924, 0.0
      %v1933 = vmin.f32 %v1925, 0.0
      %v1934 = vmin.f32 %v1926, 0.0
      %v1935 = vmin.f32 %v1927, 0.0
      %v1936 = vmul.f32 %v1932, 1.442695
      %v1937 = vpow.pop %v1936
      %v1938 = vmul.f32 %v1933, 1.442695
      %v1939 = vpow.pop %v1938
      %v1940 = vmul.f32 %v1934, 1.442695
      %v1941 = vpow.pop %v1940
      %v1942 = vmul.f32 %v1935, 1.442695
      %v1943 = vpow.pop %v1942
      %v1944 = vsub.f32 %v1937, 1.0
      %v1945 = vsub.f32 %v1939, 1.0
      %v1946 = vsub.f32 %v1941, 1.0
      %v1947 = vsub.f32 %v1943, 1.0
      %v1948 = vsel %vm1928, %v1924, %v1944
      %v1949 = vsel %vm1929, %v1925, %v1945
      %v1950 = vsel %vm1930, %v1926, %v1946
      %v1951 = vsel %vm1931, %v1927, %v1947
      %1952 = vst [vmem:[%s275] sm:$0xff] %v1948
      %1953 = vst [vmem:[%s275 + $0x8] sm:$0xff] %v1949
      %1954 = vst [vmem:[%s275 + $0x10] sm:$0xff] %v1950
      %1955 = vst [vmem:[%s275 + $0x18] sm:$0xff] %v1951
      %s1956 = smul.u32 4, %s17
      %p1957 = scmp.lt.s32.totalorder %s1956, 7
      %s1958 = scalar_select %p1957, %s1956, 7
      %s1959 = smul.addr %s1958, 8
      %s1960 = scalar_lea.vmem %s6, %s1959
      // Predicated region
      $region45: #{gat_ordered_deep_forward.3} parent=43 // pred_check
        %p1961 = pneg %p171
      $region46: #{gat_ordered_deep_forward.3} parent=43 // pred_check_branch
        %1963 = sbr.rel (%p1961) target = $region48
      $region47: #{gat_ordered_deep_forward.3} parent=43 // pred_region
        %s1964 = smul.u32 4, %s17
      $region48: #{gat_ordered_deep_forward.3} parent=43 // pred_fallthru
        _
    $region44: #{gat_ordered_deep_forward.3} parent=5 // pred_fallthru
      _
    %p1965 = scmp.le.s32.totalorder 2, %s12
    // Predicated region
    $region49: #{gat_ordered_deep_forward.3} parent=5 // pred_check
      %p1966 = pneg %p1965
    $region50: #{gat_ordered_deep_forward.3} parent=5 // pred_check_branch
      %1968 = sbr.rel (%p1966) target = $region52
    $region51: #{gat_ordered_deep_forward.3} parent=5 // pred_region
      %s1969 = ssub.s32 %s12, 2
      // Predicated region
      $region53: #{gat_ordered_deep_forward.3} parent=51 // pred_check
        %p1970 = pneg %p177
      $region54: #{gat_ordered_deep_forward.3} parent=51 // pred_check_branch
        %1972 = sbr.rel (%p1970) target = $region56
      $region55: #{gat_ordered_deep_forward.3} parent=51 // pred_region
        %s1973 = smul.u32 4, %s18
        %p1974 = scmp.lt.s32.totalorder %s1973, 7
        %s1975 = scalar_select %p1974, %s1973, 7
        %s1976 = smul.addr %s1975, 8
        %s1977 = scalar_lea.vmem %s6, %s1976
      $region56: #{gat_ordered_deep_forward.3} parent=51 // pred_fallthru
        _
    $region52: #{gat_ordered_deep_forward.3} parent=5 // pred_fallthru
      _
  $region6: #{gat_ordered_deep_forward.3} parent=0 // loop_footer
    %s16 = sadd.s32 1, %s12
  $region7: #{gat_ordered_deep_forward.3} parent=0 // loop_footer_branch
    %11 = sbr.rel target = $region3
  $region8: #{gat_ordered_deep_forward.3} parent=0 // loop_exit
    _

// kernel: gat_ordered_deep_forward.4
$region0: #{gat_ordered_deep_forward.4}
  #allocation0 [shape = 'u32[]', space=smem, size = 0x4, offset = 0x4, fixed_abs, tag = 'smem constant byte address 0x4 - core index']
  #allocation1 [shape = 'u32[144,128]{1,0:T(1,128)}', space=vmem, size = 0x12000, scoped, tag = 'internal scratch']
  %s0 = inlined_call_operand.vmem [shape: f32[64,128], index: 0, kind: input, shape index: {}, may-alias: {0,1}]
  %s1 = inlined_call_operand.vmem [shape: f32[64,128], index: 1, kind: input, shape index: {}, may-alias: {0,1}]
  %s2 = inlined_call_operand.vmem [shape: bf16[64,64], index: 2, kind: input, shape index: {}]
  %s3 = inlined_call_operand.vmem [shape: bf16[4,128,32], index: 3, kind: input, shape index: {}]
  %s4 = inlined_call_operand.vmem [shape: f32[4,1,32], index: 4, kind: input, shape index: {}]
  %s5 = inlined_call_operand.vmem [shape: f32[4,1,32], index: 5, kind: input, shape index: {}]
  %s6 = inlined_call_operand.vmem [shape: f32[64,128], index: 6, kind: output, shape index: {}]
  %s7 = sld [smem:[#allocation0]]
  $region57: #{gat_ordered_deep_forward.4} parent=0
    _
  %s9 = ssub.s32 1, %s7
  %s10 = scalar_select 0, %s9, %s7
  loop: start=0, step=1, limit=4
  $region2: #{gat_ordered_deep_forward.4} parent=0 // loop_pre_header
    _
  $region3: #{gat_ordered_deep_forward.4} parent=0 // loop_header
    %s12 = sphi 0, %s16
    %p13 = scmp.ge.s32.totalorder %s12, 4
    %s20 = sphi 0, %s20
    %s22 = sphi 0, %s20
    %s23 = sphi 0, %s22
    %s37 = sphi 0, %s23
    %s43 = sphi 0, %s45
    %s46 = sphi 0, %s43
    %s47 = sphi 0, %s46
    %s63 = sphi 0, %s47
    %s69 = sphi 0, %s71
    %s72 = sphi 0, %s69
    %s73 = sphi 0, %s72
    %s89 = sphi 0, %s73
    %s93 = sphi 0, %s93
    %s95 = sphi 0, %s93
    %s96 = sphi 0, %s95
    %s110 = sphi 0, %s96
    %s114 = sphi 0, %s114
    %s116 = sphi 0, %s114
    %s117 = sphi 0, %s116
    %s131 = sphi 0, %s117
    %s135 = sphi 0, %s135
    %s137 = sphi 0, %s135
    %s138 = sphi 0, %s137
    %s152 = sphi 0, %s138
    %s158 = sphi 0, %s160
    %s161 = sphi 0, %s158
    %s162 = sphi 0, %s161
    %s178 = sphi 0, %s162
  $region4: #{gat_ordered_deep_forward.4} parent=0 // loop_header_branch
    %15 = sbr.rel (%p13) target = $region8
  $region5: #{gat_ordered_deep_forward.4} parent=0 // loop_body
    %s17 = ssub.s32 %s12, 1
    %s18 = ssub.s32 %s12, 2
    %s19 = sadd.s32 %s12, 1
    %s21 = sadd.s32 %s20, 1
    %p24 = scmp.eq.s32.totalorder %s12, 1
    %p25 = scmp.ne.s32.totalorder %s20, %s22
    %p26 = scmp.eq.s32.totalorder %s12, 0
    %p27 = por %p25, %p26
    %p28 = scmp.ne.s32.totalorder %s20, %s22
    %p29 = scmp.eq.s32.totalorder %s17, 1
    %p30 = por %p28, %p29
    %p31 = scmp.ne.s32.totalorder %s22, %s23
    %p32 = scmp.eq.s32.totalorder %s17, 0
    %p33 = por %p31, %p32
    %p34 = scmp.ne.s32.totalorder %s22, %s23
    %p35 = scmp.eq.s32.totalorder %s18, 1
    %p36 = por %p34, %p35
    %p38 = scmp.ne.s32.totalorder %s23, %s37
    %p39 = scmp.eq.s32.totalorder %s18, 0
    %p40 = por %p38, %p39
    %s41 = ssub.s32 %s12, %s19
    %p42 = scmp.eq.s32.totalorder %s41, 0
    %s44 = sadd.s32 %s43, 1
    %s45 = scalar_select %p42, %s43, %s44
    %p48 = pneg %p42
    %p49 = scmp.eq.s32.totalorder %s12, 1
    %p50 = por %p48, %p49
    %p51 = scmp.ne.s32.totalorder %s43, %s46
    %p52 = scmp.eq.s32.totalorder %s12, 0
    %p53 = por %p51, %p52
    %p54 = scmp.ne.s32.totalorder %s43, %s46
    %p55 = scmp.eq.s32.totalorder %s17, 1
    %p56 = por %p54, %p55
    %p57 = scmp.ne.s32.totalorder %s46, %s47
    %p58 = scmp.eq.s32.totalorder %s17, 0
    %p59 = por %p57, %p58
    %p60 = scmp.ne.s32.totalorder %s46, %s47
    %p61 = scmp.eq.s32.totalorder %s18, 1
    %p62 = por %p60, %p61
    %p64 = scmp.ne.s32.totalorder %s47, %s63
    %p65 = scmp.eq.s32.totalorder %s18, 0
    %p66 = por %p64, %p65
    %s67 = ssub.s32 %s12, %s19
    %p68 = scmp.eq.s32.totalorder %s67, 0
    %s70 = sadd.s32 %s69, 1
    %s71 = scalar_select %p68, %s69, %s70
    %p74 = pneg %p68
    %p75 = scmp.eq.s32.totalorder %s12, 1
    %p76 = por %p74, %p75
    %p77 = scmp.ne.s32.totalorder %s69, %s72
    %p78 = scmp.eq.s32.totalorder %s12, 0
    %p79 = por %p77, %p78
    %p80 = scmp.ne.s32.totalorder %s69, %s72
    %p81 = scmp.eq.s32.totalorder %s17, 1
    %p82 = por %p80, %p81
    %p83 = scmp.ne.s32.totalorder %s72, %s73
    %p84 = scmp.eq.s32.totalorder %s17, 0
    %p85 = por %p83, %p84
    %p86 = scmp.ne.s32.totalorder %s72, %s73
    %p87 = scmp.eq.s32.totalorder %s18, 1
    %p88 = por %p86, %p87
    %p90 = scmp.ne.s32.totalorder %s73, %s89
    %p91 = scmp.eq.s32.totalorder %s18, 0
    %p92 = por %p90, %p91
    %s94 = sadd.s32 %s93, 1
    %p97 = scmp.eq.s32.totalorder %s12, 1
    %p98 = scmp.ne.s32.totalorder %s93, %s95
    %p99 = scmp.eq.s32.totalorder %s12, 0
    %p100 = por %p98, %p99
    %p101 = scmp.ne.s32.totalorder %s93, %s95
    %p102 = scmp.eq.s32.totalorder %s17, 1
    %p103 = por %p101, %p102
    %p104 = scmp.ne.s32.totalorder %s95, %s96
    %p105 = scmp.eq.s32.totalorder %s17, 0
    %p106 = por %p104, %p105
    %p107 = scmp.ne.s32.totalorder %s95, %s96
    %p108 = scmp.eq.s32.totalorder %s18, 1
    %p109 = por %p107, %p108
    %p111 = scmp.ne.s32.totalorder %s96, %s110
    %p112 = scmp.eq.s32.totalorder %s18, 0
    %p113 = por %p111, %p112
    %s115 = sadd.s32 %s114, 1
    %p118 = scmp.eq.s32.totalorder %s12, 1
    %p119 = scmp.ne.s32.totalorder %s114, %s116
    %p120 = scmp.eq.s32.totalorder %s12, 0
    %p121 = por %p119, %p120
    %p122 = scmp.ne.s32.totalorder %s114, %s116
    %p123 = scmp.eq.s32.totalorder %s17, 1
    %p124 = por %p122, %p123
    %p125 = scmp.ne.s32.totalorder %s116, %s117
    %p126 = scmp.eq.s32.totalorder %s17, 0
    %p127 = por %p125, %p126
    %p128 = scmp.ne.s32.totalorder %s116, %s117
    %p129 = scmp.eq.s32.totalorder %s18, 1
    %p130 = por %p128, %p129
    %p132 = scmp.ne.s32.totalorder %s117, %s131
    %p133 = scmp.eq.s32.totalorder %s18, 0
    %p134 = por %p132, %p133
    %s136 = sadd.s32 %s135, 1
    %p139 = scmp.eq.s32.totalorder %s12, 1
    %p140 = scmp.ne.s32.totalorder %s135, %s137
    %p141 = scmp.eq.s32.totalorder %s12, 0
    %p142 = por %p140, %p141
    %p143 = scmp.ne.s32.totalorder %s135, %s137
    %p144 = scmp.eq.s32.totalorder %s17, 1
    %p145 = por %p143, %p144
    %p146 = scmp.ne.s32.totalorder %s137, %s138
    %p147 = scmp.eq.s32.totalorder %s17, 0
    %p148 = por %p146, %p147
    %p149 = scmp.ne.s32.totalorder %s137, %s138
    %p150 = scmp.eq.s32.totalorder %s18, 1
    %p151 = por %p149, %p150
    %p153 = scmp.ne.s32.totalorder %s138, %s152
    %p154 = scmp.eq.s32.totalorder %s18, 0
    %p155 = por %p153, %p154
    %s156 = ssub.s32 %s12, %s19
    %p157 = scmp.eq.s32.totalorder %s156, 0
    %s159 = sadd.s32 %s158, 1
    %s160 = scalar_select %p157, %s158, %s159
    %p163 = pneg %p157
    %p164 = scmp.eq.s32.totalorder %s12, 1
    %p165 = por %p163, %p164
    %p166 = scmp.ne.s32.totalorder %s158, %s161
    %p167 = scmp.eq.s32.totalorder %s12, 0
    %p168 = por %p166, %p167
    %p169 = scmp.ne.s32.totalorder %s158, %s161
    %p170 = scmp.eq.s32.totalorder %s17, 1
    %p171 = por %p169, %p170
    %p172 = scmp.ne.s32.totalorder %s161, %s162
    %p173 = scmp.eq.s32.totalorder %s17, 0
    %p174 = por %p172, %p173
    %p175 = scmp.ne.s32.totalorder %s161, %s162
    %p176 = scmp.eq.s32.totalorder %s18, 1
    %p177 = por %p175, %p176
    %p179 = scmp.ne.s32.totalorder %s162, %s178
    %p180 = scmp.eq.s32.totalorder %s18, 0
    %p181 = por %p179, %p180
    %p182 = scmp.le.s32.totalorder 1, %s12
    %p183 = scmp.lt.s32.totalorder %s12, 3
    %p184 = pnand %p182, %p183
    %p185 = pneg %p184
    // Predicated region
    $region9: #{gat_ordered_deep_forward.4} parent=5 // pred_check
      _
    $region10: #{gat_ordered_deep_forward.4} parent=5 // pred_check_branch
      %187 = sbr.rel (%p184) target = $region12
    $region11: #{gat_ordered_deep_forward.4} parent=5 // pred_region
      %s188 = ssub.s32 %s12, 1
      // Predicated region
      $region13: #{gat_ordered_deep_forward.4} parent=11 // pred_check
        %p189 = pneg %p33
      $region14: #{gat_ordered_deep_forward.4} parent=11 // pred_check_branch
        %191 = sbr.rel (%p189) target = $region16
      $region15: #{gat_ordered_deep_forward.4} parent=11 // pred_region
        _
      $region16: #{gat_ordered_deep_forward.4} parent=11 // pred_fallthru
        _
      // Predicated region
      $region17: #{gat_ordered_deep_forward.4} parent=11 // pred_check
        %p192 = pneg %p106
      $region18: #{gat_ordered_deep_forward.4} parent=11 // pred_check_branch
        %194 = sbr.rel (%p192) target = $region20
      $region19: #{gat_ordered_deep_forward.4} parent=11 // pred_region
        _
      $region20: #{gat_ordered_deep_forward.4} parent=11 // pred_fallthru
        _
      // Predicated region
      $region21: #{gat_ordered_deep_forward.4} parent=11 // pred_check
        %p195 = pneg %p127
      $region22: #{gat_ordered_deep_forward.4} parent=11 // pred_check_branch
        %197 = sbr.rel (%p195) target = $region24
      $region23: #{gat_ordered_deep_forward.4} parent=11 // pred_region
        _
      $region24: #{gat_ordered_deep_forward.4} parent=11 // pred_fallthru
        _
      // Predicated region
      $region25: #{gat_ordered_deep_forward.4} parent=11 // pred_check
        %p198 = pneg %p148
      $region26: #{gat_ordered_deep_forward.4} parent=11 // pred_check_branch
        %200 = sbr.rel (%p198) target = $region28
      $region27: #{gat_ordered_deep_forward.4} parent=11 // pred_region
        _
      $region28: #{gat_ordered_deep_forward.4} parent=11 // pred_fallthru
        _
    $region12: #{gat_ordered_deep_forward.4} parent=5 // pred_fallthru
      _
    %p201 = scmp.lt.s32.totalorder %s12, 2
    // Predicated region
    $region29: #{gat_ordered_deep_forward.4} parent=5 // pred_check
      %p202 = pneg %p201
    $region30: #{gat_ordered_deep_forward.4} parent=5 // pred_check_branch
      %204 = sbr.rel (%p202) target = $region32
    $region31: #{gat_ordered_deep_forward.4} parent=5 // pred_region
      // Predicated region
      $region33: #{gat_ordered_deep_forward.4} parent=31 // pred_check
        %p205 = pneg %p53
      $region34: #{gat_ordered_deep_forward.4} parent=31 // pred_check_branch
        %207 = sbr.rel (%p205) target = $region36
      $region35: #{gat_ordered_deep_forward.4} parent=31 // pred_region
        %s208 = smul.u32 4, %s12
        %p209 = scmp.lt.s32.totalorder %s208, 7
        %s210 = scalar_select %p209, %s208, 7
        %s211 = smul.addr %s210, 8
        %s212 = scalar_lea.vmem %s1, %s211
        %s213 = smul.u32 4, %s12
      $region36: #{gat_ordered_deep_forward.4} parent=31 // pred_fallthru
        _
      // Predicated region
      $region37: #{gat_ordered_deep_forward.4} parent=31 // pred_check
        %p214 = pneg %p79
      $region38: #{gat_ordered_deep_forward.4} parent=31 // pred_check_branch
        %216 = sbr.rel (%p214) target = $region40
      $region39: #{gat_ordered_deep_forward.4} parent=31 // pred_region
        %s217 = smul.u32 4, %s12
        %p218 = scmp.lt.s32.totalorder %s217, 7
        %s219 = scalar_select %p218, %s217, 7
        %s220 = smul.addr %s219, 4
        %s221 = scalar_lea.vmem %s2, %s220
        %s222 = smul.u32 4, %s12
      $region40: #{gat_ordered_deep_forward.4} parent=31 // pred_fallthru
        _
    $region32: #{gat_ordered_deep_forward.4} parent=5 // pred_fallthru
      _
    %p223 = scmp.le.s32.totalorder 1, %s12
    %p224 = scmp.lt.s32.totalorder %s12, 3
    %p225 = pnand %p223, %p224
    %p226 = pneg %p225
    // Predicated region
    $region41: #{gat_ordered_deep_forward.4} parent=5 // pred_check
      _
    $region42: #{gat_ordered_deep_forward.4} parent=5 // pred_check_branch
      %228 = sbr.rel (%p225) target = $region44
    $region43: #{gat_ordered_deep_forward.4} parent=5 // pred_region
      %s229 = ssub.s32 %s12, 1
      %p230 = pneg %p33
      %p231 = pneg %p30
      %s232 = smul.u32 4, %s17
      %p233 = scmp.lt.s32.totalorder %s232, 7
      %s234 = scalar_select %p233, %s232, 7
      %s235 = smul.addr %s234, 8
      %s236 = scalar_lea.vmem %s1, %s235
      %p237 = pneg %p59
      %p238 = pneg %p56
      %s239 = smul.u32 4, %s17
      %p240 = scmp.lt.s32.totalorder %s239, 7
      %s241 = scalar_select %p240, %s239, 7
      %s242 = smul.addr %s241, 4
      %s243 = scalar_lea.vmem %s2, %s242
      %p244 = pneg %p85
      %p245 = pneg %p82
      %p246 = pneg %p106
      %p247 = pneg %p103
      %p248 = pneg %p127
      %p249 = pneg %p124
      %p250 = pneg %p148
      %p251 = pneg %p145
      %p252 = pneg %p174
      %p253 = pneg %p171
      %s254 = smul.u32 4, %s17
      %p255 = scmp.lt.s32.totalorder %s254, 7
      %s256 = scalar_select %p255, %s254, 7
      %s257 = smul.addr %s256, 8
      %s258 = scalar_lea.vmem %s6, %s257
      %s259 = smul.u32 4, %s17
      %p260 = scmp.lt.s32.totalorder %s259, 7
      %s261 = scalar_select %p260, %s259, 7
      %s262 = smul.addr %s261, 8
      %s263 = scalar_lea.vmem %s1, %s262
      %s264 = smul.u32 4, %s17
      %s265 = smul.u32 4, %s17
      %p266 = scmp.lt.s32.totalorder %s265, 7
      %s267 = scalar_select %p266, %s265, 7
      %s268 = smul.addr %s267, 4
      %s269 = scalar_lea.vmem %s2, %s268
      %s270 = smul.u32 4, %s17
      %s271 = smul.u32 4, %s17
      %p272 = scmp.lt.s32.totalorder %s271, 7
      %s273 = scalar_select %p272, %s271, 7
      %s274 = smul.addr %s273, 8
      %s275 = scalar_lea.vmem %s6, %s274
      %s276 = smul.u32 4, %s17
      %v280 = vld [vmem:[%s0] sm:$0xff]
      %v281 = vld [vmem:[%s0 + $0x8] sm:$0xff]
      %v282 = vld [vmem:[%s0 + $0x10] sm:$0xff]
      %v283 = vld [vmem:[%s0 + $0x18] sm:$0xff]
      %v284 = vld [vmem:[%s0 + $0x20] sm:$0xff]
      %v285 = vld [vmem:[%s0 + $0x28] sm:$0xff]
      %v286 = vld [vmem:[%s0 + $0x30] sm:$0xff]
      %v287 = vld [vmem:[%s0 + $0x38] sm:$0xff]
      %v288 = vpack.c.bf16 %v281, %v280
      %v289 = vpack.c.bf16 %v283, %v282
      %v290 = vpack.c.bf16 %v285, %v284
      %v291 = vpack.c.bf16 %v287, %v286
      %v292 = vld [vmem:[%s263] sm:$0xff]
      %v293 = vld [vmem:[%s263 + $0x8] sm:$0xff]
      %v294 = vld [vmem:[%s263 + $0x10] sm:$0xff]
      %v295 = vld [vmem:[%s263 + $0x18] sm:$0xff]
      %v296 = vpack.c.bf16 %v293, %v292
      %v297 = vpack.c.bf16 %v295, %v294
      %v298 = vld [vmem:[%s269] sm:$0xf]
      %v299 = vld [vmem:[%s269 + $0x4] sm:$0xf]
      %v300 = vld [vmem:[%s269 + $0x8] sm:$0xf]
      %v301 = vld [vmem:[%s269 + $0xc] sm:$0xf]
      %vm302 = vcmp.gt.bf16.partialorder %v298, 0
      %vm303 = vcmp.gt.bf16.partialorder %v299, 0
      %vm304 = vcmp.gt.bf16.partialorder %v300, 0
      %vm305 = vcmp.gt.bf16.partialorder %v301, 0
      %v306 = vld [vmem:[%s3] sm:$0xf]
      %v307 = vld [vmem:[%s3 + $0x4] sm:$0xf]
      %v308 = vld [vmem:[%s3 + $0x8] sm:$0xf]
      %v309 = vld [vmem:[%s3 + $0xc] sm:$0xf]
      %v310 = vld [vmem:[%s3 + $0x10] sm:$0xf]
      %v311 = vld [vmem:[%s3 + $0x14] sm:$0xf]
      %v312 = vld [vmem:[%s3 + $0x18] sm:$0xf]
      %v313 = vld [vmem:[%s3 + $0x1c] sm:$0xf]
      %v314 = vld [vmem:[%s3 + $0x20] sm:$0xf]
      %v315 = vld [vmem:[%s3 + $0x24] sm:$0xf]
      %v316 = vld [vmem:[%s3 + $0x28] sm:$0xf]
      %v317 = vld [vmem:[%s3 + $0x2c] sm:$0xf]
      %v318 = vld [vmem:[%s3 + $0x30] sm:$0xf]
      %v319 = vld [vmem:[%s3 + $0x34] sm:$0xf]
      %v320 = vld [vmem:[%s3 + $0x38] sm:$0xf]
      %v321 = vld [vmem:[%s3 + $0x3c] sm:$0xf]
      %v322 = vld [vmem:[%s4] sm:$0x1]
      %v323 = vld [vmem:[%s5] sm:$0x1]
      %v340 = vunpack.c.l.b16 %v306
      %v341 = vunpack.c.l.b16 %v307
      %v342 = vunpack.c.l.b16 %v308
      %v343 = vunpack.c.l.b16 %v309
      %v344 = vunpack.c.l.b16 %v310
      %v345 = vunpack.c.l.b16 %v311
      %v346 = vunpack.c.l.b16 %v312
      %v347 = vunpack.c.l.b16 %v313
      %v348 = vunpack.c.l.b16 %v314
      %v349 = vunpack.c.l.b16 %v315
      %v350 = vunpack.c.l.b16 %v316
      %v351 = vunpack.c.l.b16 %v317
      %v352 = vunpack.c.l.b16 %v318
      %v353 = vunpack.c.l.b16 %v319
      %v354 = vunpack.c.l.b16 %v320
      %v355 = vunpack.c.l.b16 %v321
      %v356 = vpack.c.b16 %v341, %v340
      %v357 = vpack.c.b16 %v343, %v342
      %v358 = vpack.c.b16 %v345, %v344
      %v359 = vpack.c.b16 %v347, %v346
      %v360 = vpack.c.b16 %v349, %v348
      %v361 = vpack.c.b16 %v351, %v350
      %v362 = vpack.c.b16 %v353, %v352
      %v363 = vpack.c.b16 %v355, %v354
      %372 = vmatprep.subr.bf16.mxu0 0
      %373 = vmatpush1.bf16.msra.mxu0 %v356
      %374 = vmatprep.subr.bf16.mxu0 0
      %375 = vmatpush1.bf16.msra.mxu0 %v357
      %376 = vmatprep.subr.bf16.mxu0 0
      %377 = vmatpush1.bf16.msra.mxu0 %v358
      %378 = vmatprep.subr.bf16.mxu0 0
      %379 = vmatpush1.bf16.msra.mxu0 %v359
      %380 = vmatprep.subr.bf16.mxu0 0
      %381 = vmatpush1.bf16.msra.mxu0 %v360
      %382 = vmatprep.subr.bf16.mxu0 0
      %383 = vmatpush1.bf16.msra.mxu0 %v361
      %384 = vmatprep.subr.bf16.mxu0 0
      %385 = vmatpush1.bf16.msra.mxu0 %v362
      %386 = vmatprep.subr.bf16.mxu0 0
      %387 = vmatpush1.bf16.msra.mxu0 %v363
      %388 = vmatprep.subr.bf16.mxu0 0
      %389 = vmatpush1.bf16.msra.mxu0 0
      %390 = vmatprep.subr.bf16.mxu0 0
      %391 = vmatpush1.bf16.msra.mxu0 0
      %392 = vmatprep.subr.bf16.mxu0 0
      %393 = vmatpush1.bf16.msra.mxu0 0
      %394 = vmatprep.subr.bf16.mxu0 0
      %395 = vmatpush1.bf16.msra.mxu0 0
      %396 = vmatprep.subr.bf16.mxu0 0
      %397 = vmatpush1.bf16.msra.mxu0 0
      %398 = vmatprep.subr.bf16.mxu0 0
      %399 = vmatpush1.bf16.msra.mxu0 0
      %400 = vmatprep.subr.bf16.mxu0 0
      %401 = vmatpush1.bf16.msra.mxu0 0
      %402 = vmatprep.subr.bf16.mxu0 0
      %403 = vmatpush1.bf16.msra.mxu0 0
      %404 = vmatprep.mubr.bf16.mxu0 0
      %405 = vmatmul.mubr.bf16.gmra.mrb[0].mxu0 %v288
      %v406 = vpop.f32.mrb[0].mxu0
      %v407 = vadd.f32 0.0, %v406
      %v408 = vpop.f32.mrb[0].mxu0
      %v409 = vpop.f32.mrb[0].mxu0
      %v410 = vadd.f32 0.0, %v409
      %v411 = vpop.f32.mrb[0].mxu0
      %412 = vmatprep.mubr.bf16.mxu0 0
      %413 = vmatmul.mubr.bf16.gmra.mrb[0].mxu0 %v289
      %v414 = vpop.f32.mrb[0].mxu0
      %v415 = vadd.f32 0.0, %v414
      %v416 = vpop.f32.mrb[0].mxu0
      %v417 = vpop.f32.mrb[0].mxu0
      %v418 = vadd.f32 0.0, %v417
      %v419 = vpop.f32.mrb[0].mxu0
      %420 = vmatprep.mubr.bf16.mxu0 0
      %421 = vmatmul.mubr.bf16.gmra.mrb[0].mxu0 %v290
      %v422 = vpop.f32.mrb[0].mxu0
      %v423 = vadd.f32 0.0, %v422
      %v424 = vpop.f32.mrb[0].mxu0
      %v425 = vpop.f32.mrb[0].mxu0
      %v426 = vadd.f32 0.0, %v425
      %v427 = vpop.f32.mrb[0].mxu0
      %428 = vmatprep.mubr.bf16.mxu0 0
      %429 = vmatmul.mubr.bf16.gmra.mrb[0].mxu0 %v291
      %v430 = vpop.f32.mrb[0].mxu0
      %v431 = vadd.f32 0.0, %v430
      %v432 = vpop.f32.mrb[0].mxu0
      %v433 = vpop.f32.mrb[0].mxu0
      %v434 = vadd.f32 0.0, %v433
      %v435 = vpop.f32.mrb[0].mxu0
      %436 = vdwg.mxu0
      %437 = vmatprep.subr.bf16.mxu0 0
      %438 = vmatpush1.bf16.msra.mxu0 %v356
      %439 = vmatprep.subr.bf16.mxu0 0
      %440 = vmatpush1.bf16.msra.mxu0 %v357
      %441 = vmatprep.subr.bf16.mxu0 0
      %442 = vmatpush1.bf16.msra.mxu0 %v358
      %443 = vmatprep.subr.bf16.mxu0 0
      %444 = vmatpush1.bf16.msra.mxu0 %v359
      %445 = vmatprep.subr.bf16.mxu0 0
      %446 = vmatpush1.bf16.msra.mxu0 %v360
      %447 = vmatprep.subr.bf16.mxu0 0
      %448 = vmatpush1.bf16.msra.mxu0 %v361
      %449 = vmatprep.subr.bf16.mxu0 0
      %450 = vmatpush1.bf16.msra.mxu0 %v362
      %451 = vmatprep.subr.bf16.mxu0 0
      %452 = vmatpush1.bf16.msra.mxu0 %v363
      %453 = vmatprep.subr.bf16.mxu0 0
      %454 = vmatpush1.bf16.msra.mxu0 0
      %455 = vmatprep.subr.bf16.mxu0 0
      %456 = vmatpush1.bf16.msra.mxu0 0
      %457 = vmatprep.subr.bf16.mxu0 0
      %458 = vmatpush1.bf16.msra.mxu0 0
      %459 = vmatprep.subr.bf16.mxu0 0
      %460 = vmatpush1.bf16.msra.mxu0 0
      %461 = vmatprep.subr.bf16.mxu0 0
      %462 = vmatpush1.bf16.msra.mxu0 0
      %463 = vmatprep.subr.bf16.mxu0 0
      %464 = vmatpush1.bf16.msra.mxu0 0
      %465 = vmatprep.subr.bf16.mxu0 0
      %466 = vmatpush1.bf16.msra.mxu0 0
      %467 = vmatprep.subr.bf16.mxu0 0
      %468 = vmatpush1.bf16.msra.mxu0 0
      %469 = vmatprep.mubr.bf16.mxu0 0
      %470 = vmatmul.mubr.bf16.gmra.mrb[0].mxu0 %v296
      %v471 = vpop.f32.mrb[0].mxu0
      %v472 = vadd.f32 0.0, %v471
      %v473 = vpop.f32.mrb[0].mxu0
      %v474 = vpop.f32.mrb[0].mxu0
      %v475 = vadd.f32 0.0, %v474
      %v476 = vpop.f32.mrb[0].mxu0
      %477 = vmatprep.mubr.bf16.mxu0 0
      %478 = vmatmul.mubr.bf16.gmra.mrb[0].mxu0 %v297
      %v479 = vpop.f32.mrb[0].mxu0
      %v480 = vadd.f32 0.0, %v479
      %v481 = vpop.f32.mrb[0].mxu0
      %v482 = vpop.f32.mrb[0].mxu0
      %v483 = vadd.f32 0.0, %v482
      %v484 = vpop.f32.mrb[0].mxu0
      %485 = vdwg.mxu0
      %v487 = vlaneseq
      %v488 = vshrl.u32 %v487, 7
      %v489 = vsub.s32 0, %v488
      %v490 = vrot.slane %v322, %v489
      %v492 = vmul.f32 %v472, %v490
      %v493 = vmul.f32 %v475, %v490
      %v494 = vmul.f32 %v480, %v490
      %v495 = vmul.f32 %v483, %v490
      %vm496 = vcmask 261120
      %v497 = vsel %vm496, %v492, 0.0
      %498 = vadd.xlane.f32.xlu0 %v497
      %v499 = vpop.xlane.xlu0 %498
      %v500 = vsel %vm496, %v493, 0.0
      %501 = vadd.xlane.f32.xlu0 %v500
      %v502 = vpop.xlane.xlu0 %501
      %v503 = vsel %vm496, %v494, 0.0
      %504 = vadd.xlane.f32.xlu0 %v503
      %v505 = vpop.xlane.xlu0 %504
      %v506 = vsel %vm496, %v495, 0.0
      %507 = vadd.xlane.f32.xlu0 %v506
      %v508 = vpop.xlane.xlu0 %507
      %v510 = vsel %vm496, %v323, 0
      %v513 = vsel %vm496, %v407, 0
      %v516 = vsel %vm496, %v410, 0
      %v519 = vsel %vm496, %v415, 0
      %v522 = vsel %vm496, %v418, 0
      %v525 = vsel %vm496, %v423, 0
      %v528 = vsel %vm496, %v426, 0
      %v531 = vsel %vm496, %v431, 0
      %v534 = vsel %vm496, %v434, 0
      %536 = vmatprep.subr.mxu0 0.0
      %537 = vmatpush1.xpose.msra.mxu0 %v513
      %538 = vmatprep.subr.mxu0 0.0
      %539 = vmatpush1.xpose.msra.mxu0 %v516
      %540 = vmatprep.subr.mxu0 0.0
      %541 = vmatpush1.xpose.msra.mxu0 %v519
      %542 = vmatprep.subr.mxu0 0.0
      %543 = vmatpush1.xpose.msra.mxu0 %v522
      %544 = vmatprep.subr.mxu0 0.0
      %545 = vmatpush1.xpose.msra.mxu0 %v525
      %546 = vmatprep.subr.mxu0 0.0
      %547 = vmatpush1.xpose.msra.mxu0 %v528
      %548 = vmatprep.subr.mxu0 0.0
      %549 = vmatpush1.xpose.msra.mxu0 %v531
      %550 = vmatprep.subr.mxu0 0.0
      %551 = vmatpush1.xpose.msra.mxu0 %v534
      %552 = vmatprep.subr.mxu0 0.0
      %553 = vmatpush1.xpose.msra.mxu0 0.0
      %554 = vmatprep.subr.mxu0 0.0
      %555 = vmatpush1.xpose.msra.mxu0 0.0
      %556 = vmatprep.subr.mxu0 0.0
      %557 = vmatpush1.xpose.msra.mxu0 0.0
      %558 = vmatprep.subr.mxu0 0.0
      %559 = vmatpush1.xpose.msra.mxu0 0.0
      %560 = vmatprep.subr.mxu0 0.0
      %561 = vmatpush1.xpose.msra.mxu0 0.0
      %562 = vmatprep.subr.mxu0 0.0
      %563 = vmatpush1.xpose.msra.mxu0 0.0
      %564 = vmatprep.subr.mxu0 0.0
      %565 = vmatpush1.xpose.msra.mxu0 0.0
      %566 = vmatprep.subr.mxu0 0.0
      %567 = vmatpush1.xpose.msra.mxu0 0.0
      %568 = vmatprep.subr.mxu0 0.0
      %569 = vmatpush1.xpose.msra.mxu0 0.0
      %570 = vmatprep.subr.mxu0 0.0
      %571 = vmatpush1.xpose.msra.mxu0 0.0
      %572 = vmatprep.subr.mxu0 0.0
      %573 = vmatpush1.xpose.msra.mxu0 0.0
      %574 = vmatprep.subr.mxu0 0.0
      %575 = vmatpush1.xpose.msra.mxu0 0.0
      %576 = vmatprep.subr.mxu0 0.0
      %577 = vmatpush1.xpose.msra.mxu0 0.0
      %578 = vmatprep.subr.mxu0 0.0
      %579 = vmatpush1.xpose.msra.mxu0 0.0
      %580 = vmatprep.subr.mxu0 0.0
      %581 = vmatpush1.xpose.msra.mxu0 0.0
      %582 = vmatprep.subr.mxu0 0.0
      %583 = vmatpush1.xpose.msra.mxu0 0.0
      %584 = vmatprep.subr.mxu0 0.0
      %585 = vmatpush1.xpose.msra.mxu0 0.0
      %586 = vmatprep.subr.mxu0 0.0
      %587 = vmatpush1.xpose.msra.mxu0 0.0
      %588 = vmatprep.subr.mxu0 0.0
      %589 = vmatpush1.xpose.msra.mxu0 0.0
      %590 = vmatprep.subr.mxu0 0.0
      %591 = vmatpush1.xpose.msra.mxu0 0.0
      %592 = vmatprep.subr.mxu0 0.0
      %593 = vmatpush1.xpose.msra.mxu0 0.0
      %594 = vmatprep.subr.mxu0 0.0
      %595 = vmatpush1.xpose.msra.mxu0 0.0
      %596 = vmatprep.subr.mxu0 0.0
      %597 = vmatpush1.xpose.msra.mxu0 0.0
      %598 = vmatprep.subr.mxu0 0.0
      %599 = vmatpush1.xpose.msra.mxu0 0.0
      %600 = vmatprep.mubr.f32.mxu0 0.0
      %601 = vmatmul.mubr.f32.gmra.mrb[0].mxu0 %v510
      %v602 = vpop.f32.mrb[0].mxu0
      %v603 = vadd.f32 0.0, %v602
      %v604 = vpop.f32.mrb[0].mxu0
      %605 = vdwg.mxu0
      %v606 = vlaneseq
      %v607 = vshrl.u32 %v606, 7
      %v608 = vsub.s32 0, %v607
      %v609 = vrot.slane %v603, %v608
      %v610 = vadd.f32 %v499, %v609
      %v611 = vadd.f32 %v502, %v609
      %v612 = vadd.f32 %v505, %v609
      %v613 = vadd.f32 %v508, %v609
      %vm614 = vcmp.gt.f32.partialorder %v610, 0.0
      %vm615 = vcmp.gt.f32.partialorder %v611, 0.0
      %vm616 = vcmp.gt.f32.partialorder %v612, 0.0
      %vm617 = vcmp.gt.f32.partialorder %v613, 0.0
      %v618 = vmul.f32 %v610, 0.2
      %v619 = vmul.f32 %v611, 0.2
      %v620 = vmul.f32 %v612, 0.2
      %v621 = vmul.f32 %v613, 0.2
      %v622 = vsel %vm614, %v610, %v618
      %v623 = vsel %vm615, %v611, %v619
      %v624 = vsel %vm616, %v612, %v620
      %v625 = vsel %vm617, %v613, %v621
      %v626 = vsel %vm302, 65537, 0
      %v627 = vsel %vm303, 65537, 0
      %v628 = vsel %vm304, 65537, 0
      %v629 = vsel %vm305, 65537, 0
      %v630 = vunpack.c.l.b16 %v626
      %v631 = vunpack.c.l.b16 %v627
      %v632 = vunpack.c.l.b16 %v628
      %v633 = vunpack.c.l.b16 %v629
      %vm634 = vcmp.ne.s32.totalorder %v630, 0
      %vm635 = vcmp.ne.s32.totalorder %v631, 0
      %vm636 = vcmp.ne.s32.totalorder %v632, 0
      %vm637 = vcmp.ne.s32.totalorder %v633, 0
      %v638 = vsel %vm634, %v622, -9e+15
      %v639 = vsel %vm635, %v623, -9e+15
      %v640 = vsel %vm636, %v624, -9e+15
      %v641 = vsel %vm637, %v625, -9e+15
      %vm642 = vcmask 523264
      %v643 = vsel %vm642, %v638, -inf
      %644 = vmax.xlane.f32.xlu0 %v643
      %v645 = vpop.xlane.xlu0 %644
      %v646 = vsel %vm642, %v639, -inf
      %647 = vmax.xlane.f32.xlu0 %v646
      %v648 = vpop.xlane.xlu0 %647
      %v649 = vsel %vm642, %v640, -inf
      %650 = vmax.xlane.f32.xlu0 %v649
      %v651 = vpop.xlane.xlu0 %650
      %v652 = vsel %vm642, %v641, -inf
      %653 = vmax.xlane.f32.xlu0 %v652
      %v654 = vpop.xlane.xlu0 %653
      %v655 = vsub.f32 %v638, %v645
      %v656 = vsub.f32 %v639, %v648
      %v657 = vsub.f32 %v640, %v651
      %v658 = vsub.f32 %v641, %v654
      %v659 = vmul.f32 %v655, 1.442695
      %v660 = vpow.pop %v659
      %v661 = vmul.f32 %v656, 1.442695
      %v662 = vpow.pop %v661
      %v663 = vmul.f32 %v657, 1.442695
      %v664 = vpow.pop %v663
      %v665 = vmul.f32 %v658, 1.442695
      %v666 = vpow.pop %v665
      %v667 = vsel %vm642, %v660, 0.0
      %668 = vadd.xlane.f32.xlu0 %v667
      %v669 = vpop.xlane.xlu0 %668
      %v670 = vsel %vm642, %v662, 0.0
      %671 = vadd.xlane.f32.xlu0 %v670
      %v672 = vpop.xlane.xlu0 %671
      %v673 = vsel %vm642, %v664, 0.0
      %674 = vadd.xlane.f32.xlu0 %v673
      %v675 = vpop.xlane.xlu0 %674
      %v676 = vsel %vm642, %v666, 0.0
      %677 = vadd.xlane.f32.xlu0 %v676
      %v678 = vpop.xlane.xlu0 %677
      %v679 = vrcp.pop %v669
      %v680 = vrcp.pop %v672
      %v681 = vrcp.pop %v675
      %v682 = vrcp.pop %v678
      %v683 = vmul.f32 %v660, %v679
      %v684 = vmul.f32 %v662, %v680
      %v685 = vmul.f32 %v664, %v681
      %v686 = vmul.f32 %v666, %v682
      %v687 = vpack.c.bf16 %v684, %v683
      %v688 = vpack.c.bf16 %v686, %v685
      %v689 = vpack.c.bf16 %v410, %v407
      %v690 = vpack.c.bf16 %v418, %v415
      %v691 = vpack.c.bf16 %v426, %v423
      %v692 = vpack.c.bf16 %v434, %v431
      %v694 = vsel %vm642, %v687, 0
      %v697 = vsel %vm642, %v688, 0
      %699 = vmatprep.subr.bf16.mxu0 0
      %700 = vmatpush1.bf16.msra.mxu0 %v689
      %701 = vmatprep.subr.bf16.mxu0 0
      %702 = vmatpush1.bf16.msra.mxu0 %v690
      %703 = vmatprep.subr.bf16.mxu0 0
      %704 = vmatpush1.bf16.msra.mxu0 %v691
      %705 = vmatprep.subr.bf16.mxu0 0
      %706 = vmatpush1.bf16.msra.mxu0 %v692
      %707 = vmatprep.subr.bf16.mxu0 0
      %708 = vmatpush1.bf16.msra.mxu0 0
      %709 = vmatprep.subr.bf16.mxu0 0
      %710 = vmatpush1.bf16.msra.mxu0 0
      %711 = vmatprep.subr.bf16.mxu0 0
      %712 = vmatpush1.bf16.msra.mxu0 0
      %713 = vmatprep.subr.bf16.mxu0 0
      %714 = vmatpush1.bf16.msra.mxu0 0
      %715 = vmatprep.subr.bf16.mxu0 0
      %716 = vmatpush1.bf16.msra.mxu0 0
      %717 = vmatprep.subr.bf16.mxu0 0
      %718 = vmatpush1.bf16.msra.mxu0 0
      %719 = vmatprep.subr.bf16.mxu0 0
      %720 = vmatpush1.bf16.msra.mxu0 0
      %721 = vmatprep.subr.bf16.mxu0 0
      %722 = vmatpush1.bf16.msra.mxu0 0
      %723 = vmatprep.subr.bf16.mxu0 0
      %724 = vmatpush1.bf16.msra.mxu0 0
      %725 = vmatprep.subr.bf16.mxu0 0
      %726 = vmatpush1.bf16.msra.mxu0 0
      %727 = vmatprep.subr.bf16.mxu0 0
      %728 = vmatpush1.bf16.msra.mxu0 0
      %729 = vmatprep.subr.bf16.mxu0 0
      %730 = vmatpush1.bf16.msra.mxu0 0
      %731 = vmatprep.mubr.bf16.mxu0 0
      %732 = vmatmul.mubr.bf16.gmra.mrb[0].mxu0 %v694
      %v733 = vpop.f32.mrb[0].mxu0
      %v734 = vadd.f32 0.0, %v733
      %v735 = vpop.f32.mrb[0].mxu0
      %v736 = vpop.f32.mrb[0].mxu0
      %v737 = vadd.f32 0.0, %v736
      %v738 = vpop.f32.mrb[0].mxu0
      %739 = vmatprep.mubr.bf16.mxu0 0
      %740 = vmatmul.mubr.bf16.gmra.mrb[0].mxu0 %v697
      %v741 = vpop.f32.mrb[0].mxu0
      %v742 = vadd.f32 0.0, %v741
      %v743 = vpop.f32.mrb[0].mxu0
      %v744 = vpop.f32.mrb[0].mxu0
      %v745 = vadd.f32 0.0, %v744
      %v746 = vpop.f32.mrb[0].mxu0
      %747 = vdwg.mxu0
      %s748 = scalar_lea.vmem %s3, 64
      %v749 = vld [vmem:[%s748] sm:$0xf]
      %v750 = vld [vmem:[%s748 + $0x4] sm:$0xf]
      %v751 = vld [vmem:[%s748 + $0x8] sm:$0xf]
      %v752 = vld [vmem:[%s748 + $0xc] sm:$0xf]
      %v753 = vld [vmem:[%s748 + $0x10] sm:$0xf]
      %v754 = vld [vmem:[%s748 + $0x14] sm:$0xf]
      %v755 = vld [vmem:[%s748 + $0x18] sm:$0xf]
      %v756 = vld [vmem:[%s748 + $0x1c] sm:$0xf]
      %v757 = vld [vmem:[%s748 + $0x20] sm:$0xf]
      %v758 = vld [vmem:[%s748 + $0x24] sm:$0xf]
      %v759 = vld [vmem:[%s748 + $0x28] sm:$0xf]
      %v760 = vld [vmem:[%s748 + $0x2c] sm:$0xf]
      %v761 = vld [vmem:[%s748 + $0x30] sm:$0xf]
      %v762 = vld [vmem:[%s748 + $0x34] sm:$0xf]
      %v763 = vld [vmem:[%s748 + $0x38] sm:$0xf]
      %v764 = vld [vmem:[%s748 + $0x3c] sm:$0xf]
      %s765 = scalar_lea.vmem %s4, 1
      %v766 = vld [vmem:[%s765] sm:$0x1]
      %s767 = scalar_lea.vmem %s5, 1
      %v768 = vld [vmem:[%s767] sm:$0x1]
      %v785 = vunpack.c.l.b16 %v749
      %v786 = vunpack.c.l.b16 %v750
      %v787 = vunpack.c.l.b16 %v751
      %v788 = vunpack.c.l.b16 %v752
      %v789 = vunpack.c.l.b16 %v753
      %v790 = vunpack.c.l.b16 %v754
      %v791 = vunpack.c.l.b16 %v755
      %v792 = vunpack.c.l.b16 %v756
      %v793 = vunpack.c.l.b16 %v757
      %v794 = vunpack.c.l.b16 %v758
      %v795 = vunpack.c.l.b16 %v759
      %v796 = vunpack.c.l.b16 %v760
      %v797 = vunpack.c.l.b16 %v761
      %v798 = vunpack.c.l.b16 %v762
      %v799 = vunpack.c.l.b16 %v763
      %v800 = vunpack.c.l.b16 %v764
      %v801 = vpack.c.b16 %v786, %v785
      %v802 = vpack.c.b16 %v788, %v787
      %v803 = vpack.c.b16 %v790, %v789
      %v804 = vpack.c.b16 %v792, %v791
      %v805 = vpack.c.b16 %v794, %v793
      %v806 = vpack.c.b16 %v796, %v795
      %v807 = vpack.c.b16 %v798, %v797
      %v808 = vpack.c.b16 %v800, %v799
      %817 = vmatprep.subr.bf16.mxu0 0
      %818 = vmatpush1.bf16.msra.mxu0 %v801
      %819 = vmatprep.subr.bf16.mxu0 0
      %820 = vmatpush1.bf16.msra.mxu0 %v802
      %821 = vmatprep.subr.bf16.mxu0 0
      %822 = vmatpush1.bf16.msra.mxu0 %v803
      %823 = vmatprep.subr.bf16.mxu0 0
      %824 = vmatpush1.bf16.msra.mxu0 %v804
      %825 = vmatprep.subr.bf16.mxu0 0
      %826 = vmatpush1.bf16.msra.mxu0 %v805
      %827 = vmatprep.subr.bf16.mxu0 0
      %828 = vmatpush1.bf16.msra.mxu0 %v806
      %829 = vmatprep.subr.bf16.mxu0 0
      %830 = vmatpush1.bf16.msra.mxu0 %v807
      %831 = vmatprep.subr.bf16.mxu0 0
      %832 = vmatpush1.bf16.msra.mxu0 %v808
      %833 = vmatprep.subr.bf16.mxu0 0
      %834 = vmatpush1.bf16.msra.mxu0 0
      %835 = vmatprep.subr.bf16.mxu0 0
      %836 = vmatpush1.bf16.msra.mxu0 0
      %837 = vmatprep.subr.bf16.mxu0 0
      %838 = vmatpush1.bf16.msra.mxu0 0
      %839 = vmatprep.subr.bf16.mxu0 0
      %840 = vmatpush1.bf16.msra.mxu0 0
      %841 = vmatprep.subr.bf16.mxu0 0
      %842 = vmatpush1.bf16.msra.mxu0 0
      %843 = vmatprep.subr.bf16.mxu0 0
      %844 = vmatpush1.bf16.msra.mxu0 0
      %845 = vmatprep.subr.bf16.mxu0 0
      %846 = vmatpush1.bf16.msra.mxu0 0
      %847 = vmatprep.subr.bf16.mxu0 0
      %848 = vmatpush1.bf16.msra.mxu0 0
      %849 = vmatprep.mubr.bf16.mxu0 0
      %850 = vmatmul.mubr.bf16.gmra.mrb[0].mxu0 %v288
      %v851 = vpop.f32.mrb[0].mxu0
      %v852 = vadd.f32 0.0, %v851
      %v853 = vpop.f32.mrb[0].mxu0
      %v854 = vpop.f32.mrb[0].mxu0
      %v855 = vadd.f32 0.0, %v854
      %v856 = vpop.f32.mrb[0].mxu0
      %857 = vmatprep.mubr.bf16.mxu0 0
      %858 = vmatmul.mubr.bf16.gmra.mrb[0].mxu0 %v289
      %v859 = vpop.f32.mrb[0].mxu0
      %v860 = vadd.f32 0.0, %v859
      %v861 = vpop.f32.mrb[0].mxu0
      %v862 = vpop.f32.mrb[0].mxu0
      %v863 = vadd.f32 0.0, %v862
      %v864 = vpop.f32.mrb[0].mxu0
      %865 = vmatprep.mubr.bf16.mxu0 0
      %866 = vmatmul.mubr.bf16.gmra.mrb[0].mxu0 %v290
      %v867 = vpop.f32.mrb[0].mxu0
      %v868 = vadd.f32 0.0, %v867
      %v869 = vpop.f32.mrb[0].mxu0
      %v870 = vpop.f32.mrb[0].mxu0
      %v871 = vadd.f32 0.0, %v870
      %v872 = vpop.f32.mrb[0].mxu0
      %873 = vmatprep.mubr.bf16.mxu0 0
      %874 = vmatmul.mubr.bf16.gmra.mrb[0].mxu0 %v291
      %v875 = vpop.f32.mrb[0].mxu0
      %v876 = vadd.f32 0.0, %v875
      %v877 = vpop.f32.mrb[0].mxu0
      %v878 = vpop.f32.mrb[0].mxu0
      %v879 = vadd.f32 0.0, %v878
      %v880 = vpop.f32.mrb[0].mxu0
      %881 = vdwg.mxu0
      %882 = vmatprep.subr.bf16.mxu0 0
      %883 = vmatpush1.bf16.msra.mxu0 %v801
      %884 = vmatprep.subr.bf16.mxu0 0
      %885 = vmatpush1.bf16.msra.mxu0 %v802
      %886 = vmatprep.subr.bf16.mxu0 0
      %887 = vmatpush1.bf16.msra.mxu0 %v803
      %888 = vmatprep.subr.bf16.mxu0 0
      %889 = vmatpush1.bf16.msra.mxu0 %v804
      %890 = vmatprep.subr.bf16.mxu0 0
      %891 = vmatpush1.bf16.msra.mxu0 %v805
      %892 = vmatprep.subr.bf16.mxu0 0
      %893 = vmatpush1.bf16.msra.mxu0 %v806
      %894 = vmatprep.subr.bf16.mxu0 0
      %895 = vmatpush1.bf16.msra.mxu0 %v807
      %896 = vmatprep.subr.bf16.mxu0 0
      %897 = vmatpush1.bf16.msra.mxu0 %v808
      %898 = vmatprep.subr.bf16.mxu0 0
      %899 = vmatpush1.bf16.msra.mxu0 0
      %900 = vmatprep.subr.bf16.mxu0 0
      %901 = vmatpush1.bf16.msra.mxu0 0
      %902 = vmatprep.subr.bf16.mxu0 0
      %903 = vmatpush1.bf16.msra.mxu0 0
      %904 = vmatprep.subr.bf16.mxu0 0
      %905 = vmatpush1.bf16.msra.mxu0 0
      %906 = vmatprep.subr.bf16.mxu0 0
      %907 = vmatpush1.bf16.msra.mxu0 0
      %908 = vmatprep.subr.bf16.mxu0 0
      %909 = vmatpush1.bf16.msra.mxu0 0
      %910 = vmatprep.subr.bf16.mxu0 0
      %911 = vmatpush1.bf16.msra.mxu0 0
      %912 = vmatprep.subr.bf16.mxu0 0
      %913 = vmatpush1.bf16.msra.mxu0 0
      %914 = vmatprep.mubr.bf16.mxu0 0
      %915 = vmatmul.mubr.bf16.gmra.mrb[0].mxu0 %v296
      %v916 = vpop.f32.mrb[0].mxu0
      %v917 = vadd.f32 0.0, %v916
      %v918 = vpop.f32.mrb[0].mxu0
      %v919 = vpop.f32.mrb[0].mxu0
      %v920 = vadd.f32 0.0, %v919
      %v921 = vpop.f32.mrb[0].mxu0
      %922 = vmatprep.mubr.bf16.mxu0 0
      %923 = vmatmul.mubr.bf16.gmra.mrb[0].mxu0 %v297
      %v924 = vpop.f32.mrb[0].mxu0
      %v925 = vadd.f32 0.0, %v924
      %v926 = vpop.f32.mrb[0].mxu0
      %v927 = vpop.f32.mrb[0].mxu0
      %v928 = vadd.f32 0.0, %v927
      %v929 = vpop.f32.mrb[0].mxu0
      %930 = vdwg.mxu0
      %v932 = vlaneseq
      %v933 = vshrl.u32 %v932, 7
      %v934 = vsub.s32 0, %v933
      %v935 = vrot.slane %v766, %v934
      %v937 = vmul.f32 %v917, %v935
      %v938 = vmul.f32 %v920, %v935
      %v939 = vmul.f32 %v925, %v935
      %v940 = vmul.f32 %v928, %v935
      %v941 = vsel %vm496, %v937, 0.0
      %942 = vadd.xlane.f32.xlu0 %v941
      %v943 = vpop.xlane.xlu0 %942
      %v944 = vsel %vm496, %v938, 0.0
      %945 = vadd.xlane.f32.xlu0 %v944
      %v946 = vpop.xlane.xlu0 %945
      %v947 = vsel %vm496, %v939, 0.0
      %948 = vadd.xlane.f32.xlu0 %v947
      %v949 = vpop.xlane.xlu0 %948
      %v950 = vsel %vm496, %v940, 0.0
      %951 = vadd.xlane.f32.xlu0 %v950
      %v952 = vpop.xlane.xlu0 %951
      %v954 = vsel %vm496, %v768, 0
      %v957 = vsel %vm496, %v852, 0
      %v960 = vsel %vm496, %v855, 0
      %v963 = vsel %vm496, %v860, 0
      %v966 = vsel %vm496, %v863, 0
      %v969 = vsel %vm496, %v868, 0
      %v972 = vsel %vm496, %v871, 0
      %v975 = vsel %vm496, %v876, 0
      %v978 = vsel %vm496, %v879, 0
      %980 = vmatprep.subr.mxu0 0.0
      %981 = vmatpush1.xpose.msra.mxu0 %v957
      %982 = vmatprep.subr.mxu0 0.0
      %983 = vmatpush1.xpose.msra.mxu0 %v960
      %984 = vmatprep.subr.mxu0 0.0
      %985 = vmatpush1.xpose.msra.mxu0 %v963
      %986 = vmatprep.subr.mxu0 0.0
      %987 = vmatpush1.xpose.msra.mxu0 %v966
      %988 = vmatprep.subr.mxu0 0.0
      %989 = vmatpush1.xpose.msra.mxu0 %v969
      %990 = vmatprep.subr.mxu0 0.0
      %991 = vmatpush1.xpose.msra.mxu0 %v972
      %992 = vmatprep.subr.mxu0 0.0
      %993 = vmatpush1.xpose.msra.mxu0 %v975
      %994 = vmatprep.subr.mxu0 0.0
      %995 = vmatpush1.xpose.msra.mxu0 %v978
      %996 = vmatprep.subr.mxu0 0.0
      %997 = vmatpush1.xpose.msra.mxu0 0.0
      %998 = vmatprep.subr.mxu0 0.0
      %999 = vmatpush1.xpose.msra.mxu0 0.0
      %1000 = vmatprep.subr.mxu0 0.0
      %1001 = vmatpush1.xpose.msra.mxu0 0.0
      %1002 = vmatprep.subr.mxu0 0.0
      %1003 = vmatpush1.xpose.msra.mxu0 0.0
      %1004 = vmatprep.subr.mxu0 0.0
      %1005 = vmatpush1.xpose.msra.mxu0 0.0
      %1006 = vmatprep.subr.mxu0 0.0
      %1007 = vmatpush1.xpose.msra.mxu0 0.0
      %1008 = vmatprep.subr.mxu0 0.0
      %1009 = vmatpush1.xpose.msra.mxu0 0.0
      %1010 = vmatprep.subr.mxu0 0.0
      %1011 = vmatpush1.xpose.msra.mxu0 0.0
      %1012 = vmatprep.subr.mxu0 0.0
      %1013 = vmatpush1.xpose.msra.mxu0 0.0
      %1014 = vmatprep.subr.mxu0 0.0
      %1015 = vmatpush1.xpose.msra.mxu0 0.0
      %1016 = vmatprep.subr.mxu0 0.0
      %1017 = vmatpush1.xpose.msra.mxu0 0.0
      %1018 = vmatprep.subr.mxu0 0.0
      %1019 = vmatpush1.xpose.msra.mxu0 0.0
      %1020 = vmatprep.subr.mxu0 0.0
      %1021 = vmatpush1.xpose.msra.mxu0 0.0
      %1022 = vmatprep.subr.mxu0 0.0
      %1023 = vmatpush1.xpose.msra.mxu0 0.0
      %1024 = vmatprep.subr.mxu0 0.0
      %1025 = vmatpush1.xpose.msra.mxu0 0.0
      %1026 = vmatprep.subr.mxu0 0.0
      %1027 = vmatpush1.xpose.msra.mxu0 0.0
      %1028 = vmatprep.subr.mxu0 0.0
      %1029 = vmatpush1.xpose.msra.mxu0 0.0
      %1030 = vmatprep.subr.mxu0 0.0
      %1031 = vmatpush1.xpose.msra.mxu0 0.0
      %1032 = vmatprep.subr.mxu0 0.0
      %1033 = vmatpush1.xpose.msra.mxu0 0.0
      %1034 = vmatprep.subr.mxu0 0.0
      %1035 = vmatpush1.xpose.msra.mxu0 0.0
      %1036 = vmatprep.subr.mxu0 0.0
      %1037 = vmatpush1.xpose.msra.mxu0 0.0
      %1038 = vmatprep.subr.mxu0 0.0
      %1039 = vmatpush1.xpose.msra.mxu0 0.0
      %1040 = vmatprep.subr.mxu0 0.0
      %1041 = vmatpush1.xpose.msra.mxu0 0.0
      %1042 = vmatprep.subr.mxu0 0.0
      %1043 = vmatpush1.xpose.msra.mxu0 0.0
      %1044 = vmatprep.mubr.f32.mxu0 0.0
      %1045 = vmatmul.mubr.f32.gmra.mrb[0].mxu0 %v954
      %v1046 = vpop.f32.mrb[0].mxu0
      %v1047 = vadd.f32 0.0, %v1046
      %v1048 = vpop.f32.mrb[0].mxu0
      %1049 = vdwg.mxu0
      %v1050 = vlaneseq
      %v1051 = vshrl.u32 %v1050, 7
      %v1052 = vsub.s32 0, %v1051
      %v1053 = vrot.slane %v1047, %v1052
      %v1054 = vadd.f32 %v943, %v1053
      %v1055 = vadd.f32 %v946, %v1053
      %v1056 = vadd.f32 %v949, %v1053
      %v1057 = vadd.f32 %v952, %v1053
      %vm1058 = vcmp.gt.f32.partialorder %v1054, 0.0
      %vm1059 = vcmp.gt.f32.partialorder %v1055, 0.0
      %vm1060 = vcmp.gt.f32.partialorder %v1056, 0.0
      %vm1061 = vcmp.gt.f32.partialorder %v1057, 0.0
      %v1062 = vmul.f32 %v1054, 0.2
      %v1063 = vmul.f32 %v1055, 0.2
      %v1064 = vmul.f32 %v1056, 0.2
      %v1065 = vmul.f32 %v1057, 0.2
      %v1066 = vsel %vm1058, %v1054, %v1062
      %v1067 = vsel %vm1059, %v1055, %v1063
      %v1068 = vsel %vm1060, %v1056, %v1064
      %v1069 = vsel %vm1061, %v1057, %v1065
      %v1070 = vsel %vm634, %v1066, -9e+15
      %v1071 = vsel %vm635, %v1067, -9e+15
      %v1072 = vsel %vm636, %v1068, -9e+15
      %v1073 = vsel %vm637, %v1069, -9e+15
      %v1074 = vsel %vm642, %v1070, -inf
      %1075 = vmax.xlane.f32.xlu0 %v1074
      %v1076 = vpop.xlane.xlu0 %1075
      %v1077 = vsel %vm642, %v1071, -inf
      %1078 = vmax.xlane.f32.xlu0 %v1077
      %v1079 = vpop.xlane.xlu0 %1078
      %v1080 = vsel %vm642, %v1072, -inf
      %1081 = vmax.xlane.f32.xlu0 %v1080
      %v1082 = vpop.xlane.xlu0 %1081
      %v1083 = vsel %vm642, %v1073, -inf
      %1084 = vmax.xlane.f32.xlu0 %v1083
      %v1085 = vpop.xlane.xlu0 %1084
      %v1086 = vsub.f32 %v1070, %v1076
      %v1087 = vsub.f32 %v1071, %v1079
      %v1088 = vsub.f32 %v1072, %v1082
      %v1089 = vsub.f32 %v1073, %v1085
      %v1090 = vmul.f32 %v1086, 1.442695
      %v1091 = vpow.pop %v1090
      %v1092 = vmul.f32 %v1087, 1.442695
      %v1093 = vpow.pop %v1092
      %v1094 = vmul.f32 %v1088, 1.442695
      %v1095 = vpow.pop %v1094
      %v1096 = vmul.f32 %v1089, 1.442695
      %v1097 = vpow.pop %v1096
      %v1098 = vsel %vm642, %v1091, 0.0
      %1099 = vadd.xlane.f32.xlu0 %v1098
      %v1100 = vpop.xlane.xlu0 %1099
      %v1101 = vsel %vm642, %v1093, 0.0
      %1102 = vadd.xlane.f32.xlu0 %v1101
      %v1103 = vpop.xlane.xlu0 %1102
      %v1104 = vsel %vm642, %v1095, 0.0
      %1105 = vadd.xlane.f32.xlu0 %v1104
      %v1106 = vpop.xlane.xlu0 %1105
      %v1107 = vsel %vm642, %v1097, 0.0
      %1108 = vadd.xlane.f32.xlu0 %v1107
      %v1109 = vpop.xlane.xlu0 %1108
      %v1110 = vrcp.pop %v1100
      %v1111 = vrcp.pop %v1103
      %v1112 = vrcp.pop %v1106
      %v1113 = vrcp.pop %v1109
      %v1114 = vmul.f32 %v1091, %v1110
      %v1115 = vmul.f32 %v1093, %v1111
      %v1116 = vmul.f32 %v1095, %v1112
      %v1117 = vmul.f32 %v1097, %v1113
      %v1118 = vpack.c.bf16 %v1115, %v1114
      %v1119 = vpack.c.bf16 %v1117, %v1116
      %v1120 = vpack.c.bf16 %v855, %v852
      %v1121 = vpack.c.bf16 %v863, %v860
      %v1122 = vpack.c.bf16 %v871, %v868
      %v1123 = vpack.c.bf16 %v879, %v876
      %v1125 = vsel %vm642, %v1118, 0
      %v1128 = vsel %vm642, %v1119, 0
      %1130 = vmatprep.subr.bf16.mxu0 0
      %1131 = vmatpush1.bf16.msra.mxu0 %v1120
      %1132 = vmatprep.subr.bf16.mxu0 0
      %1133 = vmatpush1.bf16.msra.mxu0 %v1121
      %1134 = vmatprep.subr.bf16.mxu0 0
      %1135 = vmatpush1.bf16.msra.mxu0 %v1122
      %1136 = vmatprep.subr.bf16.mxu0 0
      %1137 = vmatpush1.bf16.msra.mxu0 %v1123
      %1138 = vmatprep.subr.bf16.mxu0 0
      %1139 = vmatpush1.bf16.msra.mxu0 0
      %1140 = vmatprep.subr.bf16.mxu0 0
      %1141 = vmatpush1.bf16.msra.mxu0 0
      %1142 = vmatprep.subr.bf16.mxu0 0
      %1143 = vmatpush1.bf16.msra.mxu0 0
      %1144 = vmatprep.subr.bf16.mxu0 0
      %1145 = vmatpush1.bf16.msra.mxu0 0
      %1146 = vmatprep.subr.bf16.mxu0 0
      %1147 = vmatpush1.bf16.msra.mxu0 0
      %1148 = vmatprep.subr.bf16.mxu0 0
      %1149 = vmatpush1.bf16.msra.mxu0 0
      %1150 = vmatprep.subr.bf16.mxu0 0
      %1151 = vmatpush1.bf16.msra.mxu0 0
      %1152 = vmatprep.subr.bf16.mxu0 0
      %1153 = vmatpush1.bf16.msra.mxu0 0
      %1154 = vmatprep.subr.bf16.mxu0 0
      %1155 = vmatpush1.bf16.msra.mxu0 0
      %1156 = vmatprep.subr.bf16.mxu0 0
      %1157 = vmatpush1.bf16.msra.mxu0 0
      %1158 = vmatprep.subr.bf16.mxu0 0
      %1159 = vmatpush1.bf16.msra.mxu0 0
      %1160 = vmatprep.subr.bf16.mxu0 0
      %1161 = vmatpush1.bf16.msra.mxu0 0
      %1162 = vmatprep.mubr.bf16.mxu0 0
      %1163 = vmatmul.mubr.bf16.gmra.mrb[0].mxu0 %v1125
      %v1164 = vpop.f32.mrb[0].mxu0
      %v1165 = vadd.f32 0.0, %v1164
      %v1166 = vpop.f32.mrb[0].mxu0
      %v1167 = vpop.f32.mrb[0].mxu0
      %v1168 = vadd.f32 0.0, %v1167
      %v1169 = vpop.f32.mrb[0].mxu0
      %1170 = vmatprep.mubr.bf16.mxu0 0
      %1171 = vmatmul.mubr.bf16.gmra.mrb[0].mxu0 %v1128
      %v1172 = vpop.f32.mrb[0].mxu0
      %v1173 = vadd.f32 0.0, %v1172
      %v1174 = vpop.f32.mrb[0].mxu0
      %v1175 = vpop.f32.mrb[0].mxu0
      %v1176 = vadd.f32 0.0, %v1175
      %v1177 = vpop.f32.mrb[0].mxu0
      %1178 = vdwg.mxu0
      %s1179 = scalar_lea.vmem %s3, 128
      %v1180 = vld [vmem:[%s1179] sm:$0xf]
      %v1181 = vld [vmem:[%s1179 + $0x4] sm:$0xf]
      %v1182 = vld [vmem:[%s1179 + $0x8] sm:$0xf]
      %v1183 = vld [vmem:[%s1179 + $0xc] sm:$0xf]
      %v1184 = vld [vmem:[%s1179 + $0x10] sm:$0xf]
      %v1185 = vld [vmem:[%s1179 + $0x14] sm:$0xf]
      %v1186 = vld [vmem:[%s1179 + $0x18] sm:$0xf]
      %v1187 = vld [vmem:[%s1179 + $0x1c] sm:$0xf]
      %v1188 = vld [vmem:[%s1179 + $0x20] sm:$0xf]
      %v1189 = vld [vmem:[%s1179 + $0x24] sm:$0xf]
      %v1190 = vld [vmem:[%s1179 + $0x28] sm:$0xf]
      %v1191 = vld [vmem:[%s1179 + $0x2c] sm:$0xf]
      %v1192 = vld [vmem:[%s1179 + $0x30] sm:$0xf]
      %v1193 = vld [vmem:[%s1179 + $0x34] sm:$0xf]
      %v1194 = vld [vmem:[%s1179 + $0x38] sm:$0xf]
      %v1195 = vld [vmem:[%s1179 + $0x3c] sm:$0xf]
      %s1196 = scalar_lea.vmem %s4, 2
      %v1197 = vld [vmem:[%s1196] sm:$0x1]
      %s1198 = scalar_lea.vmem %s5, 2
      %v1199 = vld [vmem:[%s1198] sm:$0x1]
      %v1216 = vunpack.c.l.b16 %v1180
      %v1217 = vunpack.c.l.b16 %v1181
      %v1218 = vunpack.c.l.b16 %v1182
      %v1219 = vunpack.c.l.b16 %v1183
      %v1220 = vunpack.c.l.b16 %v1184
      %v1221 = vunpack.c.l.b16 %v1185
      %v1222 = vunpack.c.l.b16 %v1186
      %v1223 = vunpack.c.l.b16 %v1187
      %v1224 = vunpack.c.l.b16 %v1188
      %v1225 = vunpack.c.l.b16 %v1189
      %v1226 = vunpack.c.l.b16 %v1190
      %v1227 = vunpack.c.l.b16 %v1191
      %v1228 = vunpack.c.l.b16 %v1192
      %v1229 = vunpack.c.l.b16 %v1193
      %v1230 = vunpack.c.l.b16 %v1194
      %v1231 = vunpack.c.l.b16 %v1195
      %v1232 = vpack.c.b16 %v1217, %v1216
      %v1233 = vpack.c.b16 %v1219, %v1218
      %v1234 = vpack.c.b16 %v1221, %v1220
      %v1235 = vpack.c.b16 %v1223, %v1222
      %v1236 = vpack.c.b16 %v1225, %v1224
      %v1237 = vpack.c.b16 %v1227, %v1226
      %v1238 = vpack.c.b16 %v1229, %v1228
      %v1239 = vpack.c.b16 %v1231, %v1230
      %1248 = vmatprep.subr.bf16.mxu0 0
      %1249 = vmatpush1.bf16.msra.mxu0 %v1232
      %1250 = vmatprep.subr.bf16.mxu0 0
      %1251 = vmatpush1.bf16.msra.mxu0 %v1233
      %1252 = vmatprep.subr.bf16.mxu0 0
      %1253 = vmatpush1.bf16.msra.mxu0 %v1234
      %1254 = vmatprep.subr.bf16.mxu0 0
      %1255 = vmatpush1.bf16.msra.mxu0 %v1235
      %1256 = vmatprep.subr.bf16.mxu0 0
      %1257 = vmatpush1.bf16.msra.mxu0 %v1236
      %1258 = vmatprep.subr.bf16.mxu0 0
      %1259 = vmatpush1.bf16.msra.mxu0 %v1237
      %1260 = vmatprep.subr.bf16.mxu0 0
      %1261 = vmatpush1.bf16.msra.mxu0 %v1238
      %1262 = vmatprep.subr.bf16.mxu0 0
      %1263 = vmatpush1.bf16.msra.mxu0 %v1239
      %1264 = vmatprep.subr.bf16.mxu0 0
      %1265 = vmatpush1.bf16.msra.mxu0 0
      %1266 = vmatprep.subr.bf16.mxu0 0
      %1267 = vmatpush1.bf16.msra.mxu0 0
      %1268 = vmatprep.subr.bf16.mxu0 0
      %1269 = vmatpush1.bf16.msra.mxu0 0
      %1270 = vmatprep.subr.bf16.mxu0 0
      %1271 = vmatpush1.bf16.msra.mxu0 0
      %1272 = vmatprep.subr.bf16.mxu0 0
      %1273 = vmatpush1.bf16.msra.mxu0 0
      %1274 = vmatprep.subr.bf16.mxu0 0
      %1275 = vmatpush1.bf16.msra.mxu0 0
      %1276 = vmatprep.subr.bf16.mxu0 0
      %1277 = vmatpush1.bf16.msra.mxu0 0
      %1278 = vmatprep.subr.bf16.mxu0 0
      %1279 = vmatpush1.bf16.msra.mxu0 0
      %1280 = vmatprep.mubr.bf16.mxu0 0
      %1281 = vmatmul.mubr.bf16.gmra.mrb[0].mxu0 %v288
      %v1282 = vpop.f32.mrb[0].mxu0
      %v1283 = vadd.f32 0.0, %v1282
      %v1284 = vpop.f32.mrb[0].mxu0
      %v1285 = vpop.f32.mrb[0].mxu0
      %v1286 = vadd.f32 0.0, %v1285
      %v1287 = vpop.f32.mrb[0].mxu0
      %1288 = vmatprep.mubr.bf16.mxu0 0
      %1289 = vmatmul.mubr.bf16.gmra.mrb[0].mxu0 %v289
      %v1290 = vpop.f32.mrb[0].mxu0
      %v1291 = vadd.f32 0.0, %v1290
      %v1292 = vpop.f32.mrb[0].mxu0
      %v1293 = vpop.f32.mrb[0].mxu0
      %v1294 = vadd.f32 0.0, %v1293
      %v1295 = vpop.f32.mrb[0].mxu0
      %1296 = vmatprep.mubr.bf16.mxu0 0
      %1297 = vmatmul.mubr.bf16.gmra.mrb[0].mxu0 %v290
      %v1298 = vpop.f32.mrb[0].mxu0
      %v1299 = vadd.f32 0.0, %v1298
      %v1300 = vpop.f32.mrb[0].mxu0
      %v1301 = vpop.f32.mrb[0].mxu0
      %v1302 = vadd.f32 0.0, %v1301
      %v1303 = vpop.f32.mrb[0].mxu0
      %1304 = vmatprep.mubr.bf16.mxu0 0
      %1305 = vmatmul.mubr.bf16.gmra.mrb[0].mxu0 %v291
      %v1306 = vpop.f32.mrb[0].mxu0
      %v1307 = vadd.f32 0.0, %v1306
      %v1308 = vpop.f32.mrb[0].mxu0
      %v1309 = vpop.f32.mrb[0].mxu0
      %v1310 = vadd.f32 0.0, %v1309
      %v1311 = vpop.f32.mrb[0].mxu0
      %1312 = vdwg.mxu0
      %1313 = vmatprep.subr.bf16.mxu0 0
      %1314 = vmatpush1.bf16.msra.mxu0 %v1232
      %1315 = vmatprep.subr.bf16.mxu0 0
      %1316 = vmatpush1.bf16.msra.mxu0 %v1233
      %1317 = vmatprep.subr.bf16.mxu0 0
      %1318 = vmatpush1.bf16.msra.mxu0 %v1234
      %1319 = vmatprep.subr.bf16.mxu0 0
      %1320 = vmatpush1.bf16.msra.mxu0 %v1235
      %1321 = vmatprep.subr.bf16.mxu0 0
      %1322 = vmatpush1.bf16.msra.mxu0 %v1236
      %1323 = vmatprep.subr.bf16.mxu0 0
      %1324 = vmatpush1.bf16.msra.mxu0 %v1237
      %1325 = vmatprep.subr.bf16.mxu0 0
      %1326 = vmatpush1.bf16.msra.mxu0 %v1238
      %1327 = vmatprep.subr.bf16.mxu0 0
      %1328 = vmatpush1.bf16.msra.mxu0 %v1239
      %1329 = vmatprep.subr.bf16.mxu0 0
      %1330 = vmatpush1.bf16.msra.mxu0 0
      %1331 = vmatprep.subr.bf16.mxu0 0
      %1332 = vmatpush1.bf16.msra.mxu0 0
      %1333 = vmatprep.subr.bf16.mxu0 0
      %1334 = vmatpush1.bf16.msra.mxu0 0
      %1335 = vmatprep.subr.bf16.mxu0 0
      %1336 = vmatpush1.bf16.msra.mxu0 0
      %1337 = vmatprep.subr.bf16.mxu0 0
      %1338 = vmatpush1.bf16.msra.mxu0 0
      %1339 = vmatprep.subr.bf16.mxu0 0
      %1340 = vmatpush1.bf16.msra.mxu0 0
      %1341 = vmatprep.subr.bf16.mxu0 0
      %1342 = vmatpush1.bf16.msra.mxu0 0
      %1343 = vmatprep.subr.bf16.mxu0 0
      %1344 = vmatpush1.bf16.msra.mxu0 0
      %1345 = vmatprep.mubr.bf16.mxu0 0
      %1346 = vmatmul.mubr.bf16.gmra.mrb[0].mxu0 %v296
      %v1347 = vpop.f32.mrb[0].mxu0
      %v1348 = vadd.f32 0.0, %v1347
      %v1349 = vpop.f32.mrb[0].mxu0
      %v1350 = vpop.f32.mrb[0].mxu0
      %v1351 = vadd.f32 0.0, %v1350
      %v1352 = vpop.f32.mrb[0].mxu0
      %1353 = vmatprep.mubr.bf16.mxu0 0
      %1354 = vmatmul.mubr.bf16.gmra.mrb[0].mxu0 %v297
      %v1355 = vpop.f32.mrb[0].mxu0
      %v1356 = vadd.f32 0.0, %v1355
      %v1357 = vpop.f32.mrb[0].mxu0
      %v1358 = vpop.f32.mrb[0].mxu0
      %v1359 = vadd.f32 0.0, %v1358
      %v1360 = vpop.f32.mrb[0].mxu0
      %1361 = vdwg.mxu0
      %v1363 = vlaneseq
      %v1364 = vshrl.u32 %v1363, 7
      %v1365 = vsub.s32 0, %v1364
      %v1366 = vrot.slane %v1197, %v1365
      %v1368 = vmul.f32 %v1348, %v1366
      %v1369 = vmul.f32 %v1351, %v1366
      %v1370 = vmul.f32 %v1356, %v1366
      %v1371 = vmul.f32 %v1359, %v1366
      %v1372 = vsel %vm496, %v1368, 0.0
      %1373 = vadd.xlane.f32.xlu0 %v1372
      %v1374 = vpop.xlane.xlu0 %1373
      %v1375 = vsel %vm496, %v1369, 0.0
      %1376 = vadd.xlane.f32.xlu0 %v1375
      %v1377 = vpop.xlane.xlu0 %1376
      %v1378 = vsel %vm496, %v1370, 0.0
      %1379 = vadd.xlane.f32.xlu0 %v1378
      %v1380 = vpop.xlane.xlu0 %1379
      %v1381 = vsel %vm496, %v1371, 0.0
      %1382 = vadd.xlane.f32.xlu0 %v1381
      %v1383 = vpop.xlane.xlu0 %1382
      %v1385 = vsel %vm496, %v1199, 0
      %v1388 = vsel %vm496, %v1283, 0
      %v1391 = vsel %vm496, %v1286, 0
      %v1394 = vsel %vm496, %v1291, 0
      %v1397 = vsel %vm496, %v1294, 0
      %v1400 = vsel %vm496, %v1299, 0
      %v1403 = vsel %vm496, %v1302, 0
      %v1406 = vsel %vm496, %v1307, 0
      %v1409 = vsel %vm496, %v1310, 0
      %1411 = vmatprep.subr.mxu0 0.0
      %1412 = vmatpush1.xpose.msra.mxu0 %v1388
      %1413 = vmatprep.subr.mxu0 0.0
      %1414 = vmatpush1.xpose.msra.mxu0 %v1391
      %1415 = vmatprep.subr.mxu0 0.0
      %1416 = vmatpush1.xpose.msra.mxu0 %v1394
      %1417 = vmatprep.subr.mxu0 0.0
      %1418 = vmatpush1.xpose.msra.mxu0 %v1397
      %1419 = vmatprep.subr.mxu0 0.0
      %1420 = vmatpush1.xpose.msra.mxu0 %v1400
      %1421 = vmatprep.subr.mxu0 0.0
      %1422 = vmatpush1.xpose.msra.mxu0 %v1403
      %1423 = vmatprep.subr.mxu0 0.0
      %1424 = vmatpush1.xpose.msra.mxu0 %v1406
      %1425 = vmatprep.subr.mxu0 0.0
      %1426 = vmatpush1.xpose.msra.mxu0 %v1409
      %1427 = vmatprep.subr.mxu0 0.0
      %1428 = vmatpush1.xpose.msra.mxu0 0.0
      %1429 = vmatprep.subr.mxu0 0.0
      %1430 = vmatpush1.xpose.msra.mxu0 0.0
      %1431 = vmatprep.subr.mxu0 0.0
      %1432 = vmatpush1.xpose.msra.mxu0 0.0
      %1433 = vmatprep.subr.mxu0 0.0
      %1434 = vmatpush1.xpose.msra.mxu0 0.0
      %1435 = vmatprep.subr.mxu0 0.0
      %1436 = vmatpush1.xpose.msra.mxu0 0.0
      %1437 = vmatprep.subr.mxu0 0.0
      %1438 = vmatpush1.xpose.msra.mxu0 0.0
      %1439 = vmatprep.subr.mxu0 0.0
      %1440 = vmatpush1.xpose.msra.mxu0 0.0
      %1441 = vmatprep.subr.mxu0 0.0
      %1442 = vmatpush1.xpose.msra.mxu0 0.0
      %1443 = vmatprep.subr.mxu0 0.0
      %1444 = vmatpush1.xpose.msra.mxu0 0.0
      %1445 = vmatprep.subr.mxu0 0.0
      %1446 = vmatpush1.xpose.msra.mxu0 0.0
      %1447 = vmatprep.subr.mxu0 0.0
      %1448 = vmatpush1.xpose.msra.mxu0 0.0
      %1449 = vmatprep.subr.mxu0 0.0
      %1450 = vmatpush1.xpose.msra.mxu0 0.0
      %1451 = vmatprep.subr.mxu0 0.0
      %1452 = vmatpush1.xpose.msra.mxu0 0.0
      %1453 = vmatprep.subr.mxu0 0.0
      %1454 = vmatpush1.xpose.msra.mxu0 0.0
      %1455 = vmatprep.subr.mxu0 0.0
      %1456 = vmatpush1.xpose.msra.mxu0 0.0
      %1457 = vmatprep.subr.mxu0 0.0
      %1458 = vmatpush1.xpose.msra.mxu0 0.0
      %1459 = vmatprep.subr.mxu0 0.0
      %1460 = vmatpush1.xpose.msra.mxu0 0.0
      %1461 = vmatprep.subr.mxu0 0.0
      %1462 = vmatpush1.xpose.msra.mxu0 0.0
      %1463 = vmatprep.subr.mxu0 0.0
      %1464 = vmatpush1.xpose.msra.mxu0 0.0
      %1465 = vmatprep.subr.mxu0 0.0
      %1466 = vmatpush1.xpose.msra.mxu0 0.0
      %1467 = vmatprep.subr.mxu0 0.0
      %1468 = vmatpush1.xpose.msra.mxu0 0.0
      %1469 = vmatprep.subr.mxu0 0.0
      %1470 = vmatpush1.xpose.msra.mxu0 0.0
      %1471 = vmatprep.subr.mxu0 0.0
      %1472 = vmatpush1.xpose.msra.mxu0 0.0
      %1473 = vmatprep.subr.mxu0 0.0
      %1474 = vmatpush1.xpose.msra.mxu0 0.0
      %1475 = vmatprep.mubr.f32.mxu0 0.0
      %1476 = vmatmul.mubr.f32.gmra.mrb[0].mxu0 %v1385
      %v1477 = vpop.f32.mrb[0].mxu0
      %v1478 = vadd.f32 0.0, %v1477
      %v1479 = vpop.f32.mrb[0].mxu0
      %1480 = vdwg.mxu0
      %v1481 = vlaneseq
      %v1482 = vshrl.u32 %v1481, 7
      %v1483 = vsub.s32 0, %v1482
      %v1484 = vrot.slane %v1478, %v1483
      %v1485 = vadd.f32 %v1374, %v1484
      %v1486 = vadd.f32 %v1377, %v1484
      %v1487 = vadd.f32 %v1380, %v1484
      %v1488 = vadd.f32 %v1383, %v1484
      %vm1489 = vcmp.gt.f32.partialorder %v1485, 0.0
      %vm1490 = vcmp.gt.f32.partialorder %v1486, 0.0
      %vm1491 = vcmp.gt.f32.partialorder %v1487, 0.0
      %vm1492 = vcmp.gt.f32.partialorder %v1488, 0.0
      %v1493 = vmul.f32 %v1485, 0.2
      %v1494 = vmul.f32 %v1486, 0.2
      %v1495 = vmul.f32 %v1487, 0.2
      %v1496 = vmul.f32 %v1488, 0.2
      %v1497 = vsel %vm1489, %v1485, %v1493
      %v1498 = vsel %vm1490, %v1486, %v1494
      %v1499 = vsel %vm1491, %v1487, %v1495
      %v1500 = vsel %vm1492, %v1488, %v1496
      %v1501 = vsel %vm634, %v1497, -9e+15
      %v1502 = vsel %vm635, %v1498, -9e+15
      %v1503 = vsel %vm636, %v1499, -9e+15
      %v1504 = vsel %vm637, %v1500, -9e+15
      %v1505 = vsel %vm642, %v1501, -inf
      %1506 = vmax.xlane.f32.xlu0 %v1505
      %v1507 = vpop.xlane.xlu0 %1506
      %v1508 = vsel %vm642, %v1502, -inf
      %1509 = vmax.xlane.f32.xlu0 %v1508
      %v1510 = vpop.xlane.xlu0 %1509
      %v1511 = vsel %vm642, %v1503, -inf
      %1512 = vmax.xlane.f32.xlu0 %v1511
      %v1513 = vpop.xlane.xlu0 %1512
      %v1514 = vsel %vm642, %v1504, -inf
      %1515 = vmax.xlane.f32.xlu0 %v1514
      %v1516 = vpop.xlane.xlu0 %1515
      %v1517 = vsub.f32 %v1501, %v1507
      %v1518 = vsub.f32 %v1502, %v1510
      %v1519 = vsub.f32 %v1503, %v1513
      %v1520 = vsub.f32 %v1504, %v1516
      %v1521 = vmul.f32 %v1517, 1.442695
      %v1522 = vpow.pop %v1521
      %v1523 = vmul.f32 %v1518, 1.442695
      %v1524 = vpow.pop %v1523
      %v1525 = vmul.f32 %v1519, 1.442695
      %v1526 = vpow.pop %v1525
      %v1527 = vmul.f32 %v1520, 1.442695
      %v1528 = vpow.pop %v1527
      %v1529 = vsel %vm642, %v1522, 0.0
      %1530 = vadd.xlane.f32.xlu0 %v1529
      %v1531 = vpop.xlane.xlu0 %1530
      %v1532 = vsel %vm642, %v1524, 0.0
      %1533 = vadd.xlane.f32.xlu0 %v1532
      %v1534 = vpop.xlane.xlu0 %1533
      %v1535 = vsel %vm642, %v1526, 0.0
      %1536 = vadd.xlane.f32.xlu0 %v1535
      %v1537 = vpop.xlane.xlu0 %1536
      %v1538 = vsel %vm642, %v1528, 0.0
      %1539 = vadd.xlane.f32.xlu0 %v1538
      %v1540 = vpop.xlane.xlu0 %1539
      %v1541 = vrcp.pop %v1531
      %v1542 = vrcp.pop %v1534
      %v1543 = vrcp.pop %v1537
      %v1544 = vrcp.pop %v1540
      %v1545 = vmul.f32 %v1522, %v1541
      %v1546 = vmul.f32 %v1524, %v1542
      %v1547 = vmul.f32 %v1526, %v1543
      %v1548 = vmul.f32 %v1528, %v1544
      %v1549 = vpack.c.bf16 %v1546, %v1545
      %v1550 = vpack.c.bf16 %v1548, %v1547
      %v1551 = vpack.c.bf16 %v1286, %v1283
      %v1552 = vpack.c.bf16 %v1294, %v1291
      %v1553 = vpack.c.bf16 %v1302, %v1299
      %v1554 = vpack.c.bf16 %v1310, %v1307
      %v1556 = vsel %vm642, %v1549, 0
      %v1559 = vsel %vm642, %v1550, 0
      %1561 = vmatprep.subr.bf16.mxu0 0
      %1562 = vmatpush1.bf16.msra.mxu0 %v1551
      %1563 = vmatprep.subr.bf16.mxu0 0
      %1564 = vmatpush1.bf16.msra.mxu0 %v1552
      %1565 = vmatprep.subr.bf16.mxu0 0
      %1566 = vmatpush1.bf16.msra.mxu0 %v1553
      %1567 = vmatprep.subr.bf16.mxu0 0
      %1568 = vmatpush1.bf16.msra.mxu0 %v1554
      %1569 = vmatprep.subr.bf16.mxu0 0
      %1570 = vmatpush1.bf16.msra.mxu0 0
      %1571 = vmatprep.subr.bf16.mxu0 0
      %1572 = vmatpush1.bf16.msra.mxu0 0
      %1573 = vmatprep.subr.bf16.mxu0 0
      %1574 = vmatpush1.bf16.msra.mxu0 0
      %1575 = vmatprep.subr.bf16.mxu0 0
      %1576 = vmatpush1.bf16.msra.mxu0 0
      %1577 = vmatprep.subr.bf16.mxu0 0
      %1578 = vmatpush1.bf16.msra.mxu0 0
      %1579 = vmatprep.subr.bf16.mxu0 0
      %1580 = vmatpush1.bf16.msra.mxu0 0
      %1581 = vmatprep.subr.bf16.mxu0 0
      %1582 = vmatpush1.bf16.msra.mxu0 0
      %1583 = vmatprep.subr.bf16.mxu0 0
      %1584 = vmatpush1.bf16.msra.mxu0 0
      %1585 = vmatprep.subr.bf16.mxu0 0
      %1586 = vmatpush1.bf16.msra.mxu0 0
      %1587 = vmatprep.subr.bf16.mxu0 0
      %1588 = vmatpush1.bf16.msra.mxu0 0
      %1589 = vmatprep.subr.bf16.mxu0 0
      %1590 = vmatpush1.bf16.msra.mxu0 0
      %1591 = vmatprep.subr.bf16.mxu0 0
      %1592 = vmatpush1.bf16.msra.mxu0 0
      %1593 = vmatprep.mubr.bf16.mxu0 0
      %1594 = vmatmul.mubr.bf16.gmra.mrb[0].mxu0 %v1556
      %v1595 = vpop.f32.mrb[0].mxu0
      %v1596 = vadd.f32 0.0, %v1595
      %v1597 = vpop.f32.mrb[0].mxu0
      %v1598 = vpop.f32.mrb[0].mxu0
      %v1599 = vadd.f32 0.0, %v1598
      %v1600 = vpop.f32.mrb[0].mxu0
      %1601 = vmatprep.mubr.bf16.mxu0 0
      %1602 = vmatmul.mubr.bf16.gmra.mrb[0].mxu0 %v1559
      %v1603 = vpop.f32.mrb[0].mxu0
      %v1604 = vadd.f32 0.0, %v1603
      %v1605 = vpop.f32.mrb[0].mxu0
      %v1606 = vpop.f32.mrb[0].mxu0
      %v1607 = vadd.f32 0.0, %v1606
      %v1608 = vpop.f32.mrb[0].mxu0
      %1609 = vdwg.mxu0
      %s1610 = scalar_lea.vmem %s3, 192
      %v1611 = vld [vmem:[%s1610] sm:$0xf]
      %v1612 = vld [vmem:[%s1610 + $0x4] sm:$0xf]
      %v1613 = vld [vmem:[%s1610 + $0x8] sm:$0xf]
      %v1614 = vld [vmem:[%s1610 + $0xc] sm:$0xf]
      %v1615 = vld [vmem:[%s1610 + $0x10] sm:$0xf]
      %v1616 = vld [vmem:[%s1610 + $0x14] sm:$0xf]
      %v1617 = vld [vmem:[%s1610 + $0x18] sm:$0xf]
      %v1618 = vld [vmem:[%s1610 + $0x1c] sm:$0xf]
      %v1619 = vld [vmem:[%s1610 + $0x20] sm:$0xf]
      %v1620 = vld [vmem:[%s1610 + $0x24] sm:$0xf]
      %v1621 = vld [vmem:[%s1610 + $0x28] sm:$0xf]
      %v1622 = vld [vmem:[%s1610 + $0x2c] sm:$0xf]
      %v1623 = vld [vmem:[%s1610 + $0x30] sm:$0xf]
      %v1624 = vld [vmem:[%s1610 + $0x34] sm:$0xf]
      %v1625 = vld [vmem:[%s1610 + $0x38] sm:$0xf]
      %v1626 = vld [vmem:[%s1610 + $0x3c] sm:$0xf]
      %s1627 = scalar_lea.vmem %s4, 3
      %v1628 = vld [vmem:[%s1627] sm:$0x1]
      %s1629 = scalar_lea.vmem %s5, 3
      %v1630 = vld [vmem:[%s1629] sm:$0x1]
      %v1647 = vunpack.c.l.b16 %v1611
      %v1648 = vunpack.c.l.b16 %v1612
      %v1649 = vunpack.c.l.b16 %v1613
      %v1650 = vunpack.c.l.b16 %v1614
      %v1651 = vunpack.c.l.b16 %v1615
      %v1652 = vunpack.c.l.b16 %v1616
      %v1653 = vunpack.c.l.b16 %v1617
      %v1654 = vunpack.c.l.b16 %v1618
      %v1655 = vunpack.c.l.b16 %v1619
      %v1656 = vunpack.c.l.b16 %v1620
      %v1657 = vunpack.c.l.b16 %v1621
      %v1658 = vunpack.c.l.b16 %v1622
      %v1659 = vunpack.c.l.b16 %v1623
      %v1660 = vunpack.c.l.b16 %v1624
      %v1661 = vunpack.c.l.b16 %v1625
      %v1662 = vunpack.c.l.b16 %v1626
      %v1663 = vpack.c.b16 %v1648, %v1647
      %v1664 = vpack.c.b16 %v1650, %v1649
      %v1665 = vpack.c.b16 %v1652, %v1651
      %v1666 = vpack.c.b16 %v1654, %v1653
      %v1667 = vpack.c.b16 %v1656, %v1655
      %v1668 = vpack.c.b16 %v1658, %v1657
      %v1669 = vpack.c.b16 %v1660, %v1659
      %v1670 = vpack.c.b16 %v1662, %v1661
      %1679 = vmatprep.subr.bf16.mxu0 0
      %1680 = vmatpush1.bf16.msra.mxu0 %v1663
      %1681 = vmatprep.subr.bf16.mxu0 0
      %1682 = vmatpush1.bf16.msra.mxu0 %v1664
      %1683 = vmatprep.subr.bf16.mxu0 0
      %1684 = vmatpush1.bf16.msra.mxu0 %v1665
      %1685 = vmatprep.subr.bf16.mxu0 0
      %1686 = vmatpush1.bf16.msra.mxu0 %v1666
      %1687 = vmatprep.subr.bf16.mxu0 0
      %1688 = vmatpush1.bf16.msra.mxu0 %v1667
      %1689 = vmatprep.subr.bf16.mxu0 0
      %1690 = vmatpush1.bf16.msra.mxu0 %v1668
      %1691 = vmatprep.subr.bf16.mxu0 0
      %1692 = vmatpush1.bf16.msra.mxu0 %v1669
      %1693 = vmatprep.subr.bf16.mxu0 0
      %1694 = vmatpush1.bf16.msra.mxu0 %v1670
      %1695 = vmatprep.subr.bf16.mxu0 0
      %1696 = vmatpush1.bf16.msra.mxu0 0
      %1697 = vmatprep.subr.bf16.mxu0 0
      %1698 = vmatpush1.bf16.msra.mxu0 0
      %1699 = vmatprep.subr.bf16.mxu0 0
      %1700 = vmatpush1.bf16.msra.mxu0 0
      %1701 = vmatprep.subr.bf16.mxu0 0
      %1702 = vmatpush1.bf16.msra.mxu0 0
      %1703 = vmatprep.subr.bf16.mxu0 0
      %1704 = vmatpush1.bf16.msra.mxu0 0
      %1705 = vmatprep.subr.bf16.mxu0 0
      %1706 = vmatpush1.bf16.msra.mxu0 0
      %1707 = vmatprep.subr.bf16.mxu0 0
      %1708 = vmatpush1.bf16.msra.mxu0 0
      %1709 = vmatprep.subr.bf16.mxu0 0
      %1710 = vmatpush1.bf16.msra.mxu0 0
      %1711 = vmatprep.mubr.bf16.mxu0 0
      %1712 = vmatmul.mubr.bf16.gmra.mrb[0].mxu0 %v288
      %v1713 = vpop.f32.mrb[0].mxu0
      %v1714 = vadd.f32 0.0, %v1713
      %v1715 = vpop.f32.mrb[0].mxu0
      %v1716 = vpop.f32.mrb[0].mxu0
      %v1717 = vadd.f32 0.0, %v1716
      %v1718 = vpop.f32.mrb[0].mxu0
      %1719 = vmatprep.mubr.bf16.mxu0 0
      %1720 = vmatmul.mubr.bf16.gmra.mrb[0].mxu0 %v289
      %v1721 = vpop.f32.mrb[0].mxu0
      %v1722 = vadd.f32 0.0, %v1721
      %v1723 = vpop.f32.mrb[0].mxu0
      %v1724 = vpop.f32.mrb[0].mxu0
      %v1725 = vadd.f32 0.0, %v1724
      %v1726 = vpop.f32.mrb[0].mxu0
      %1727 = vmatprep.mubr.bf16.mxu0 0
      %1728 = vmatmul.mubr.bf16.gmra.mrb[0].mxu0 %v290
      %v1729 = vpop.f32.mrb[0].mxu0
      %v1730 = vadd.f32 0.0, %v1729
      %v1731 = vpop.f32.mrb[0].mxu0
      %v1732 = vpop.f32.mrb[0].mxu0
      %v1733 = vadd.f32 0.0, %v1732
      %v1734 = vpop.f32.mrb[0].mxu0
      %1735 = vmatprep.mubr.bf16.mxu0 0
      %1736 = vmatmul.mubr.bf16.gmra.mrb[0].mxu0 %v291
      %v1737 = vpop.f32.mrb[0].mxu0
      %v1738 = vadd.f32 0.0, %v1737
      %v1739 = vpop.f32.mrb[0].mxu0
      %v1740 = vpop.f32.mrb[0].mxu0
      %v1741 = vadd.f32 0.0, %v1740
      %v1742 = vpop.f32.mrb[0].mxu0
      %1743 = vdwg.mxu0
      %1744 = vmatprep.subr.bf16.mxu0 0
      %1745 = vmatpush1.bf16.msra.mxu0 %v1663
      %1746 = vmatprep.subr.bf16.mxu0 0
      %1747 = vmatpush1.bf16.msra.mxu0 %v1664
      %1748 = vmatprep.subr.bf16.mxu0 0
      %1749 = vmatpush1.bf16.msra.mxu0 %v1665
      %1750 = vmatprep.subr.bf16.mxu0 0
      %1751 = vmatpush1.bf16.msra.mxu0 %v1666
      %1752 = vmatprep.subr.bf16.mxu0 0
      %1753 = vmatpush1.bf16.msra.mxu0 %v1667
      %1754 = vmatprep.subr.bf16.mxu0 0
      %1755 = vmatpush1.bf16.msra.mxu0 %v1668
      %1756 = vmatprep.subr.bf16.mxu0 0
      %1757 = vmatpush1.bf16.msra.mxu0 %v1669
      %1758 = vmatprep.subr.bf16.mxu0 0
      %1759 = vmatpush1.bf16.msra.mxu0 %v1670
      %1760 = vmatprep.subr.bf16.mxu0 0
      %1761 = vmatpush1.bf16.msra.mxu0 0
      %1762 = vmatprep.subr.bf16.mxu0 0
      %1763 = vmatpush1.bf16.msra.mxu0 0
      %1764 = vmatprep.subr.bf16.mxu0 0
      %1765 = vmatpush1.bf16.msra.mxu0 0
      %1766 = vmatprep.subr.bf16.mxu0 0
      %1767 = vmatpush1.bf16.msra.mxu0 0
      %1768 = vmatprep.subr.bf16.mxu0 0
      %1769 = vmatpush1.bf16.msra.mxu0 0
      %1770 = vmatprep.subr.bf16.mxu0 0
      %1771 = vmatpush1.bf16.msra.mxu0 0
      %1772 = vmatprep.subr.bf16.mxu0 0
      %1773 = vmatpush1.bf16.msra.mxu0 0
      %1774 = vmatprep.subr.bf16.mxu0 0
      %1775 = vmatpush1.bf16.msra.mxu0 0
      %1776 = vmatprep.mubr.bf16.mxu0 0
      %1777 = vmatmul.mubr.bf16.gmra.mrb[0].mxu0 %v296
      %v1778 = vpop.f32.mrb[0].mxu0
      %v1779 = vadd.f32 0.0, %v1778
      %v1780 = vpop.f32.mrb[0].mxu0
      %v1781 = vpop.f32.mrb[0].mxu0
      %v1782 = vadd.f32 0.0, %v1781
      %v1783 = vpop.f32.mrb[0].mxu0
      %1784 = vmatprep.mubr.bf16.mxu0 0
      %1785 = vmatmul.mubr.bf16.gmra.mrb[0].mxu0 %v297
      %v1786 = vpop.f32.mrb[0].mxu0
      %v1787 = vadd.f32 0.0, %v1786
      %v1788 = vpop.f32.mrb[0].mxu0
      %v1789 = vpop.f32.mrb[0].mxu0
      %v1790 = vadd.f32 0.0, %v1789
      %v1791 = vpop.f32.mrb[0].mxu0
      %1792 = vdwg.mxu0
      %v1794 = vlaneseq
      %v1795 = vshrl.u32 %v1794, 7
      %v1796 = vsub.s32 0, %v1795
      %v1797 = vrot.slane %v1628, %v1796
      %v1799 = vmul.f32 %v1779, %v1797
      %v1800 = vmul.f32 %v1782, %v1797
      %v1801 = vmul.f32 %v1787, %v1797
      %v1802 = vmul.f32 %v1790, %v1797
      %v1803 = vsel %vm496, %v1799, 0.0
      %1804 = vadd.xlane.f32.xlu0 %v1803
      %v1805 = vpop.xlane.xlu0 %1804
      %v1806 = vsel %vm496, %v1800, 0.0
      %1807 = vadd.xlane.f32.xlu0 %v1806
      %v1808 = vpop.xlane.xlu0 %1807
      %v1809 = vsel %vm496, %v1801, 0.0
      %1810 = vadd.xlane.f32.xlu0 %v1809
      %v1811 = vpop.xlane.xlu0 %1810
      %v1812 = vsel %vm496, %v1802, 0.0
      %1813 = vadd.xlane.f32.xlu0 %v1812
      %v1814 = vpop.xlane.xlu0 %1813
      %v1816 = vsel %vm496, %v1630, 0
      %v1819 = vsel %vm496, %v1714, 0
      %v1822 = vsel %vm496, %v1717, 0
      %v1825 = vsel %vm496, %v1722, 0
      %v1828 = vsel %vm496, %v1725, 0
      %v1831 = vsel %vm496, %v1730, 0
      %v1834 = vsel %vm496, %v1733, 0
      %v1837 = vsel %vm496, %v1738, 0
      %v1840 = vsel %vm496, %v1741, 0
      %1842 = vmatprep.subr.mxu0 0.0
      %1843 = vmatpush1.xpose.msra.mxu0 %v1819
      %1844 = vmatprep.subr.mxu0 0.0
      %1845 = vmatpush1.xpose.msra.mxu0 %v1822
      %1846 = vmatprep.subr.mxu0 0.0
      %1847 = vmatpush1.xpose.msra.mxu0 %v1825
      %1848 = vmatprep.subr.mxu0 0.0
      %1849 = vmatpush1.xpose.msra.mxu0 %v1828
      %1850 = vmatprep.subr.mxu0 0.0
      %1851 = vmatpush1.xpose.msra.mxu0 %v1831
      %1852 = vmatprep.subr.mxu0 0.0
      %1853 = vmatpush1.xpose.msra.mxu0 %v1834
      %1854 = vmatprep.subr.mxu0 0.0
      %1855 = vmatpush1.xpose.msra.mxu0 %v1837
      %1856 = vmatprep.subr.mxu0 0.0
      %1857 = vmatpush1.xpose.msra.mxu0 %v1840
      %1858 = vmatprep.subr.mxu0 0.0
      %1859 = vmatpush1.xpose.msra.mxu0 0.0
      %1860 = vmatprep.subr.mxu0 0.0
      %1861 = vmatpush1.xpose.msra.mxu0 0.0
      %1862 = vmatprep.subr.mxu0 0.0
      %1863 = vmatpush1.xpose.msra.mxu0 0.0
      %1864 = vmatprep.subr.mxu0 0.0
      %1865 = vmatpush1.xpose.msra.mxu0 0.0
      %1866 = vmatprep.subr.mxu0 0.0
      %1867 = vmatpush1.xpose.msra.mxu0 0.0
      %1868 = vmatprep.subr.mxu0 0.0
      %1869 = vmatpush1.xpose.msra.mxu0 0.0
      %1870 = vmatprep.subr.mxu0 0.0
      %1871 = vmatpush1.xpose.msra.mxu0 0.0
      %1872 = vmatprep.subr.mxu0 0.0
      %1873 = vmatpush1.xpose.msra.mxu0 0.0
      %1874 = vmatprep.subr.mxu0 0.0
      %1875 = vmatpush1.xpose.msra.mxu0 0.0
      %1876 = vmatprep.subr.mxu0 0.0
      %1877 = vmatpush1.xpose.msra.mxu0 0.0
      %1878 = vmatprep.subr.mxu0 0.0
      %1879 = vmatpush1.xpose.msra.mxu0 0.0
      %1880 = vmatprep.subr.mxu0 0.0
      %1881 = vmatpush1.xpose.msra.mxu0 0.0
      %1882 = vmatprep.subr.mxu0 0.0
      %1883 = vmatpush1.xpose.msra.mxu0 0.0
      %1884 = vmatprep.subr.mxu0 0.0
      %1885 = vmatpush1.xpose.msra.mxu0 0.0
      %1886 = vmatprep.subr.mxu0 0.0
      %1887 = vmatpush1.xpose.msra.mxu0 0.0
      %1888 = vmatprep.subr.mxu0 0.0
      %1889 = vmatpush1.xpose.msra.mxu0 0.0
      %1890 = vmatprep.subr.mxu0 0.0
      %1891 = vmatpush1.xpose.msra.mxu0 0.0
      %1892 = vmatprep.subr.mxu0 0.0
      %1893 = vmatpush1.xpose.msra.mxu0 0.0
      %1894 = vmatprep.subr.mxu0 0.0
      %1895 = vmatpush1.xpose.msra.mxu0 0.0
      %1896 = vmatprep.subr.mxu0 0.0
      %1897 = vmatpush1.xpose.msra.mxu0 0.0
      %1898 = vmatprep.subr.mxu0 0.0
      %1899 = vmatpush1.xpose.msra.mxu0 0.0
      %1900 = vmatprep.subr.mxu0 0.0
      %1901 = vmatpush1.xpose.msra.mxu0 0.0
      %1902 = vmatprep.subr.mxu0 0.0
      %1903 = vmatpush1.xpose.msra.mxu0 0.0
      %1904 = vmatprep.subr.mxu0 0.0
      %1905 = vmatpush1.xpose.msra.mxu0 0.0
      %1906 = vmatprep.mubr.f32.mxu0 0.0
      %1907 = vmatmul.mubr.f32.gmra.mrb[0].mxu0 %v1816
      %v1908 = vpop.f32.mrb[0].mxu0
      %v1909 = vadd.f32 0.0, %v1908
      %v1910 = vpop.f32.mrb[0].mxu0
      %1911 = vdwg.mxu0
      %v1912 = vlaneseq
      %v1913 = vshrl.u32 %v1912, 7
      %v1914 = vsub.s32 0, %v1913
      %v1915 = vrot.slane %v1909, %v1914
      %v1916 = vadd.f32 %v1805, %v1915
      %v1917 = vadd.f32 %v1808, %v1915
      %v1918 = vadd.f32 %v1811, %v1915
      %v1919 = vadd.f32 %v1814, %v1915
      %vm1920 = vcmp.gt.f32.partialorder %v1916, 0.0
      %vm1921 = vcmp.gt.f32.partialorder %v1917, 0.0
      %vm1922 = vcmp.gt.f32.partialorder %v1918, 0.0
      %vm1923 = vcmp.gt.f32.partialorder %v1919, 0.0
      %v1924 = vmul.f32 %v1916, 0.2
      %v1925 = vmul.f32 %v1917, 0.2
      %v1926 = vmul.f32 %v1918, 0.2
      %v1927 = vmul.f32 %v1919, 0.2
      %v1928 = vsel %vm1920, %v1916, %v1924
      %v1929 = vsel %vm1921, %v1917, %v1925
      %v1930 = vsel %vm1922, %v1918, %v1926
      %v1931 = vsel %vm1923, %v1919, %v1927
      %v1932 = vsel %vm634, %v1928, -9e+15
      %v1933 = vsel %vm635, %v1929, -9e+15
      %v1934 = vsel %vm636, %v1930, -9e+15
      %v1935 = vsel %vm637, %v1931, -9e+15
      %v1936 = vsel %vm642, %v1932, -inf
      %1937 = vmax.xlane.f32.xlu0 %v1936
      %v1938 = vpop.xlane.xlu0 %1937
      %v1939 = vsel %vm642, %v1933, -inf
      %1940 = vmax.xlane.f32.xlu0 %v1939
      %v1941 = vpop.xlane.xlu0 %1940
      %v1942 = vsel %vm642, %v1934, -inf
      %1943 = vmax.xlane.f32.xlu0 %v1942
      %v1944 = vpop.xlane.xlu0 %1943
      %v1945 = vsel %vm642, %v1935, -inf
      %1946 = vmax.xlane.f32.xlu0 %v1945
      %v1947 = vpop.xlane.xlu0 %1946
      %v1948 = vsub.f32 %v1932, %v1938
      %v1949 = vsub.f32 %v1933, %v1941
      %v1950 = vsub.f32 %v1934, %v1944
      %v1951 = vsub.f32 %v1935, %v1947
      %v1952 = vmul.f32 %v1948, 1.442695
      %v1953 = vpow.pop %v1952
      %v1954 = vmul.f32 %v1949, 1.442695
      %v1955 = vpow.pop %v1954
      %v1956 = vmul.f32 %v1950, 1.442695
      %v1957 = vpow.pop %v1956
      %v1958 = vmul.f32 %v1951, 1.442695
      %v1959 = vpow.pop %v1958
      %v1960 = vsel %vm642, %v1953, 0.0
      %1961 = vadd.xlane.f32.xlu0 %v1960
      %v1962 = vpop.xlane.xlu0 %1961
      %v1963 = vsel %vm642, %v1955, 0.0
      %1964 = vadd.xlane.f32.xlu0 %v1963
      %v1965 = vpop.xlane.xlu0 %1964
      %v1966 = vsel %vm642, %v1957, 0.0
      %1967 = vadd.xlane.f32.xlu0 %v1966
      %v1968 = vpop.xlane.xlu0 %1967
      %v1969 = vsel %vm642, %v1959, 0.0
      %1970 = vadd.xlane.f32.xlu0 %v1969
      %v1971 = vpop.xlane.xlu0 %1970
      %v1972 = vrcp.pop %v1962
      %v1973 = vrcp.pop %v1965
      %v1974 = vrcp.pop %v1968
      %v1975 = vrcp.pop %v1971
      %v1976 = vmul.f32 %v1953, %v1972
      %v1977 = vmul.f32 %v1955, %v1973
      %v1978 = vmul.f32 %v1957, %v1974
      %v1979 = vmul.f32 %v1959, %v1975
      %v1980 = vpack.c.bf16 %v1977, %v1976
      %v1981 = vpack.c.bf16 %v1979, %v1978
      %v1982 = vpack.c.bf16 %v1717, %v1714
      %v1983 = vpack.c.bf16 %v1725, %v1722
      %v1984 = vpack.c.bf16 %v1733, %v1730
      %v1985 = vpack.c.bf16 %v1741, %v1738
      %v1987 = vsel %vm642, %v1980, 0
      %v1990 = vsel %vm642, %v1981, 0
      %1992 = vmatprep.subr.bf16.mxu0 0
      %1993 = vmatpush1.bf16.msra.mxu0 %v1982
      %1994 = vmatprep.subr.bf16.mxu0 0
      %1995 = vmatpush1.bf16.msra.mxu0 %v1983
      %1996 = vmatprep.subr.bf16.mxu0 0
      %1997 = vmatpush1.bf16.msra.mxu0 %v1984
      %1998 = vmatprep.subr.bf16.mxu0 0
      %1999 = vmatpush1.bf16.msra.mxu0 %v1985
      %2000 = vmatprep.subr.bf16.mxu0 0
      %2001 = vmatpush1.bf16.msra.mxu0 0
      %2002 = vmatprep.subr.bf16.mxu0 0
      %2003 = vmatpush1.bf16.msra.mxu0 0
      %2004 = vmatprep.subr.bf16.mxu0 0
      %2005 = vmatpush1.bf16.msra.mxu0 0
      %2006 = vmatprep.subr.bf16.mxu0 0
      %2007 = vmatpush1.bf16.msra.mxu0 0
      %2008 = vmatprep.subr.bf16.mxu0 0
      %2009 = vmatpush1.bf16.msra.mxu0 0
      %2010 = vmatprep.subr.bf16.mxu0 0
      %2011 = vmatpush1.bf16.msra.mxu0 0
      %2012 = vmatprep.subr.bf16.mxu0 0
      %2013 = vmatpush1.bf16.msra.mxu0 0
      %2014 = vmatprep.subr.bf16.mxu0 0
      %2015 = vmatpush1.bf16.msra.mxu0 0
      %2016 = vmatprep.subr.bf16.mxu0 0
      %2017 = vmatpush1.bf16.msra.mxu0 0
      %2018 = vmatprep.subr.bf16.mxu0 0
      %2019 = vmatpush1.bf16.msra.mxu0 0
      %2020 = vmatprep.subr.bf16.mxu0 0
      %2021 = vmatpush1.bf16.msra.mxu0 0
      %2022 = vmatprep.subr.bf16.mxu0 0
      %2023 = vmatpush1.bf16.msra.mxu0 0
      %2024 = vmatprep.mubr.bf16.mxu0 0
      %2025 = vmatmul.mubr.bf16.gmra.mrb[0].mxu0 %v1987
      %v2026 = vpop.f32.mrb[0].mxu0
      %v2027 = vadd.f32 0.0, %v2026
      %v2028 = vpop.f32.mrb[0].mxu0
      %v2029 = vpop.f32.mrb[0].mxu0
      %v2030 = vadd.f32 0.0, %v2029
      %v2031 = vpop.f32.mrb[0].mxu0
      %2032 = vmatprep.mubr.bf16.mxu0 0
      %2033 = vmatmul.mubr.bf16.gmra.mrb[0].mxu0 %v1990
      %v2034 = vpop.f32.mrb[0].mxu0
      %v2035 = vadd.f32 0.0, %v2034
      %v2036 = vpop.f32.mrb[0].mxu0
      %v2037 = vpop.f32.mrb[0].mxu0
      %v2038 = vadd.f32 0.0, %v2037
      %v2039 = vpop.f32.mrb[0].mxu0
      %2040 = vdwg.mxu0
      %2045 = vrot.lane.b32.xlu0 %v1165, 32
      %v2046 = vpop.permute.xlu0 %2045
      %2047 = vrot.lane.b32.xlu0 %v1168, 32
      %v2048 = vpop.permute.xlu0 %2047
      %2049 = vrot.lane.b32.xlu0 %v1173, 32
      %v2050 = vpop.permute.xlu0 %2049
      %2051 = vrot.lane.b32.xlu0 %v1176, 32
      %v2052 = vpop.permute.xlu0 %2051
      %2061 = vrot.lane.b32.xlu0 %v1596, 64
      %v2062 = vpop.permute.xlu0 %2061
      %2063 = vrot.lane.b32.xlu0 %v1599, 64
      %v2064 = vpop.permute.xlu0 %2063
      %2065 = vrot.lane.b32.xlu0 %v1604, 64
      %v2066 = vpop.permute.xlu0 %2065
      %2067 = vrot.lane.b32.xlu0 %v1607, 64
      %v2068 = vpop.permute.xlu0 %2067
      %2077 = vrot.lane.b32.xlu0 %v2027, 96
      %v2078 = vpop.permute.xlu0 %2077
      %2079 = vrot.lane.b32.xlu0 %v2030, 96
      %v2080 = vpop.permute.xlu0 %2079
      %2081 = vrot.lane.b32.xlu0 %v2035, 96
      %v2082 = vpop.permute.xlu0 %2081
      %2083 = vrot.lane.b32.xlu0 %v2038, 96
      %v2084 = vpop.permute.xlu0 %2083
      %v2089 = vsel %vm496, %v734, %v2046
      %v2090 = vsel %vm496, %v737, %v2048
      %v2091 = vsel %vm496, %v742, %v2050
      %v2092 = vsel %vm496, %v745, %v2052
      %v2093 = vsel %vm642, %v2089, %v2062
      %v2094 = vsel %vm642, %v2090, %v2064
      %v2095 = vsel %vm642, %v2091, %v2066
      %v2096 = vsel %vm642, %v2092, %v2068
      %vm2097 = vcmask 785408
      %v2098 = vsel %vm2097, %v2093, %v2078
      %v2099 = vsel %vm2097, %v2094, %v2080
      %v2100 = vsel %vm2097, %v2095, %v2082
      %v2101 = vsel %vm2097, %v2096, %v2084
      %vm2102 = vcmp.gt.f32.partialorder %v2098, 0.0
      %vm2103 = vcmp.gt.f32.partialorder %v2099, 0.0
      %vm2104 = vcmp.gt.f32.partialorder %v2100, 0.0
      %vm2105 = vcmp.gt.f32.partialorder %v2101, 0.0
      %v2106 = vmin.f32 %v2098, 0.0
      %v2107 = vmin.f32 %v2099, 0.0
      %v2108 = vmin.f32 %v2100, 0.0
      %v2109 = vmin.f32 %v2101, 0.0
      %v2110 = vmul.f32 %v2106, 1.442695
      %v2111 = vpow.pop %v2110
      %v2112 = vmul.f32 %v2107, 1.442695
      %v2113 = vpow.pop %v2112
      %v2114 = vmul.f32 %v2108, 1.442695
      %v2115 = vpow.pop %v2114
      %v2116 = vmul.f32 %v2109, 1.442695
      %v2117 = vpow.pop %v2116
      %v2118 = vsub.f32 %v2111, 1.0
      %v2119 = vsub.f32 %v2113, 1.0
      %v2120 = vsub.f32 %v2115, 1.0
      %v2121 = vsub.f32 %v2117, 1.0
      %v2122 = vsel %vm2102, %v2098, %v2118
      %v2123 = vsel %vm2103, %v2099, %v2119
      %v2124 = vsel %vm2104, %v2100, %v2120
      %v2125 = vsel %vm2105, %v2101, %v2121
      %2126 = vst [vmem:[%s275] sm:$0xff] %v2122
      %2127 = vst [vmem:[%s275 + $0x8] sm:$0xff] %v2123
      %2128 = vst [vmem:[%s275 + $0x10] sm:$0xff] %v2124
      %2129 = vst [vmem:[%s275 + $0x18] sm:$0xff] %v2125
      %s2130 = smul.u32 4, %s17
      %p2131 = scmp.lt.s32.totalorder %s2130, 7
      %s2132 = scalar_select %p2131, %s2130, 7
      %s2133 = smul.addr %s2132, 8
      %s2134 = scalar_lea.vmem %s6, %s2133
      // Predicated region
      $region45: #{gat_ordered_deep_forward.4} parent=43 // pred_check
        %p2135 = pneg %p171
      $region46: #{gat_ordered_deep_forward.4} parent=43 // pred_check_branch
        %2137 = sbr.rel (%p2135) target = $region48
      $region47: #{gat_ordered_deep_forward.4} parent=43 // pred_region
        %s2138 = smul.u32 4, %s17
      $region48: #{gat_ordered_deep_forward.4} parent=43 // pred_fallthru
        _
    $region44: #{gat_ordered_deep_forward.4} parent=5 // pred_fallthru
      _
    %p2139 = scmp.le.s32.totalorder 2, %s12
    // Predicated region
    $region49: #{gat_ordered_deep_forward.4} parent=5 // pred_check
      %p2140 = pneg %p2139
    $region50: #{gat_ordered_deep_forward.4} parent=5 // pred_check_branch
      %2142 = sbr.rel (%p2140) target = $region52
    $region51: #{gat_ordered_deep_forward.4} parent=5 // pred_region
      %s2143 = ssub.s32 %s12, 2
      // Predicated region
      $region53: #{gat_ordered_deep_forward.4} parent=51 // pred_check
        %p2144 = pneg %p177
      $region54: #{gat_ordered_deep_forward.4} parent=51 // pred_check_branch
        %2146 = sbr.rel (%p2144) target = $region56
      $region55: #{gat_ordered_deep_forward.4} parent=51 // pred_region
        %s2147 = smul.u32 4, %s18
        %p2148 = scmp.lt.s32.totalorder %s2147, 7
        %s2149 = scalar_select %p2148, %s2147, 7
        %s2150 = smul.addr %s2149, 8
        %s2151 = scalar_lea.vmem %s6, %s2150
      $region56: #{gat_ordered_deep_forward.4} parent=51 // pred_fallthru
        _
    $region52: #{gat_ordered_deep_forward.4} parent=5 // pred_fallthru
      _
  $region6: #{gat_ordered_deep_forward.4} parent=0 // loop_footer
    %s16 = sadd.s32 1, %s12
  $region7: #{gat_ordered_deep_forward.4} parent=0 // loop_footer_branch
    %11 = sbr.rel target = $region3
  $region8: #{gat_ordered_deep_forward.4} parent=0 // loop_exit
    _

</llo_original>
